<compile_context>
chip_gen: v7x
topology: tpu7x:2x2x1
jax: 0.10.0
libtpu: 0.0.40
codegen_flags: <defaults>
</compile_context>

<pallas_src>
import jax
import jax.numpy as jnp
from jax.experimental import pallas as pl
from jax.experimental.pallas import tpu as pltpu

IN_FEATURES = 6400
HIDDEN = 200
NUM_ACTIONS = 2


def policy_kernel(x_ref, w1_ref, b1_ref, w2_ref, b2_ref, out_ref):
    tb = x_ref.shape[0]

    # ---- affine1: (tb, 6400) @ (6400, 200) on the MXU; bf16 operands, f32 acc.
    h = jnp.dot(x_ref[...].astype(jnp.bfloat16), w1_ref[...],
                preferred_element_type=jnp.float32)
    h = jnp.maximum(h + b1_ref[...], 0.0)                 # bias + ReLU (f32, VPU)

    # ---- affine2: (tb, 200) @ (200, 2).  With N=2 the MXU result would be 98%
    #      padding, so do it on the VPU: per-action broadcast-multiply + lane
    #      reduction, then scatter the two scalars-per-row into a (tb, 2) tile.
    w2 = w2_ref[...].astype(jnp.float32)                  # (NUM_ACTIONS, HIDDEN)
    col = jax.lax.broadcasted_iota(jnp.int32, (tb, NUM_ACTIONS), 1)
    logits = jnp.zeros((tb, NUM_ACTIONS), jnp.float32)
    for a in range(NUM_ACTIONS):                          # static, tiny
        la = jnp.sum(h * w2[a:a + 1, :], axis=1, keepdims=True)   # (tb, 1)
        logits = logits + jnp.where(col == a, la, 0.0)
    logits = logits + b2_ref[...]

    # ---- softmax over dim=1 (numerically stable, exact division so rows sum to 1)
    m = jnp.max(logits, axis=1, keepdims=True)
    e = jnp.exp(logits - m)
    out_ref[...] = (e / jnp.sum(e, axis=1, keepdims=True)).astype(out_ref.dtype)


def policy_forward(x, w1, b1, w2, b2, *, batch_block=256):
    """x: (B, 6400) f32.  w1: (6400, 200) bf16.  b1: (1, 200) f32.
    w2: (num_actions, 200) f32 (PyTorch (out, in) layout).  b2: (1, num_actions) f32."""
    B = x.shape[0]
    assert x.shape[1] == IN_FEATURES

    tb = B if B <= batch_block else batch_block
    assert B % tb == 0, "pad the batch to a multiple of the batch block"
    grid = (B // tb,)   # 1 step for small B; parallel batch tiles for large B

    return pl.pallas_call(
        policy_kernel,
        out_shape=jax.ShapeDtypeStruct((B, NUM_ACTIONS), jnp.float32),
        grid_spec=pltpu.PrefetchScalarGridSpec(
            num_scalar_prefetch=0,
            grid=grid,
            in_specs=[
                pl.BlockSpec((tb, IN_FEATURES), lambda i: (i, 0)),       # x batch tile
                pl.BlockSpec((IN_FEATURES, HIDDEN), lambda i: (0, 0)),   # W1 resident (bf16)
                pl.BlockSpec((1, HIDDEN), lambda i: (0, 0)),             # b1 resident
                pl.BlockSpec((NUM_ACTIONS, HIDDEN), lambda i: (0, 0)),   # W2 resident
                pl.BlockSpec((1, NUM_ACTIONS), lambda i: (0, 0)),        # b2 resident
            ],
            out_specs=pl.BlockSpec((tb, NUM_ACTIONS), lambda i: (i, 0)),
        ),
        # Batch axis is embarrassingly parallel -> megacore sharding on v7x.
        compiler_params=pltpu.CompilerParams(
            dimension_semantics=("parallel",),
        ),
    )(x, w1, b1, w2, b2)


def init_params(key):
    """Deterministic synthetic parameters (shapes from Policy.__init__)."""
    k1, k2, k3, k4 = jax.random.split(key, 4)
    # W1 is the HBM-bandwidth-bound tensor: store it in bf16 in HBM.
    w1 = (jax.random.normal(k1, (IN_FEATURES, HIDDEN), jnp.float32)
          * (1.0 / jnp.sqrt(IN_FEATURES))).astype(jnp.bfloat16)
    b1 = jax.random.normal(k2, (1, HIDDEN), jnp.float32) * 0.01
    w2 = jax.random.normal(k3, (NUM_ACTIONS, HIDDEN), jnp.float32) * (1.0 / jnp.sqrt(HIDDEN))
    b2 = jax.random.normal(k4, (1, NUM_ACTIONS), jnp.float32) * 0.01
    return w1, b1, w2, b2


def reference_forward(x, w1, b1, w2, b2):
    # Mirror the kernel's bf16 rounding of the first-matmul operands, then
    # compute in f32: remaining differences are accumulation-order only.
    x32 = x.astype(jnp.bfloat16).astype(jnp.float32)
    w1_32 = w1.astype(jnp.float32)
    h = jnp.maximum(x32 @ w1_32 + b1, 0.0)
    logits = h @ w2.T + b2
    return jax.nn.softmax(logits, axis=1)


if __name__ == "__main__":
    key = jax.random.PRNGKey(0)
    kp, kx = jax.random.split(key)
    w1, b1, w2, b2 = init_params(kp)

    batch = 2  # feature dim fixed at 6400 by the module's Linear(6400, 200)
    x = jax.random.normal(kx, (batch, IN_FEATURES), jnp.float32)

    out = jax.block_until_ready(policy_forward(x, w1, b1, w2, b2))

    ref = reference_forward(x, w1, b1, w2, b2)
    assert out.shape == (batch, NUM_ACTIONS)
    assert jnp.allclose(out, ref, atol=1e-4, rtol=1e-4), float(jnp.max(jnp.abs(out - ref)))
    assert jnp.allclose(jnp.sum(out, axis=1), 1.0, atol=1e-5)

    print("KERNEL_OK")
</pallas_src>

<mosaic_0001>
module attributes {stable_mosaic.version = 11 : i64} {
  func.func @policy_kernel(%arg0: i32, %arg1: memref<2x6400xf32, #tpu.memory_space<vmem>>, %arg2: memref<6400x200xbf16, #tpu.memory_space<vmem>>, %arg3: memref<1x200xf32, #tpu.memory_space<vmem>>, %arg4: memref<2x200xf32, #tpu.memory_space<vmem>>, %arg5: memref<1x2xf32, #tpu.memory_space<vmem>>, %arg6: memref<2x2xf32, #tpu.memory_space<vmem>>) attributes {dimension_semantics = [#tpu.dimension_semantics<parallel>], iteration_bounds = array<i64: 1>, scalar_prefetch = 0 : i64, scratch_operands = 0 : i64, tpu.core_type = #tpu.core_type<tc>, window_params = [{transform_indices = @transform_0, window_bounds = array<i64: 2, 6400>}, {pipeline_mode = #tpu.pipeline_mode<synchronous>, transform_indices = @transform_1, window_bounds = array<i64: 6400, 200>}, {pipeline_mode = #tpu.pipeline_mode<synchronous>, transform_indices = @transform_2, window_bounds = array<i64: 1, 200>}, {pipeline_mode = #tpu.pipeline_mode<synchronous>, transform_indices = @transform_3, window_bounds = array<i64: 2, 200>}, {pipeline_mode = #tpu.pipeline_mode<synchronous>, transform_indices = @transform_4, window_bounds = array<i64: 1, 2>}, {transform_indices = @transform_5, window_bounds = array<i64: 2, 2>}]} {
    %c0 = arith.constant 0 : index
    %c0_0 = arith.constant 0 : index
    %0 = vector.load %arg1[%c0, %c0_0] : memref<2x6400xf32, #tpu.memory_space<vmem>>, vector<2x6400xf32>
    %1 = arith.truncf %0 : vector<2x6400xf32> to vector<2x6400xbf16>
    %c0_1 = arith.constant 0 : index
    %c0_2 = arith.constant 0 : index
    %2 = vector.load %arg2[%c0_1, %c0_2] : memref<6400x200xbf16, #tpu.memory_space<vmem>>, vector<6400x200xbf16>
    %cst = arith.constant dense<0.000000e+00> : vector<2x200xf32>
    %3 = tpu.matmul %1, %2, %cst {dimension_numbers = #tpu.dot_dimension_numbers<[1], [0], [0], [1], [0, 0, 1, 1], [], []>} : vector<2x6400xbf16>, vector<6400x200xbf16>, vector<2x200xf32> -> vector<2x200xf32>
    %c0_3 = arith.constant 0 : index
    %c0_4 = arith.constant 0 : index
    %4 = vector.load %arg3[%c0_3, %c0_4] : memref<1x200xf32, #tpu.memory_space<vmem>>, vector<1x200xf32>
    %5 = vector.broadcast %4 : vector<1x200xf32> to vector<2x200xf32>
    %6 = arith.addf %3, %5 : vector<2x200xf32>
    %cst_5 = arith.constant 0.000000e+00 : f32
    %7 = vector.broadcast %cst_5 : f32 to vector<2x200xf32>
    %8 = arith.maximumf %6, %7 : vector<2x200xf32>
    %c0_6 = arith.constant 0 : index
    %c0_7 = arith.constant 0 : index
    %9 = vector.load %arg4[%c0_6, %c0_7] : memref<2x200xf32, #tpu.memory_space<vmem>>, vector<2x200xf32>
    %10 = tpu.iota {dimensions = array<i32: 1>} : vector<2x2xi32>
    %cst_8 = arith.constant 0.000000e+00 : f32
    %11 = vector.broadcast %cst_8 : f32 to vector<2x2xf32>
    %12 = vector.extract_strided_slice %9 {offsets = [0, 0], sizes = [1, 200], strides = [1, 1]} : vector<2x200xf32> to vector<1x200xf32>
    %13 = vector.broadcast %12 : vector<1x200xf32> to vector<2x200xf32>
    %14 = arith.mulf %8, %13 : vector<2x200xf32>
    %cst_9 = arith.constant dense<0.000000e+00> : vector<2xf32>
    %15 = vector.multi_reduction <add>, %14, %cst_9 [1] : vector<2x200xf32> to vector<2xf32>
    %16 = vector.shape_cast %15 : vector<2xf32> to vector<2x1xf32>
    %c0_i32 = arith.constant 0 : i32
    %17 = vector.broadcast %c0_i32 : i32 to vector<2x2xi32>
    %18 = arith.cmpi eq, %10, %17 : vector<2x2xi32>
    %cst_10 = arith.constant 0.000000e+00 : f32
    %19 = vector.shape_cast %16 : vector<2x1xf32> to vector<2x1xf32>
    %20 = vector.broadcast %19 : vector<2x1xf32> to vector<2x2xf32>
    %21 = vector.broadcast %cst_10 : f32 to vector<2x2xf32>
    %22 = arith.select %18, %20, %21 : vector<2x2xi1>, vector<2x2xf32>
    %23 = arith.addf %11, %22 : vector<2x2xf32>
    %24 = vector.extract_strided_slice %9 {offsets = [1, 0], sizes = [1, 200], strides = [1, 1]} : vector<2x200xf32> to vector<1x200xf32>
    %25 = vector.broadcast %24 : vector<1x200xf32> to vector<2x200xf32>
    %26 = arith.mulf %8, %25 : vector<2x200xf32>
    %cst_11 = arith.constant dense<0.000000e+00> : vector<2xf32>
    %27 = vector.multi_reduction <add>, %26, %cst_11 [1] : vector<2x200xf32> to vector<2xf32>
    %28 = vector.shape_cast %27 : vector<2xf32> to vector<2x1xf32>
    %c1_i32 = arith.constant 1 : i32
    %29 = vector.broadcast %c1_i32 : i32 to vector<2x2xi32>
    %30 = arith.cmpi eq, %10, %29 : vector<2x2xi32>
    %cst_12 = arith.constant 0.000000e+00 : f32
    %31 = vector.shape_cast %28 : vector<2x1xf32> to vector<2x1xf32>
    %32 = vector.broadcast %31 : vector<2x1xf32> to vector<2x2xf32>
    %33 = vector.broadcast %cst_12 : f32 to vector<2x2xf32>
    %34 = arith.select %30, %32, %33 : vector<2x2xi1>, vector<2x2xf32>
    %35 = arith.addf %23, %34 : vector<2x2xf32>
    %c0_13 = arith.constant 0 : index
    %c0_14 = arith.constant 0 : index
    %36 = vector.load %arg5[%c0_13, %c0_14] : memref<1x2xf32, #tpu.memory_space<vmem>>, vector<1x2xf32>
    %37 = vector.broadcast %36 : vector<1x2xf32> to vector<2x2xf32>
    %38 = arith.addf %35, %37 : vector<2x2xf32>
    %cst_15 = arith.constant dense<0xFF800000> : vector<2xf32>
    %39 = vector.multi_reduction <maximumf>, %38, %cst_15 [1] : vector<2x2xf32> to vector<2xf32>
    %40 = vector.shape_cast %39 : vector<2xf32> to vector<2x1xf32>
    %41 = vector.broadcast %40 : vector<2x1xf32> to vector<2x2xf32>
    %42 = arith.subf %38, %41 : vector<2x2xf32>
    %43 = math.exp %42 : vector<2x2xf32>
    %cst_16 = arith.constant dense<0.000000e+00> : vector<2xf32>
    %44 = vector.multi_reduction <add>, %43, %cst_16 [1] : vector<2x2xf32> to vector<2xf32>
    %45 = vector.shape_cast %44 : vector<2xf32> to vector<2x1xf32>
    %46 = vector.broadcast %45 : vector<2x1xf32> to vector<2x2xf32>
    %47 = arith.divf %43, %46 : vector<2x2xf32>
    %c0_17 = arith.constant 0 : index
    %c0_18 = arith.constant 0 : index
    %48 = vector.load %arg6[%c0_17, %c0_18] : memref<2x2xf32, #tpu.memory_space<vmem>>, vector<2x2xf32>
    tpu.vector_store %arg6[%c0_17, %c0_18], %47 {strides = array<i32>} : memref<2x2xf32, #tpu.memory_space<vmem>>, vector<2x2xf32>,
    return
  }
  func.func @transform_0(%arg0: i32) -> (i32, i32) {
    %c0_i32 = arith.constant 0 : i32
    %c0_i32_0 = arith.constant 0 : i32
    return %arg0, %c0_i32 : i32, i32
  }
  func.func @transform_1(%arg0: i32) -> (i32, i32) {
    %c0_i32 = arith.constant 0 : i32
    %c0_i32_0 = arith.constant 0 : i32
    %c0_i32_1 = arith.constant 0 : i32
    return %c0_i32, %c0_i32_0 : i32, i32
  }
  func.func @transform_2(%arg0: i32) -> (i32, i32) {
    %c0_i32 = arith.constant 0 : i32
    %c0_i32_0 = arith.constant 0 : i32
    %c0_i32_1 = arith.constant 0 : i32
    return %c0_i32, %c0_i32_0 : i32, i32
  }
  func.func @transform_3(%arg0: i32) -> (i32, i32) {
    %c0_i32 = arith.constant 0 : i32
    %c0_i32_0 = arith.constant 0 : i32
    %c0_i32_1 = arith.constant 0 : i32
    return %c0_i32, %c0_i32_0 : i32, i32
  }
  func.func @transform_4(%arg0: i32) -> (i32, i32) {
    %c0_i32 = arith.constant 0 : i32
    %c0_i32_0 = arith.constant 0 : i32
    %c0_i32_1 = arith.constant 0 : i32
    return %c0_i32, %c0_i32_0 : i32, i32
  }
  func.func @transform_5(%arg0: i32) -> (i32, i32) {
    %c0_i32 = arith.constant 0 : i32
    %c0_i32_0 = arith.constant 0 : i32
    return %arg0, %c0_i32 : i32, i32
  }
}

</mosaic_0001>

<llo_original>
// kernel: tpu_custom_call.1
$region0: #{tpu_custom_call.1}
  #allocation0 [shape = 'u32[]', space=smem, size = 0x4, offset = 0x4, fixed_abs, tag = 'smem constant byte address 0x4 - core index']
  #allocation1 [shape = 'u32[144,128]{1,0:T(1,128)}', space=vmem, size = 0x12000, scoped, tag = 'internal scratch']
  %s0 = inlined_call_operand.vmem [shape: f32[2,6400], index: 0, kind: input, shape index: {}]
  %s1 = inlined_call_operand.vmem [shape: bf16[6400,200], index: 1, kind: input, shape index: {}]
  %s2 = inlined_call_operand.vmem [shape: f32[1,200], index: 2, kind: input, shape index: {}]
  %s3 = inlined_call_operand.vmem [shape: f32[2,200], index: 3, kind: input, shape index: {}]
  %s4 = inlined_call_operand.vmem [shape: f32[1,2], index: 4, kind: input, shape index: {}]
  %s5 = inlined_call_operand.hbm [shape: f32[2,2], index: 5, kind: output, shape index: {}]
  %s6 = sld [smem:[#allocation0]]
  $region30: #{tpu_custom_call.1} parent=0
    _
  %s8 = ssub.s32 1, %s6
  %s9 = scalar_select 0, %s8, %s6
  $region1: #{tpu_custom_call.1} parent=0
    #allocation2 [shape = 'u8[1024]{0}', space=vmem, size = 0x400, scoped, tag = 'output window, operand 0, single buffered']
    #allocation3 [shape = 's32[1]{0}', space=sflag, size = 0x4, scoped, tag = 'scoped memory for tpu_custom_call.1']
    %10 = vsyncpa [#allocation3], 0
    // Predicated region
    $region2: #{tpu_custom_call.1} parent=1 // pred_check
      _
    $region3: #{tpu_custom_call.1} parent=1 // pred_check_branch
      %12 = sbr.rel (0) target = $region5
    $region4: #{tpu_custom_call.1} parent=1 // pred_region
      _
    $region5: #{tpu_custom_call.1} parent=1 // pred_fallthru
      _
    // Predicated region
    $region6: #{tpu_custom_call.1} parent=1 // pred_check
      _
    $region7: #{tpu_custom_call.1} parent=1 // pred_check_branch
      %14 = sbr.rel (0) target = $region9
    $region8: #{tpu_custom_call.1} parent=1 // pred_region
      _
    $region9: #{tpu_custom_call.1} parent=1 // pred_fallthru
      _
    // Predicated region
    $region10: #{tpu_custom_call.1} parent=1 // pred_check
      _
    $region11: #{tpu_custom_call.1} parent=1 // pred_check_branch
      %16 = sbr.rel (0) target = $region13
    $region12: #{tpu_custom_call.1} parent=1 // pred_region
      _
    $region13: #{tpu_custom_call.1} parent=1 // pred_fallthru
      _
    // Predicated region
    $region14: #{tpu_custom_call.1} parent=1 // pred_check
      _
    $region15: #{tpu_custom_call.1} parent=1 // pred_check_branch
      %18 = sbr.rel (0) target = $region17
    $region16: #{tpu_custom_call.1} parent=1 // pred_region
      _
    $region17: #{tpu_custom_call.1} parent=1 // pred_fallthru
      _
    // Predicated region
    $region18: #{tpu_custom_call.1} parent=1 // pred_check
      _
    $region19: #{tpu_custom_call.1} parent=1 // pred_check_branch
      %20 = sbr.rel (0) target = $region21
    $region20: #{tpu_custom_call.1} parent=1 // pred_region
      _
    $region21: #{tpu_custom_call.1} parent=1 // pred_fallthru
      _
    %v21 = vld [vmem:[%s0] sm:$0xff]
    %v22 = vld [vmem:[%s0 + $0x8] sm:$0xff]
    %v23 = vld [vmem:[%s0 + $0x10] sm:$0xff]
    %v24 = vld [vmem:[%s0 + $0x18] sm:$0xff]
    %v25 = vld [vmem:[%s0 + $0x20] sm:$0xff]
    %v26 = vld [vmem:[%s0 + $0x28] sm:$0xff]
    %v27 = vld [vmem:[%s0 + $0x30] sm:$0xff]
    %v28 = vld [vmem:[%s0 + $0x38] sm:$0xff]
    %v29 = vld [vmem:[%s0 + $0x40] sm:$0xff]
    %v30 = vld [vmem:[%s0 + $0x48] sm:$0xff]
    %v31 = vld [vmem:[%s0 + $0x50] sm:$0xff]
    %v32 = vld [vmem:[%s0 + $0x58] sm:$0xff]
    %v33 = vld [vmem:[%s0 + $0x60] sm:$0xf]
    %v47 = vcombine.high %v21, %v21
    %v49 = vunpack.c.l.s4 1983009808
    %v50 = vunpack.c.0.s8 %v49
    %v51 = vlaneseq
    %v52 = vshrl.u32 %v51, 7
    %v53 = vsub.s32 %v50, %v52
    %v54 = vrot.slane %v21, %v53
    %v56 = vunpack.c.l.s4 1983009808
    %v57 = vunpack.c.0.s8 %v56
    %v58 = vlaneseq
    %v59 = vshrl.u32 %v58, 7
    %v60 = vsub.s32 %v57, %v59
    %v61 = vrot.slane %v47, %v60
    %v62 = vcombine.high %v54, %v54
    %v63 = vcombine.high %v61, %v61
    %v64 = vcombine.high %v22, %v22
    %v66 = vunpack.c.l.s4 1983009808
    %v67 = vunpack.c.0.s8 %v66
    %v68 = vlaneseq
    %v69 = vshrl.u32 %v68, 7
    %v70 = vsub.s32 %v67, %v69
    %v71 = vrot.slane %v22, %v70
    %v73 = vunpack.c.l.s4 1983009808
    %v74 = vunpack.c.0.s8 %v73
    %v75 = vlaneseq
    %v76 = vshrl.u32 %v75, 7
    %v77 = vsub.s32 %v74, %v76
    %v78 = vrot.slane %v64, %v77
    %v79 = vcombine.high %v71, %v71
    %v80 = vcombine.high %v78, %v78
    %v81 = vcombine.high %v23, %v23
    %v83 = vunpack.c.l.s4 1983009808
    %v84 = vunpack.c.0.s8 %v83
    %v85 = vlaneseq
    %v86 = vshrl.u32 %v85, 7
    %v87 = vsub.s32 %v84, %v86
    %v88 = vrot.slane %v23, %v87
    %v90 = vunpack.c.l.s4 1983009808
    %v91 = vunpack.c.0.s8 %v90
    %v92 = vlaneseq
    %v93 = vshrl.u32 %v92, 7
    %v94 = vsub.s32 %v91, %v93
    %v95 = vrot.slane %v81, %v94
    %v96 = vcombine.high %v88, %v88
    %v97 = vcombine.high %v95, %v95
    %v98 = vcombine.high %v24, %v24
    %v100 = vunpack.c.l.s4 1983009808
    %v101 = vunpack.c.0.s8 %v100
    %v102 = vlaneseq
    %v103 = vshrl.u32 %v102, 7
    %v104 = vsub.s32 %v101, %v103
    %v105 = vrot.slane %v24, %v104
    %v107 = vunpack.c.l.s4 1983009808
    %v108 = vunpack.c.0.s8 %v107
    %v109 = vlaneseq
    %v110 = vshrl.u32 %v109, 7
    %v111 = vsub.s32 %v108, %v110
    %v112 = vrot.slane %v98, %v111
    %v113 = vcombine.high %v105, %v105
    %v114 = vcombine.high %v112, %v112
    %v115 = vcombine.high %v25, %v25
    %v117 = vunpack.c.l.s4 1983009808
    %v118 = vunpack.c.0.s8 %v117
    %v119 = vlaneseq
    %v120 = vshrl.u32 %v119, 7
    %v121 = vsub.s32 %v118, %v120
    %v122 = vrot.slane %v25, %v121
    %v124 = vunpack.c.l.s4 1983009808
    %v125 = vunpack.c.0.s8 %v124
    %v126 = vlaneseq
    %v127 = vshrl.u32 %v126, 7
    %v128 = vsub.s32 %v125, %v127
    %v129 = vrot.slane %v115, %v128
    %v130 = vcombine.high %v122, %v122
    %v131 = vcombine.high %v129, %v129
    %v132 = vcombine.high %v26, %v26
    %v134 = vunpack.c.l.s4 1983009808
    %v135 = vunpack.c.0.s8 %v134
    %v136 = vlaneseq
    %v137 = vshrl.u32 %v136, 7
    %v138 = vsub.s32 %v135, %v137
    %v139 = vrot.slane %v26, %v138
    %v141 = vunpack.c.l.s4 1983009808
    %v142 = vunpack.c.0.s8 %v141
    %v143 = vlaneseq
    %v144 = vshrl.u32 %v143, 7
    %v145 = vsub.s32 %v142, %v144
    %v146 = vrot.slane %v132, %v145
    %v147 = vcombine.high %v139, %v139
    %v148 = vcombine.high %v146, %v146
    %v149 = vcombine.high %v27, %v27
    %v151 = vunpack.c.l.s4 1983009808
    %v152 = vunpack.c.0.s8 %v151
    %v153 = vlaneseq
    %v154 = vshrl.u32 %v153, 7
    %v155 = vsub.s32 %v152, %v154
    %v156 = vrot.slane %v27, %v155
    %v158 = vunpack.c.l.s4 1983009808
    %v159 = vunpack.c.0.s8 %v158
    %v160 = vlaneseq
    %v161 = vshrl.u32 %v160, 7
    %v162 = vsub.s32 %v159, %v161
    %v163 = vrot.slane %v149, %v162
    %v164 = vcombine.high %v156, %v156
    %v165 = vcombine.high %v163, %v163
    %v166 = vcombine.high %v28, %v28
    %v168 = vunpack.c.l.s4 1983009808
    %v169 = vunpack.c.0.s8 %v168
    %v170 = vlaneseq
    %v171 = vshrl.u32 %v170, 7
    %v172 = vsub.s32 %v169, %v171
    %v173 = vrot.slane %v28, %v172
    %v175 = vunpack.c.l.s4 1983009808
    %v176 = vunpack.c.0.s8 %v175
    %v177 = vlaneseq
    %v178 = vshrl.u32 %v177, 7
    %v179 = vsub.s32 %v176, %v178
    %v180 = vrot.slane %v166, %v179
    %v181 = vcombine.high %v173, %v173
    %v182 = vcombine.high %v180, %v180
    %v183 = vcombine.high %v29, %v29
    %v185 = vunpack.c.l.s4 1983009808
    %v186 = vunpack.c.0.s8 %v185
    %v187 = vlaneseq
    %v188 = vshrl.u32 %v187, 7
    %v189 = vsub.s32 %v186, %v188
    %v190 = vrot.slane %v29, %v189
    %v192 = vunpack.c.l.s4 1983009808
    %v193 = vunpack.c.0.s8 %v192
    %v194 = vlaneseq
    %v195 = vshrl.u32 %v194, 7
    %v196 = vsub.s32 %v193, %v195
    %v197 = vrot.slane %v183, %v196
    %v198 = vcombine.high %v190, %v190
    %v199 = vcombine.high %v197, %v197
    %v200 = vcombine.high %v30, %v30
    %v202 = vunpack.c.l.s4 1983009808
    %v203 = vunpack.c.0.s8 %v202
    %v204 = vlaneseq
    %v205 = vshrl.u32 %v204, 7
    %v206 = vsub.s32 %v203, %v205
    %v207 = vrot.slane %v30, %v206
    %v209 = vunpack.c.l.s4 1983009808
    %v210 = vunpack.c.0.s8 %v209
    %v211 = vlaneseq
    %v212 = vshrl.u32 %v211, 7
    %v213 = vsub.s32 %v210, %v212
    %v214 = vrot.slane %v200, %v213
    %v215 = vcombine.high %v207, %v207
    %v216 = vcombine.high %v214, %v214
    %v217 = vcombine.high %v31, %v31
    %v219 = vunpack.c.l.s4 1983009808
    %v220 = vunpack.c.0.s8 %v219
    %v221 = vlaneseq
    %v222 = vshrl.u32 %v221, 7
    %v223 = vsub.s32 %v220, %v222
    %v224 = vrot.slane %v31, %v223
    %v226 = vunpack.c.l.s4 1983009808
    %v227 = vunpack.c.0.s8 %v226
    %v228 = vlaneseq
    %v229 = vshrl.u32 %v228, 7
    %v230 = vsub.s32 %v227, %v229
    %v231 = vrot.slane %v217, %v230
    %v232 = vcombine.high %v224, %v224
    %v233 = vcombine.high %v231, %v231
    %v234 = vcombine.high %v32, %v32
    %v236 = vunpack.c.l.s4 1983009808
    %v237 = vunpack.c.0.s8 %v236
    %v238 = vlaneseq
    %v239 = vshrl.u32 %v238, 7
    %v240 = vsub.s32 %v237, %v239
    %v241 = vrot.slane %v32, %v240
    %v243 = vunpack.c.l.s4 1983009808
    %v244 = vunpack.c.0.s8 %v243
    %v245 = vlaneseq
    %v246 = vshrl.u32 %v245, 7
    %v247 = vsub.s32 %v244, %v246
    %v248 = vrot.slane %v234, %v247
    %v249 = vcombine.high %v241, %v241
    %v250 = vcombine.high %v248, %v248
    %v252 = vunpack.c.l.s4 1983009808
    %v253 = vunpack.c.0.s8 %v252
    %v254 = vlaneseq
    %v255 = vshrl.u32 %v254, 7
    %v256 = vsub.s32 %v253, %v255
    %v257 = vrot.slane %v33, %v256
    %v258 = vcombine.high %v257, %v257
    %v309 = vpack.c.bf16 %v54, %v54
    %v310 = vpack.c.bf16 %v62, %v62
    %v311 = vpack.c.bf16 %v61, %v61
    %v312 = vpack.c.bf16 %v63, %v63
    %v313 = vpack.c.bf16 %v71, %v71
    %v314 = vpack.c.bf16 %v79, %v79
    %v315 = vpack.c.bf16 %v78, %v78
    %v316 = vpack.c.bf16 %v80, %v80
    %v317 = vpack.c.bf16 %v88, %v88
    %v318 = vpack.c.bf16 %v96, %v96
    %v319 = vpack.c.bf16 %v95, %v95
    %v320 = vpack.c.bf16 %v97, %v97
    %v321 = vpack.c.bf16 %v105, %v105
    %v322 = vpack.c.bf16 %v113, %v113
    %v323 = vpack.c.bf16 %v112, %v112
    %v324 = vpack.c.bf16 %v114, %v114
    %v325 = vpack.c.bf16 %v122, %v122
    %v326 = vpack.c.bf16 %v130, %v130
    %v327 = vpack.c.bf16 %v129, %v129
    %v328 = vpack.c.bf16 %v131, %v131
    %v329 = vpack.c.bf16 %v139, %v139
    %v330 = vpack.c.bf16 %v147, %v147
    %v331 = vpack.c.bf16 %v146, %v146
    %v332 = vpack.c.bf16 %v148, %v148
    %v333 = vpack.c.bf16 %v156, %v156
    %v334 = vpack.c.bf16 %v164, %v164
    %v335 = vpack.c.bf16 %v163, %v163
    %v336 = vpack.c.bf16 %v165, %v165
    %v337 = vpack.c.bf16 %v173, %v173
    %v338 = vpack.c.bf16 %v181, %v181
    %v339 = vpack.c.bf16 %v180, %v180
    %v340 = vpack.c.bf16 %v182, %v182
    %v341 = vpack.c.bf16 %v190, %v190
    %v342 = vpack.c.bf16 %v198, %v198
    %v343 = vpack.c.bf16 %v197, %v197
    %v344 = vpack.c.bf16 %v199, %v199
    %v345 = vpack.c.bf16 %v207, %v207
    %v346 = vpack.c.bf16 %v215, %v215
    %v347 = vpack.c.bf16 %v214, %v214
    %v348 = vpack.c.bf16 %v216, %v216
    %v349 = vpack.c.bf16 %v224, %v224
    %v350 = vpack.c.bf16 %v232, %v232
    %v351 = vpack.c.bf16 %v231, %v231
    %v352 = vpack.c.bf16 %v233, %v233
    %v353 = vpack.c.bf16 %v241, %v241
    %v354 = vpack.c.bf16 %v249, %v249
    %v355 = vpack.c.bf16 %v248, %v248
    %v356 = vpack.c.bf16 %v250, %v250
    %v357 = vpack.c.bf16 %v257, %v257
    %v358 = vpack.c.bf16 %v258, %v258
    %v359 = vld [vmem:[%s1] sm:$0xff]
    %v360 = vld [vmem:[%s1 + $0x8] sm:$0xff]
    %v361 = vld [vmem:[%s1 + $0x10] sm:$0xff]
    %v362 = vld [vmem:[%s1 + $0x18] sm:$0xff]
    %v363 = vld [vmem:[%s1 + $0x20] sm:$0xff]
    %v364 = vld [vmem:[%s1 + $0x28] sm:$0xff]
    %v365 = vld [vmem:[%s1 + $0x30] sm:$0xff]
    %v366 = vld [vmem:[%s1 + $0x38] sm:$0xff]
    %v367 = vld [vmem:[%s1 + $0x40] sm:$0xff]
    %v368 = vld [vmem:[%s1 + $0x48] sm:$0xff]
    %v369 = vld [vmem:[%s1 + $0x50] sm:$0xff]
    %v370 = vld [vmem:[%s1 + $0x58] sm:$0xff]
    %v371 = vld [vmem:[%s1 + $0x60] sm:$0xff]
    %v372 = vld [vmem:[%s1 + $0x68] sm:$0xff]
    %v373 = vld [vmem:[%s1 + $0x70] sm:$0xff]
    %v374 = vld [vmem:[%s1 + $0x78] sm:$0xff]
    %v375 = vld [vmem:[%s1 + $0x80] sm:$0xff]
    %v376 = vld [vmem:[%s1 + $0x88] sm:$0xff]
    %v377 = vld [vmem:[%s1 + $0x90] sm:$0xff]
    %v378 = vld [vmem:[%s1 + $0x98] sm:$0xff]
    %v379 = vld [vmem:[%s1 + $0xa0] sm:$0xff]
    %v380 = vld [vmem:[%s1 + $0xa8] sm:$0xff]
    %v381 = vld [vmem:[%s1 + $0xb0] sm:$0xff]
    %v382 = vld [vmem:[%s1 + $0xb8] sm:$0xff]
    %v383 = vld [vmem:[%s1 + $0xc0] sm:$0xff]
    %v384 = vld [vmem:[%s1 + $0xc8] sm:$0xff]
    %v385 = vld [vmem:[%s1 + $0xd0] sm:$0xff]
    %v386 = vld [vmem:[%s1 + $0xd8] sm:$0xff]
    %v387 = vld [vmem:[%s1 + $0xe0] sm:$0xff]
    %v388 = vld [vmem:[%s1 + $0xe8] sm:$0xff]
    %v389 = vld [vmem:[%s1 + $0xf0] sm:$0xff]
    %v390 = vld [vmem:[%s1 + $0xf8] sm:$0xff]
    %v391 = vld [vmem:[%s1 + $0x100] sm:$0xff]
    %v392 = vld [vmem:[%s1 + $0x108] sm:$0xff]
    %v393 = vld [vmem:[%s1 + $0x110] sm:$0xff]
    %v394 = vld [vmem:[%s1 + $0x118] sm:$0xff]
    %v395 = vld [vmem:[%s1 + $0x120] sm:$0xff]
    %v396 = vld [vmem:[%s1 + $0x128] sm:$0xff]
    %v397 = vld [vmem:[%s1 + $0x130] sm:$0xff]
    %v398 = vld [vmem:[%s1 + $0x138] sm:$0xff]
    %v399 = vld [vmem:[%s1 + $0x140] sm:$0xff]
    %v400 = vld [vmem:[%s1 + $0x148] sm:$0xff]
    %v401 = vld [vmem:[%s1 + $0x150] sm:$0xff]
    %v402 = vld [vmem:[%s1 + $0x158] sm:$0xff]
    %v403 = vld [vmem:[%s1 + $0x160] sm:$0xff]
    %v404 = vld [vmem:[%s1 + $0x168] sm:$0xff]
    %v405 = vld [vmem:[%s1 + $0x170] sm:$0xff]
    %v406 = vld [vmem:[%s1 + $0x178] sm:$0xff]
    %v407 = vld [vmem:[%s1 + $0x180] sm:$0xff]
    %v408 = vld [vmem:[%s1 + $0x188] sm:$0xff]
    %v409 = vld [vmem:[%s1 + $0x190] sm:$0xff]
    %v410 = vld [vmem:[%s1 + $0x198] sm:$0xff]
    %v411 = vld [vmem:[%s1 + $0x1a0] sm:$0xff]
    %v412 = vld [vmem:[%s1 + $0x1a8] sm:$0xff]
    %v413 = vld [vmem:[%s1 + $0x1b0] sm:$0xff]
    %v414 = vld [vmem:[%s1 + $0x1b8] sm:$0xff]
    %v415 = vld [vmem:[%s1 + $0x1c0] sm:$0xff]
    %v416 = vld [vmem:[%s1 + $0x1c8] sm:$0xff]
    %v417 = vld [vmem:[%s1 + $0x1d0] sm:$0xff]
    %v418 = vld [vmem:[%s1 + $0x1d8] sm:$0xff]
    %v419 = vld [vmem:[%s1 + $0x1e0] sm:$0xff]
    %v420 = vld [vmem:[%s1 + $0x1e8] sm:$0xff]
    %v421 = vld [vmem:[%s1 + $0x1f0] sm:$0xff]
    %v422 = vld [vmem:[%s1 + $0x1f8] sm:$0xff]
    %v423 = vld [vmem:[%s1 + $0x200] sm:$0xff]
    %v424 = vld [vmem:[%s1 + $0x208] sm:$0xff]
    %v425 = vld [vmem:[%s1 + $0x210] sm:$0xff]
    %v426 = vld [vmem:[%s1 + $0x218] sm:$0xff]
    %v427 = vld [vmem:[%s1 + $0x220] sm:$0xff]
    %v428 = vld [vmem:[%s1 + $0x228] sm:$0xff]
    %v429 = vld [vmem:[%s1 + $0x230] sm:$0xff]
    %v430 = vld [vmem:[%s1 + $0x238] sm:$0xff]
    %v431 = vld [vmem:[%s1 + $0x240] sm:$0xff]
    %v432 = vld [vmem:[%s1 + $0x248] sm:$0xff]
    %v433 = vld [vmem:[%s1 + $0x250] sm:$0xff]
    %v434 = vld [vmem:[%s1 + $0x258] sm:$0xff]
    %v435 = vld [vmem:[%s1 + $0x260] sm:$0xff]
    %v436 = vld [vmem:[%s1 + $0x268] sm:$0xff]
    %v437 = vld [vmem:[%s1 + $0x270] sm:$0xff]
    %v438 = vld [vmem:[%s1 + $0x278] sm:$0xff]
    %v439 = vld [vmem:[%s1 + $0x280] sm:$0xff]
    %v440 = vld [vmem:[%s1 + $0x288] sm:$0xff]
    %v441 = vld [vmem:[%s1 + $0x290] sm:$0xff]
    %v442 = vld [vmem:[%s1 + $0x298] sm:$0xff]
    %v443 = vld [vmem:[%s1 + $0x2a0] sm:$0xff]
    %v444 = vld [vmem:[%s1 + $0x2a8] sm:$0xff]
    %v445 = vld [vmem:[%s1 + $0x2b0] sm:$0xff]
    %v446 = vld [vmem:[%s1 + $0x2b8] sm:$0xff]
    %v447 = vld [vmem:[%s1 + $0x2c0] sm:$0xff]
    %v448 = vld [vmem:[%s1 + $0x2c8] sm:$0xff]
    %v449 = vld [vmem:[%s1 + $0x2d0] sm:$0xff]
    %v450 = vld [vmem:[%s1 + $0x2d8] sm:$0xff]
    %v451 = vld [vmem:[%s1 + $0x2e0] sm:$0xff]
    %v452 = vld [vmem:[%s1 + $0x2e8] sm:$0xff]
    %v453 = vld [vmem:[%s1 + $0x2f0] sm:$0xff]
    %v454 = vld [vmem:[%s1 + $0x2f8] sm:$0xff]
    %v455 = vld [vmem:[%s1 + $0x300] sm:$0xff]
    %v456 = vld [vmem:[%s1 + $0x308] sm:$0xff]
    %v457 = vld [vmem:[%s1 + $0x310] sm:$0xff]
    %v458 = vld [vmem:[%s1 + $0x318] sm:$0xff]
    %v459 = vld [vmem:[%s1 + $0x320] sm:$0xff]
    %v460 = vld [vmem:[%s1 + $0x328] sm:$0xff]
    %v461 = vld [vmem:[%s1 + $0x330] sm:$0xff]
    %v462 = vld [vmem:[%s1 + $0x338] sm:$0xff]
    %v463 = vld [vmem:[%s1 + $0x340] sm:$0xff]
    %v464 = vld [vmem:[%s1 + $0x348] sm:$0xff]
    %v465 = vld [vmem:[%s1 + $0x350] sm:$0xff]
    %v466 = vld [vmem:[%s1 + $0x358] sm:$0xff]
    %v467 = vld [vmem:[%s1 + $0x360] sm:$0xff]
    %v468 = vld [vmem:[%s1 + $0x368] sm:$0xff]
    %v469 = vld [vmem:[%s1 + $0x370] sm:$0xff]
    %v470 = vld [vmem:[%s1 + $0x378] sm:$0xff]
    %v471 = vld [vmem:[%s1 + $0x380] sm:$0xff]
    %v472 = vld [vmem:[%s1 + $0x388] sm:$0xff]
    %v473 = vld [vmem:[%s1 + $0x390] sm:$0xff]
    %v474 = vld [vmem:[%s1 + $0x398] sm:$0xff]
    %v475 = vld [vmem:[%s1 + $0x3a0] sm:$0xff]
    %v476 = vld [vmem:[%s1 + $0x3a8] sm:$0xff]
    %v477 = vld [vmem:[%s1 + $0x3b0] sm:$0xff]
    %v478 = vld [vmem:[%s1 + $0x3b8] sm:$0xff]
    %v479 = vld [vmem:[%s1 + $0x3c0] sm:$0xff]
    %v480 = vld [vmem:[%s1 + $0x3c8] sm:$0xff]
    %v481 = vld [vmem:[%s1 + $0x3d0] sm:$0xff]
    %v482 = vld [vmem:[%s1 + $0x3d8] sm:$0xff]
    %v483 = vld [vmem:[%s1 + $0x3e0] sm:$0xff]
    %v484 = vld [vmem:[%s1 + $0x3e8] sm:$0xff]
    %v485 = vld [vmem:[%s1 + $0x3f0] sm:$0xff]
    %v486 = vld [vmem:[%s1 + $0x3f8] sm:$0xff]
    %v487 = vld [vmem:[%s1 + $0x400] sm:$0xff]
    %v488 = vld [vmem:[%s1 + $0x408] sm:$0xff]
    %v489 = vld [vmem:[%s1 + $0x410] sm:$0xff]
    %v490 = vld [vmem:[%s1 + $0x418] sm:$0xff]
    %v491 = vld [vmem:[%s1 + $0x420] sm:$0xff]
    %v492 = vld [vmem:[%s1 + $0x428] sm:$0xff]
    %v493 = vld [vmem:[%s1 + $0x430] sm:$0xff]
    %v494 = vld [vmem:[%s1 + $0x438] sm:$0xff]
    %v495 = vld [vmem:[%s1 + $0x440] sm:$0xff]
    %v496 = vld [vmem:[%s1 + $0x448] sm:$0xff]
    %v497 = vld [vmem:[%s1 + $0x450] sm:$0xff]
    %v498 = vld [vmem:[%s1 + $0x458] sm:$0xff]
    %v499 = vld [vmem:[%s1 + $0x460] sm:$0xff]
    %v500 = vld [vmem:[%s1 + $0x468] sm:$0xff]
    %v501 = vld [vmem:[%s1 + $0x470] sm:$0xff]
    %v502 = vld [vmem:[%s1 + $0x478] sm:$0xff]
    %v503 = vld [vmem:[%s1 + $0x480] sm:$0xff]
    %v504 = vld [vmem:[%s1 + $0x488] sm:$0xff]
    %v505 = vld [vmem:[%s1 + $0x490] sm:$0xff]
    %v506 = vld [vmem:[%s1 + $0x498] sm:$0xff]
    %v507 = vld [vmem:[%s1 + $0x4a0] sm:$0xff]
    %v508 = vld [vmem:[%s1 + $0x4a8] sm:$0xff]
    %v509 = vld [vmem:[%s1 + $0x4b0] sm:$0xff]
    %v510 = vld [vmem:[%s1 + $0x4b8] sm:$0xff]
    %v511 = vld [vmem:[%s1 + $0x4c0] sm:$0xff]
    %v512 = vld [vmem:[%s1 + $0x4c8] sm:$0xff]
    %v513 = vld [vmem:[%s1 + $0x4d0] sm:$0xff]
    %v514 = vld [vmem:[%s1 + $0x4d8] sm:$0xff]
    %v515 = vld [vmem:[%s1 + $0x4e0] sm:$0xff]
    %v516 = vld [vmem:[%s1 + $0x4e8] sm:$0xff]
    %v517 = vld [vmem:[%s1 + $0x4f0] sm:$0xff]
    %v518 = vld [vmem:[%s1 + $0x4f8] sm:$0xff]
    %v519 = vld [vmem:[%s1 + $0x500] sm:$0xff]
    %v520 = vld [vmem:[%s1 + $0x508] sm:$0xff]
    %v521 = vld [vmem:[%s1 + $0x510] sm:$0xff]
    %v522 = vld [vmem:[%s1 + $0x518] sm:$0xff]
    %v523 = vld [vmem:[%s1 + $0x520] sm:$0xff]
    %v524 = vld [vmem:[%s1 + $0x528] sm:$0xff]
    %v525 = vld [vmem:[%s1 + $0x530] sm:$0xff]
    %v526 = vld [vmem:[%s1 + $0x538] sm:$0xff]
    %v527 = vld [vmem:[%s1 + $0x540] sm:$0xff]
    %v528 = vld [vmem:[%s1 + $0x548] sm:$0xff]
    %v529 = vld [vmem:[%s1 + $0x550] sm:$0xff]
    %v530 = vld [vmem:[%s1 + $0x558] sm:$0xff]
    %v531 = vld [vmem:[%s1 + $0x560] sm:$0xff]
    %v532 = vld [vmem:[%s1 + $0x568] sm:$0xff]
    %v533 = vld [vmem:[%s1 + $0x570] sm:$0xff]
    %v534 = vld [vmem:[%s1 + $0x578] sm:$0xff]
    %v535 = vld [vmem:[%s1 + $0x580] sm:$0xff]
    %v536 = vld [vmem:[%s1 + $0x588] sm:$0xff]
    %v537 = vld [vmem:[%s1 + $0x590] sm:$0xff]
    %v538 = vld [vmem:[%s1 + $0x598] sm:$0xff]
    %v539 = vld [vmem:[%s1 + $0x5a0] sm:$0xff]
    %v540 = vld [vmem:[%s1 + $0x5a8] sm:$0xff]
    %v541 = vld [vmem:[%s1 + $0x5b0] sm:$0xff]
    %v542 = vld [vmem:[%s1 + $0x5b8] sm:$0xff]
    %v543 = vld [vmem:[%s1 + $0x5c0] sm:$0xff]
    %v544 = vld [vmem:[%s1 + $0x5c8] sm:$0xff]
    %v545 = vld [vmem:[%s1 + $0x5d0] sm:$0xff]
    %v546 = vld [vmem:[%s1 + $0x5d8] sm:$0xff]
    %v547 = vld [vmem:[%s1 + $0x5e0] sm:$0xff]
    %v548 = vld [vmem:[%s1 + $0x5e8] sm:$0xff]
    %v549 = vld [vmem:[%s1 + $0x5f0] sm:$0xff]
    %v550 = vld [vmem:[%s1 + $0x5f8] sm:$0xff]
    %v551 = vld [vmem:[%s1 + $0x600] sm:$0xff]
    %v552 = vld [vmem:[%s1 + $0x608] sm:$0xff]
    %v553 = vld [vmem:[%s1 + $0x610] sm:$0xff]
    %v554 = vld [vmem:[%s1 + $0x618] sm:$0xff]
    %v555 = vld [vmem:[%s1 + $0x620] sm:$0xff]
    %v556 = vld [vmem:[%s1 + $0x628] sm:$0xff]
    %v557 = vld [vmem:[%s1 + $0x630] sm:$0xff]
    %v558 = vld [vmem:[%s1 + $0x638] sm:$0xff]
    %v559 = vld [vmem:[%s1 + $0x640] sm:$0xff]
    %v560 = vld [vmem:[%s1 + $0x648] sm:$0xff]
    %v561 = vld [vmem:[%s1 + $0x650] sm:$0xff]
    %v562 = vld [vmem:[%s1 + $0x658] sm:$0xff]
    %v563 = vld [vmem:[%s1 + $0x660] sm:$0xff]
    %v564 = vld [vmem:[%s1 + $0x668] sm:$0xff]
    %v565 = vld [vmem:[%s1 + $0x670] sm:$0xff]
    %v566 = vld [vmem:[%s1 + $0x678] sm:$0xff]
    %v567 = vld [vmem:[%s1 + $0x680] sm:$0xff]
    %v568 = vld [vmem:[%s1 + $0x688] sm:$0xff]
    %v569 = vld [vmem:[%s1 + $0x690] sm:$0xff]
    %v570 = vld [vmem:[%s1 + $0x698] sm:$0xff]
    %v571 = vld [vmem:[%s1 + $0x6a0] sm:$0xff]
    %v572 = vld [vmem:[%s1 + $0x6a8] sm:$0xff]
    %v573 = vld [vmem:[%s1 + $0x6b0] sm:$0xff]
    %v574 = vld [vmem:[%s1 + $0x6b8] sm:$0xff]
    %v575 = vld [vmem:[%s1 + $0x6c0] sm:$0xff]
    %v576 = vld [vmem:[%s1 + $0x6c8] sm:$0xff]
    %v577 = vld [vmem:[%s1 + $0x6d0] sm:$0xff]
    %v578 = vld [vmem:[%s1 + $0x6d8] sm:$0xff]
    %v579 = vld [vmem:[%s1 + $0x6e0] sm:$0xff]
    %v580 = vld [vmem:[%s1 + $0x6e8] sm:$0xff]
    %v581 = vld [vmem:[%s1 + $0x6f0] sm:$0xff]
    %v582 = vld [vmem:[%s1 + $0x6f8] sm:$0xff]
    %v583 = vld [vmem:[%s1 + $0x700] sm:$0xff]
    %v584 = vld [vmem:[%s1 + $0x708] sm:$0xff]
    %v585 = vld [vmem:[%s1 + $0x710] sm:$0xff]
    %v586 = vld [vmem:[%s1 + $0x718] sm:$0xff]
    %v587 = vld [vmem:[%s1 + $0x720] sm:$0xff]
    %v588 = vld [vmem:[%s1 + $0x728] sm:$0xff]
    %v589 = vld [vmem:[%s1 + $0x730] sm:$0xff]
    %v590 = vld [vmem:[%s1 + $0x738] sm:$0xff]
    %v591 = vld [vmem:[%s1 + $0x740] sm:$0xff]
    %v592 = vld [vmem:[%s1 + $0x748] sm:$0xff]
    %v593 = vld [vmem:[%s1 + $0x750] sm:$0xff]
    %v594 = vld [vmem:[%s1 + $0x758] sm:$0xff]
    %v595 = vld [vmem:[%s1 + $0x760] sm:$0xff]
    %v596 = vld [vmem:[%s1 + $0x768] sm:$0xff]
    %v597 = vld [vmem:[%s1 + $0x770] sm:$0xff]
    %v598 = vld [vmem:[%s1 + $0x778] sm:$0xff]
    %v599 = vld [vmem:[%s1 + $0x780] sm:$0xff]
    %v600 = vld [vmem:[%s1 + $0x788] sm:$0xff]
    %v601 = vld [vmem:[%s1 + $0x790] sm:$0xff]
    %v602 = vld [vmem:[%s1 + $0x798] sm:$0xff]
    %v603 = vld [vmem:[%s1 + $0x7a0] sm:$0xff]
    %v604 = vld [vmem:[%s1 + $0x7a8] sm:$0xff]
    %v605 = vld [vmem:[%s1 + $0x7b0] sm:$0xff]
    %v606 = vld [vmem:[%s1 + $0x7b8] sm:$0xff]
    %v607 = vld [vmem:[%s1 + $0x7c0] sm:$0xff]
    %v608 = vld [vmem:[%s1 + $0x7c8] sm:$0xff]
    %v609 = vld [vmem:[%s1 + $0x7d0] sm:$0xff]
    %v610 = vld [vmem:[%s1 + $0x7d8] sm:$0xff]
    %v611 = vld [vmem:[%s1 + $0x7e0] sm:$0xff]
    %v612 = vld [vmem:[%s1 + $0x7e8] sm:$0xff]
    %v613 = vld [vmem:[%s1 + $0x7f0] sm:$0xff]
    %v614 = vld [vmem:[%s1 + $0x7f8] sm:$0xff]
    %v615 = vld [vmem:[%s1 + $0x800] sm:$0xff]
    %v616 = vld [vmem:[%s1 + $0x808] sm:$0xff]
    %v617 = vld [vmem:[%s1 + $0x810] sm:$0xff]
    %v618 = vld [vmem:[%s1 + $0x818] sm:$0xff]
    %v619 = vld [vmem:[%s1 + $0x820] sm:$0xff]
    %v620 = vld [vmem:[%s1 + $0x828] sm:$0xff]
    %v621 = vld [vmem:[%s1 + $0x830] sm:$0xff]
    %v622 = vld [vmem:[%s1 + $0x838] sm:$0xff]
    %v623 = vld [vmem:[%s1 + $0x840] sm:$0xff]
    %v624 = vld [vmem:[%s1 + $0x848] sm:$0xff]
    %v625 = vld [vmem:[%s1 + $0x850] sm:$0xff]
    %v626 = vld [vmem:[%s1 + $0x858] sm:$0xff]
    %v627 = vld [vmem:[%s1 + $0x860] sm:$0xff]
    %v628 = vld [vmem:[%s1 + $0x868] sm:$0xff]
    %v629 = vld [vmem:[%s1 + $0x870] sm:$0xff]
    %v630 = vld [vmem:[%s1 + $0x878] sm:$0xff]
    %v631 = vld [vmem:[%s1 + $0x880] sm:$0xff]
    %v632 = vld [vmem:[%s1 + $0x888] sm:$0xff]
    %v633 = vld [vmem:[%s1 + $0x890] sm:$0xff]
    %v634 = vld [vmem:[%s1 + $0x898] sm:$0xff]
    %v635 = vld [vmem:[%s1 + $0x8a0] sm:$0xff]
    %v636 = vld [vmem:[%s1 + $0x8a8] sm:$0xff]
    %v637 = vld [vmem:[%s1 + $0x8b0] sm:$0xff]
    %v638 = vld [vmem:[%s1 + $0x8b8] sm:$0xff]
    %v639 = vld [vmem:[%s1 + $0x8c0] sm:$0xff]
    %v640 = vld [vmem:[%s1 + $0x8c8] sm:$0xff]
    %v641 = vld [vmem:[%s1 + $0x8d0] sm:$0xff]
    %v642 = vld [vmem:[%s1 + $0x8d8] sm:$0xff]
    %v643 = vld [vmem:[%s1 + $0x8e0] sm:$0xff]
    %v644 = vld [vmem:[%s1 + $0x8e8] sm:$0xff]
    %v645 = vld [vmem:[%s1 + $0x8f0] sm:$0xff]
    %v646 = vld [vmem:[%s1 + $0x8f8] sm:$0xff]
    %v647 = vld [vmem:[%s1 + $0x900] sm:$0xff]
    %v648 = vld [vmem:[%s1 + $0x908] sm:$0xff]
    %v649 = vld [vmem:[%s1 + $0x910] sm:$0xff]
    %v650 = vld [vmem:[%s1 + $0x918] sm:$0xff]
    %v651 = vld [vmem:[%s1 + $0x920] sm:$0xff]
    %v652 = vld [vmem:[%s1 + $0x928] sm:$0xff]
    %v653 = vld [vmem:[%s1 + $0x930] sm:$0xff]
    %v654 = vld [vmem:[%s1 + $0x938] sm:$0xff]
    %v655 = vld [vmem:[%s1 + $0x940] sm:$0xff]
    %v656 = vld [vmem:[%s1 + $0x948] sm:$0xff]
    %v657 = vld [vmem:[%s1 + $0x950] sm:$0xff]
    %v658 = vld [vmem:[%s1 + $0x958] sm:$0xff]
    %v659 = vld [vmem:[%s1 + $0x960] sm:$0xff]
    %v660 = vld [vmem:[%s1 + $0x968] sm:$0xff]
    %v661 = vld [vmem:[%s1 + $0x970] sm:$0xff]
    %v662 = vld [vmem:[%s1 + $0x978] sm:$0xff]
    %v663 = vld [vmem:[%s1 + $0x980] sm:$0xff]
    %v664 = vld [vmem:[%s1 + $0x988] sm:$0xff]
    %v665 = vld [vmem:[%s1 + $0x990] sm:$0xff]
    %v666 = vld [vmem:[%s1 + $0x998] sm:$0xff]
    %v667 = vld [vmem:[%s1 + $0x9a0] sm:$0xff]
    %v668 = vld [vmem:[%s1 + $0x9a8] sm:$0xff]
    %v669 = vld [vmem:[%s1 + $0x9b0] sm:$0xff]
    %v670 = vld [vmem:[%s1 + $0x9b8] sm:$0xff]
    %v671 = vld [vmem:[%s1 + $0x9c0] sm:$0xff]
    %v672 = vld [vmem:[%s1 + $0x9c8] sm:$0xff]
    %v673 = vld [vmem:[%s1 + $0x9d0] sm:$0xff]
    %v674 = vld [vmem:[%s1 + $0x9d8] sm:$0xff]
    %v675 = vld [vmem:[%s1 + $0x9e0] sm:$0xff]
    %v676 = vld [vmem:[%s1 + $0x9e8] sm:$0xff]
    %v677 = vld [vmem:[%s1 + $0x9f0] sm:$0xff]
    %v678 = vld [vmem:[%s1 + $0x9f8] sm:$0xff]
    %v679 = vld [vmem:[%s1 + $0xa00] sm:$0xff]
    %v680 = vld [vmem:[%s1 + $0xa08] sm:$0xff]
    %v681 = vld [vmem:[%s1 + $0xa10] sm:$0xff]
    %v682 = vld [vmem:[%s1 + $0xa18] sm:$0xff]
    %v683 = vld [vmem:[%s1 + $0xa20] sm:$0xff]
    %v684 = vld [vmem:[%s1 + $0xa28] sm:$0xff]
    %v685 = vld [vmem:[%s1 + $0xa30] sm:$0xff]
    %v686 = vld [vmem:[%s1 + $0xa38] sm:$0xff]
    %v687 = vld [vmem:[%s1 + $0xa40] sm:$0xff]
    %v688 = vld [vmem:[%s1 + $0xa48] sm:$0xff]
    %v689 = vld [vmem:[%s1 + $0xa50] sm:$0xff]
    %v690 = vld [vmem:[%s1 + $0xa58] sm:$0xff]
    %v691 = vld [vmem:[%s1 + $0xa60] sm:$0xff]
    %v692 = vld [vmem:[%s1 + $0xa68] sm:$0xff]
    %v693 = vld [vmem:[%s1 + $0xa70] sm:$0xff]
    %v694 = vld [vmem:[%s1 + $0xa78] sm:$0xff]
    %v695 = vld [vmem:[%s1 + $0xa80] sm:$0xff]
    %v696 = vld [vmem:[%s1 + $0xa88] sm:$0xff]
    %v697 = vld [vmem:[%s1 + $0xa90] sm:$0xff]
    %v698 = vld [vmem:[%s1 + $0xa98] sm:$0xff]
    %v699 = vld [vmem:[%s1 + $0xaa0] sm:$0xff]
    %v700 = vld [vmem:[%s1 + $0xaa8] sm:$0xff]
    %v701 = vld [vmem:[%s1 + $0xab0] sm:$0xff]
    %v702 = vld [vmem:[%s1 + $0xab8] sm:$0xff]
    %v703 = vld [vmem:[%s1 + $0xac0] sm:$0xff]
    %v704 = vld [vmem:[%s1 + $0xac8] sm:$0xff]
    %v705 = vld [vmem:[%s1 + $0xad0] sm:$0xff]
    %v706 = vld [vmem:[%s1 + $0xad8] sm:$0xff]
    %v707 = vld [vmem:[%s1 + $0xae0] sm:$0xff]
    %v708 = vld [vmem:[%s1 + $0xae8] sm:$0xff]
    %v709 = vld [vmem:[%s1 + $0xaf0] sm:$0xff]
    %v710 = vld [vmem:[%s1 + $0xaf8] sm:$0xff]
    %v711 = vld [vmem:[%s1 + $0xb00] sm:$0xff]
    %v712 = vld [vmem:[%s1 + $0xb08] sm:$0xff]
    %v713 = vld [vmem:[%s1 + $0xb10] sm:$0xff]
    %v714 = vld [vmem:[%s1 + $0xb18] sm:$0xff]
    %v715 = vld [vmem:[%s1 + $0xb20] sm:$0xff]
    %v716 = vld [vmem:[%s1 + $0xb28] sm:$0xff]
    %v717 = vld [vmem:[%s1 + $0xb30] sm:$0xff]
    %v718 = vld [vmem:[%s1 + $0xb38] sm:$0xff]
    %v719 = vld [vmem:[%s1 + $0xb40] sm:$0xff]
    %v720 = vld [vmem:[%s1 + $0xb48] sm:$0xff]
    %v721 = vld [vmem:[%s1 + $0xb50] sm:$0xff]
    %v722 = vld [vmem:[%s1 + $0xb58] sm:$0xff]
    %v723 = vld [vmem:[%s1 + $0xb60] sm:$0xff]
    %v724 = vld [vmem:[%s1 + $0xb68] sm:$0xff]
    %v725 = vld [vmem:[%s1 + $0xb70] sm:$0xff]
    %v726 = vld [vmem:[%s1 + $0xb78] sm:$0xff]
    %v727 = vld [vmem:[%s1 + $0xb80] sm:$0xff]
    %v728 = vld [vmem:[%s1 + $0xb88] sm:$0xff]
    %v729 = vld [vmem:[%s1 + $0xb90] sm:$0xff]
    %v730 = vld [vmem:[%s1 + $0xb98] sm:$0xff]
    %v731 = vld [vmem:[%s1 + $0xba0] sm:$0xff]
    %v732 = vld [vmem:[%s1 + $0xba8] sm:$0xff]
    %v733 = vld [vmem:[%s1 + $0xbb0] sm:$0xff]
    %v734 = vld [vmem:[%s1 + $0xbb8] sm:$0xff]
    %v735 = vld [vmem:[%s1 + $0xbc0] sm:$0xff]
    %v736 = vld [vmem:[%s1 + $0xbc8] sm:$0xff]
    %v737 = vld [vmem:[%s1 + $0xbd0] sm:$0xff]
    %v738 = vld [vmem:[%s1 + $0xbd8] sm:$0xff]
    %v739 = vld [vmem:[%s1 + $0xbe0] sm:$0xff]
    %v740 = vld [vmem:[%s1 + $0xbe8] sm:$0xff]
    %v741 = vld [vmem:[%s1 + $0xbf0] sm:$0xff]
    %v742 = vld [vmem:[%s1 + $0xbf8] sm:$0xff]
    %v743 = vld [vmem:[%s1 + $0xc00] sm:$0xff]
    %v744 = vld [vmem:[%s1 + $0xc08] sm:$0xff]
    %v745 = vld [vmem:[%s1 + $0xc10] sm:$0xff]
    %v746 = vld [vmem:[%s1 + $0xc18] sm:$0xff]
    %v747 = vld [vmem:[%s1 + $0xc20] sm:$0xff]
    %v748 = vld [vmem:[%s1 + $0xc28] sm:$0xff]
    %v749 = vld [vmem:[%s1 + $0xc30] sm:$0xff]
    %v750 = vld [vmem:[%s1 + $0xc38] sm:$0xff]
    %v751 = vld [vmem:[%s1 + $0xc40] sm:$0xff]
    %v752 = vld [vmem:[%s1 + $0xc48] sm:$0xff]
    %v753 = vld [vmem:[%s1 + $0xc50] sm:$0xff]
    %v754 = vld [vmem:[%s1 + $0xc58] sm:$0xff]
    %v755 = vld [vmem:[%s1 + $0xc60] sm:$0xff]
    %v756 = vld [vmem:[%s1 + $0xc68] sm:$0xff]
    %v757 = vld [vmem:[%s1 + $0xc70] sm:$0xff]
    %v758 = vld [vmem:[%s1 + $0xc78] sm:$0xff]
    %v759 = vld [vmem:[%s1 + $0xc80] sm:$0xff]
    %v760 = vld [vmem:[%s1 + $0xc88] sm:$0xff]
    %v761 = vld [vmem:[%s1 + $0xc90] sm:$0xff]
    %v762 = vld [vmem:[%s1 + $0xc98] sm:$0xff]
    %v763 = vld [vmem:[%s1 + $0xca0] sm:$0xff]
    %v764 = vld [vmem:[%s1 + $0xca8] sm:$0xff]
    %v765 = vld [vmem:[%s1 + $0xcb0] sm:$0xff]
    %v766 = vld [vmem:[%s1 + $0xcb8] sm:$0xff]
    %v767 = vld [vmem:[%s1 + $0xcc0] sm:$0xff]
    %v768 = vld [vmem:[%s1 + $0xcc8] sm:$0xff]
    %v769 = vld [vmem:[%s1 + $0xcd0] sm:$0xff]
    %v770 = vld [vmem:[%s1 + $0xcd8] sm:$0xff]
    %v771 = vld [vmem:[%s1 + $0xce0] sm:$0xff]
    %v772 = vld [vmem:[%s1 + $0xce8] sm:$0xff]
    %v773 = vld [vmem:[%s1 + $0xcf0] sm:$0xff]
    %v774 = vld [vmem:[%s1 + $0xcf8] sm:$0xff]
    %v775 = vld [vmem:[%s1 + $0xd00] sm:$0xff]
    %v776 = vld [vmem:[%s1 + $0xd08] sm:$0xff]
    %v777 = vld [vmem:[%s1 + $0xd10] sm:$0xff]
    %v778 = vld [vmem:[%s1 + $0xd18] sm:$0xff]
    %v779 = vld [vmem:[%s1 + $0xd20] sm:$0xff]
    %v780 = vld [vmem:[%s1 + $0xd28] sm:$0xff]
    %v781 = vld [vmem:[%s1 + $0xd30] sm:$0xff]
    %v782 = vld [vmem:[%s1 + $0xd38] sm:$0xff]
    %v783 = vld [vmem:[%s1 + $0xd40] sm:$0xff]
    %v784 = vld [vmem:[%s1 + $0xd48] sm:$0xff]
    %v785 = vld [vmem:[%s1 + $0xd50] sm:$0xff]
    %v786 = vld [vmem:[%s1 + $0xd58] sm:$0xff]
    %v787 = vld [vmem:[%s1 + $0xd60] sm:$0xff]
    %v788 = vld [vmem:[%s1 + $0xd68] sm:$0xff]
    %v789 = vld [vmem:[%s1 + $0xd70] sm:$0xff]
    %v790 = vld [vmem:[%s1 + $0xd78] sm:$0xff]
    %v791 = vld [vmem:[%s1 + $0xd80] sm:$0xff]
    %v792 = vld [vmem:[%s1 + $0xd88] sm:$0xff]
    %v793 = vld [vmem:[%s1 + $0xd90] sm:$0xff]
    %v794 = vld [vmem:[%s1 + $0xd98] sm:$0xff]
    %v795 = vld [vmem:[%s1 + $0xda0] sm:$0xff]
    %v796 = vld [vmem:[%s1 + $0xda8] sm:$0xff]
    %v797 = vld [vmem:[%s1 + $0xdb0] sm:$0xff]
    %v798 = vld [vmem:[%s1 + $0xdb8] sm:$0xff]
    %v799 = vld [vmem:[%s1 + $0xdc0] sm:$0xff]
    %v800 = vld [vmem:[%s1 + $0xdc8] sm:$0xff]
    %v801 = vld [vmem:[%s1 + $0xdd0] sm:$0xff]
    %v802 = vld [vmem:[%s1 + $0xdd8] sm:$0xff]
    %v803 = vld [vmem:[%s1 + $0xde0] sm:$0xff]
    %v804 = vld [vmem:[%s1 + $0xde8] sm:$0xff]
    %v805 = vld [vmem:[%s1 + $0xdf0] sm:$0xff]
    %v806 = vld [vmem:[%s1 + $0xdf8] sm:$0xff]
    %v807 = vld [vmem:[%s1 + $0xe00] sm:$0xff]
    %v808 = vld [vmem:[%s1 + $0xe08] sm:$0xff]
    %v809 = vld [vmem:[%s1 + $0xe10] sm:$0xff]
    %v810 = vld [vmem:[%s1 + $0xe18] sm:$0xff]
    %v811 = vld [vmem:[%s1 + $0xe20] sm:$0xff]
    %v812 = vld [vmem:[%s1 + $0xe28] sm:$0xff]
    %v813 = vld [vmem:[%s1 + $0xe30] sm:$0xff]
    %v814 = vld [vmem:[%s1 + $0xe38] sm:$0xff]
    %v815 = vld [vmem:[%s1 + $0xe40] sm:$0xff]
    %v816 = vld [vmem:[%s1 + $0xe48] sm:$0xff]
    %v817 = vld [vmem:[%s1 + $0xe50] sm:$0xff]
    %v818 = vld [vmem:[%s1 + $0xe58] sm:$0xff]
    %v819 = vld [vmem:[%s1 + $0xe60] sm:$0xff]
    %v820 = vld [vmem:[%s1 + $0xe68] sm:$0xff]
    %v821 = vld [vmem:[%s1 + $0xe70] sm:$0xff]
    %v822 = vld [vmem:[%s1 + $0xe78] sm:$0xff]
    %v823 = vld [vmem:[%s1 + $0xe80] sm:$0xff]
    %v824 = vld [vmem:[%s1 + $0xe88] sm:$0xff]
    %v825 = vld [vmem:[%s1 + $0xe90] sm:$0xff]
    %v826 = vld [vmem:[%s1 + $0xe98] sm:$0xff]
    %v827 = vld [vmem:[%s1 + $0xea0] sm:$0xff]
    %v828 = vld [vmem:[%s1 + $0xea8] sm:$0xff]
    %v829 = vld [vmem:[%s1 + $0xeb0] sm:$0xff]
    %v830 = vld [vmem:[%s1 + $0xeb8] sm:$0xff]
    %v831 = vld [vmem:[%s1 + $0xec0] sm:$0xff]
    %v832 = vld [vmem:[%s1 + $0xec8] sm:$0xff]
    %v833 = vld [vmem:[%s1 + $0xed0] sm:$0xff]
    %v834 = vld [vmem:[%s1 + $0xed8] sm:$0xff]
    %v835 = vld [vmem:[%s1 + $0xee0] sm:$0xff]
    %v836 = vld [vmem:[%s1 + $0xee8] sm:$0xff]
    %v837 = vld [vmem:[%s1 + $0xef0] sm:$0xff]
    %v838 = vld [vmem:[%s1 + $0xef8] sm:$0xff]
    %v839 = vld [vmem:[%s1 + $0xf00] sm:$0xff]
    %v840 = vld [vmem:[%s1 + $0xf08] sm:$0xff]
    %v841 = vld [vmem:[%s1 + $0xf10] sm:$0xff]
    %v842 = vld [vmem:[%s1 + $0xf18] sm:$0xff]
    %v843 = vld [vmem:[%s1 + $0xf20] sm:$0xff]
    %v844 = vld [vmem:[%s1 + $0xf28] sm:$0xff]
    %v845 = vld [vmem:[%s1 + $0xf30] sm:$0xff]
    %v846 = vld [vmem:[%s1 + $0xf38] sm:$0xff]
    %v847 = vld [vmem:[%s1 + $0xf40] sm:$0xff]
    %v848 = vld [vmem:[%s1 + $0xf48] sm:$0xff]
    %v849 = vld [vmem:[%s1 + $0xf50] sm:$0xff]
    %v850 = vld [vmem:[%s1 + $0xf58] sm:$0xff]
    %v851 = vld [vmem:[%s1 + $0xf60] sm:$0xff]
    %v852 = vld [vmem:[%s1 + $0xf68] sm:$0xff]
    %v853 = vld [vmem:[%s1 + $0xf70] sm:$0xff]
    %v854 = vld [vmem:[%s1 + $0xf78] sm:$0xff]
    %v855 = vld [vmem:[%s1 + $0xf80] sm:$0xff]
    %v856 = vld [vmem:[%s1 + $0xf88] sm:$0xff]
    %v857 = vld [vmem:[%s1 + $0xf90] sm:$0xff]
    %v858 = vld [vmem:[%s1 + $0xf98] sm:$0xff]
    %v859 = vld [vmem:[%s1 + $0xfa0] sm:$0xff]
    %v860 = vld [vmem:[%s1 + $0xfa8] sm:$0xff]
    %v861 = vld [vmem:[%s1 + $0xfb0] sm:$0xff]
    %v862 = vld [vmem:[%s1 + $0xfb8] sm:$0xff]
    %v863 = vld [vmem:[%s1 + $0xfc0] sm:$0xff]
    %v864 = vld [vmem:[%s1 + $0xfc8] sm:$0xff]
    %v865 = vld [vmem:[%s1 + $0xfd0] sm:$0xff]
    %v866 = vld [vmem:[%s1 + $0xfd8] sm:$0xff]
    %v867 = vld [vmem:[%s1 + $0xfe0] sm:$0xff]
    %v868 = vld [vmem:[%s1 + $0xfe8] sm:$0xff]
    %v869 = vld [vmem:[%s1 + $0xff0] sm:$0xff]
    %v870 = vld [vmem:[%s1 + $0xff8] sm:$0xff]
    %v871 = vld [vmem:[%s1 + $0x1000] sm:$0xff]
    %v872 = vld [vmem:[%s1 + $0x1008] sm:$0xff]
    %v873 = vld [vmem:[%s1 + $0x1010] sm:$0xff]
    %v874 = vld [vmem:[%s1 + $0x1018] sm:$0xff]
    %v875 = vld [vmem:[%s1 + $0x1020] sm:$0xff]
    %v876 = vld [vmem:[%s1 + $0x1028] sm:$0xff]
    %v877 = vld [vmem:[%s1 + $0x1030] sm:$0xff]
    %v878 = vld [vmem:[%s1 + $0x1038] sm:$0xff]
    %v879 = vld [vmem:[%s1 + $0x1040] sm:$0xff]
    %v880 = vld [vmem:[%s1 + $0x1048] sm:$0xff]
    %v881 = vld [vmem:[%s1 + $0x1050] sm:$0xff]
    %v882 = vld [vmem:[%s1 + $0x1058] sm:$0xff]
    %v883 = vld [vmem:[%s1 + $0x1060] sm:$0xff]
    %v884 = vld [vmem:[%s1 + $0x1068] sm:$0xff]
    %v885 = vld [vmem:[%s1 + $0x1070] sm:$0xff]
    %v886 = vld [vmem:[%s1 + $0x1078] sm:$0xff]
    %v887 = vld [vmem:[%s1 + $0x1080] sm:$0xff]
    %v888 = vld [vmem:[%s1 + $0x1088] sm:$0xff]
    %v889 = vld [vmem:[%s1 + $0x1090] sm:$0xff]
    %v890 = vld [vmem:[%s1 + $0x1098] sm:$0xff]
    %v891 = vld [vmem:[%s1 + $0x10a0] sm:$0xff]
    %v892 = vld [vmem:[%s1 + $0x10a8] sm:$0xff]
    %v893 = vld [vmem:[%s1 + $0x10b0] sm:$0xff]
    %v894 = vld [vmem:[%s1 + $0x10b8] sm:$0xff]
    %v895 = vld [vmem:[%s1 + $0x10c0] sm:$0xff]
    %v896 = vld [vmem:[%s1 + $0x10c8] sm:$0xff]
    %v897 = vld [vmem:[%s1 + $0x10d0] sm:$0xff]
    %v898 = vld [vmem:[%s1 + $0x10d8] sm:$0xff]
    %v899 = vld [vmem:[%s1 + $0x10e0] sm:$0xff]
    %v900 = vld [vmem:[%s1 + $0x10e8] sm:$0xff]
    %v901 = vld [vmem:[%s1 + $0x10f0] sm:$0xff]
    %v902 = vld [vmem:[%s1 + $0x10f8] sm:$0xff]
    %v903 = vld [vmem:[%s1 + $0x1100] sm:$0xff]
    %v904 = vld [vmem:[%s1 + $0x1108] sm:$0xff]
    %v905 = vld [vmem:[%s1 + $0x1110] sm:$0xff]
    %v906 = vld [vmem:[%s1 + $0x1118] sm:$0xff]
    %v907 = vld [vmem:[%s1 + $0x1120] sm:$0xff]
    %v908 = vld [vmem:[%s1 + $0x1128] sm:$0xff]
    %v909 = vld [vmem:[%s1 + $0x1130] sm:$0xff]
    %v910 = vld [vmem:[%s1 + $0x1138] sm:$0xff]
    %v911 = vld [vmem:[%s1 + $0x1140] sm:$0xff]
    %v912 = vld [vmem:[%s1 + $0x1148] sm:$0xff]
    %v913 = vld [vmem:[%s1 + $0x1150] sm:$0xff]
    %v914 = vld [vmem:[%s1 + $0x1158] sm:$0xff]
    %v915 = vld [vmem:[%s1 + $0x1160] sm:$0xff]
    %v916 = vld [vmem:[%s1 + $0x1168] sm:$0xff]
    %v917 = vld [vmem:[%s1 + $0x1170] sm:$0xff]
    %v918 = vld [vmem:[%s1 + $0x1178] sm:$0xff]
    %v919 = vld [vmem:[%s1 + $0x1180] sm:$0xff]
    %v920 = vld [vmem:[%s1 + $0x1188] sm:$0xff]
    %v921 = vld [vmem:[%s1 + $0x1190] sm:$0xff]
    %v922 = vld [vmem:[%s1 + $0x1198] sm:$0xff]
    %v923 = vld [vmem:[%s1 + $0x11a0] sm:$0xff]
    %v924 = vld [vmem:[%s1 + $0x11a8] sm:$0xff]
    %v925 = vld [vmem:[%s1 + $0x11b0] sm:$0xff]
    %v926 = vld [vmem:[%s1 + $0x11b8] sm:$0xff]
    %v927 = vld [vmem:[%s1 + $0x11c0] sm:$0xff]
    %v928 = vld [vmem:[%s1 + $0x11c8] sm:$0xff]
    %v929 = vld [vmem:[%s1 + $0x11d0] sm:$0xff]
    %v930 = vld [vmem:[%s1 + $0x11d8] sm:$0xff]
    %v931 = vld [vmem:[%s1 + $0x11e0] sm:$0xff]
    %v932 = vld [vmem:[%s1 + $0x11e8] sm:$0xff]
    %v933 = vld [vmem:[%s1 + $0x11f0] sm:$0xff]
    %v934 = vld [vmem:[%s1 + $0x11f8] sm:$0xff]
    %v935 = vld [vmem:[%s1 + $0x1200] sm:$0xff]
    %v936 = vld [vmem:[%s1 + $0x1208] sm:$0xff]
    %v937 = vld [vmem:[%s1 + $0x1210] sm:$0xff]
    %v938 = vld [vmem:[%s1 + $0x1218] sm:$0xff]
    %v939 = vld [vmem:[%s1 + $0x1220] sm:$0xff]
    %v940 = vld [vmem:[%s1 + $0x1228] sm:$0xff]
    %v941 = vld [vmem:[%s1 + $0x1230] sm:$0xff]
    %v942 = vld [vmem:[%s1 + $0x1238] sm:$0xff]
    %v943 = vld [vmem:[%s1 + $0x1240] sm:$0xff]
    %v944 = vld [vmem:[%s1 + $0x1248] sm:$0xff]
    %v945 = vld [vmem:[%s1 + $0x1250] sm:$0xff]
    %v946 = vld [vmem:[%s1 + $0x1258] sm:$0xff]
    %v947 = vld [vmem:[%s1 + $0x1260] sm:$0xff]
    %v948 = vld [vmem:[%s1 + $0x1268] sm:$0xff]
    %v949 = vld [vmem:[%s1 + $0x1270] sm:$0xff]
    %v950 = vld [vmem:[%s1 + $0x1278] sm:$0xff]
    %v951 = vld [vmem:[%s1 + $0x1280] sm:$0xff]
    %v952 = vld [vmem:[%s1 + $0x1288] sm:$0xff]
    %v953 = vld [vmem:[%s1 + $0x1290] sm:$0xff]
    %v954 = vld [vmem:[%s1 + $0x1298] sm:$0xff]
    %v955 = vld [vmem:[%s1 + $0x12a0] sm:$0xff]
    %v956 = vld [vmem:[%s1 + $0x12a8] sm:$0xff]
    %v957 = vld [vmem:[%s1 + $0x12b0] sm:$0xff]
    %v958 = vld [vmem:[%s1 + $0x12b8] sm:$0xff]
    %v959 = vld [vmem:[%s1 + $0x12c0] sm:$0xff]
    %v960 = vld [vmem:[%s1 + $0x12c8] sm:$0xff]
    %v961 = vld [vmem:[%s1 + $0x12d0] sm:$0xff]
    %v962 = vld [vmem:[%s1 + $0x12d8] sm:$0xff]
    %v963 = vld [vmem:[%s1 + $0x12e0] sm:$0xff]
    %v964 = vld [vmem:[%s1 + $0x12e8] sm:$0xff]
    %v965 = vld [vmem:[%s1 + $0x12f0] sm:$0xff]
    %v966 = vld [vmem:[%s1 + $0x12f8] sm:$0xff]
    %v967 = vld [vmem:[%s1 + $0x1300] sm:$0xff]
    %v968 = vld [vmem:[%s1 + $0x1308] sm:$0xff]
    %v969 = vld [vmem:[%s1 + $0x1310] sm:$0xff]
    %v970 = vld [vmem:[%s1 + $0x1318] sm:$0xff]
    %v971 = vld [vmem:[%s1 + $0x1320] sm:$0xff]
    %v972 = vld [vmem:[%s1 + $0x1328] sm:$0xff]
    %v973 = vld [vmem:[%s1 + $0x1330] sm:$0xff]
    %v974 = vld [vmem:[%s1 + $0x1338] sm:$0xff]
    %v975 = vld [vmem:[%s1 + $0x1340] sm:$0xff]
    %v976 = vld [vmem:[%s1 + $0x1348] sm:$0xff]
    %v977 = vld [vmem:[%s1 + $0x1350] sm:$0xff]
    %v978 = vld [vmem:[%s1 + $0x1358] sm:$0xff]
    %v979 = vld [vmem:[%s1 + $0x1360] sm:$0xff]
    %v980 = vld [vmem:[%s1 + $0x1368] sm:$0xff]
    %v981 = vld [vmem:[%s1 + $0x1370] sm:$0xff]
    %v982 = vld [vmem:[%s1 + $0x1378] sm:$0xff]
    %v983 = vld [vmem:[%s1 + $0x1380] sm:$0xff]
    %v984 = vld [vmem:[%s1 + $0x1388] sm:$0xff]
    %v985 = vld [vmem:[%s1 + $0x1390] sm:$0xff]
    %v986 = vld [vmem:[%s1 + $0x1398] sm:$0xff]
    %v987 = vld [vmem:[%s1 + $0x13a0] sm:$0xff]
    %v988 = vld [vmem:[%s1 + $0x13a8] sm:$0xff]
    %v989 = vld [vmem:[%s1 + $0x13b0] sm:$0xff]
    %v990 = vld [vmem:[%s1 + $0x13b8] sm:$0xff]
    %v991 = vld [vmem:[%s1 + $0x13c0] sm:$0xff]
    %v992 = vld [vmem:[%s1 + $0x13c8] sm:$0xff]
    %v993 = vld [vmem:[%s1 + $0x13d0] sm:$0xff]
    %v994 = vld [vmem:[%s1 + $0x13d8] sm:$0xff]
    %v995 = vld [vmem:[%s1 + $0x13e0] sm:$0xff]
    %v996 = vld [vmem:[%s1 + $0x13e8] sm:$0xff]
    %v997 = vld [vmem:[%s1 + $0x13f0] sm:$0xff]
    %v998 = vld [vmem:[%s1 + $0x13f8] sm:$0xff]
    %v999 = vld [vmem:[%s1 + $0x1400] sm:$0xff]
    %v1000 = vld [vmem:[%s1 + $0x1408] sm:$0xff]
    %v1001 = vld [vmem:[%s1 + $0x1410] sm:$0xff]
    %v1002 = vld [vmem:[%s1 + $0x1418] sm:$0xff]
    %v1003 = vld [vmem:[%s1 + $0x1420] sm:$0xff]
    %v1004 = vld [vmem:[%s1 + $0x1428] sm:$0xff]
    %v1005 = vld [vmem:[%s1 + $0x1430] sm:$0xff]
    %v1006 = vld [vmem:[%s1 + $0x1438] sm:$0xff]
    %v1007 = vld [vmem:[%s1 + $0x1440] sm:$0xff]
    %v1008 = vld [vmem:[%s1 + $0x1448] sm:$0xff]
    %v1009 = vld [vmem:[%s1 + $0x1450] sm:$0xff]
    %v1010 = vld [vmem:[%s1 + $0x1458] sm:$0xff]
    %v1011 = vld [vmem:[%s1 + $0x1460] sm:$0xff]
    %v1012 = vld [vmem:[%s1 + $0x1468] sm:$0xff]
    %v1013 = vld [vmem:[%s1 + $0x1470] sm:$0xff]
    %v1014 = vld [vmem:[%s1 + $0x1478] sm:$0xff]
    %v1015 = vld [vmem:[%s1 + $0x1480] sm:$0xff]
    %v1016 = vld [vmem:[%s1 + $0x1488] sm:$0xff]
    %v1017 = vld [vmem:[%s1 + $0x1490] sm:$0xff]
    %v1018 = vld [vmem:[%s1 + $0x1498] sm:$0xff]
    %v1019 = vld [vmem:[%s1 + $0x14a0] sm:$0xff]
    %v1020 = vld [vmem:[%s1 + $0x14a8] sm:$0xff]
    %v1021 = vld [vmem:[%s1 + $0x14b0] sm:$0xff]
    %v1022 = vld [vmem:[%s1 + $0x14b8] sm:$0xff]
    %v1023 = vld [vmem:[%s1 + $0x14c0] sm:$0xff]
    %v1024 = vld [vmem:[%s1 + $0x14c8] sm:$0xff]
    %v1025 = vld [vmem:[%s1 + $0x14d0] sm:$0xff]
    %v1026 = vld [vmem:[%s1 + $0x14d8] sm:$0xff]
    %v1027 = vld [vmem:[%s1 + $0x14e0] sm:$0xff]
    %v1028 = vld [vmem:[%s1 + $0x14e8] sm:$0xff]
    %v1029 = vld [vmem:[%s1 + $0x14f0] sm:$0xff]
    %v1030 = vld [vmem:[%s1 + $0x14f8] sm:$0xff]
    %v1031 = vld [vmem:[%s1 + $0x1500] sm:$0xff]
    %v1032 = vld [vmem:[%s1 + $0x1508] sm:$0xff]
    %v1033 = vld [vmem:[%s1 + $0x1510] sm:$0xff]
    %v1034 = vld [vmem:[%s1 + $0x1518] sm:$0xff]
    %v1035 = vld [vmem:[%s1 + $0x1520] sm:$0xff]
    %v1036 = vld [vmem:[%s1 + $0x1528] sm:$0xff]
    %v1037 = vld [vmem:[%s1 + $0x1530] sm:$0xff]
    %v1038 = vld [vmem:[%s1 + $0x1538] sm:$0xff]
    %v1039 = vld [vmem:[%s1 + $0x1540] sm:$0xff]
    %v1040 = vld [vmem:[%s1 + $0x1548] sm:$0xff]
    %v1041 = vld [vmem:[%s1 + $0x1550] sm:$0xff]
    %v1042 = vld [vmem:[%s1 + $0x1558] sm:$0xff]
    %v1043 = vld [vmem:[%s1 + $0x1560] sm:$0xff]
    %v1044 = vld [vmem:[%s1 + $0x1568] sm:$0xff]
    %v1045 = vld [vmem:[%s1 + $0x1570] sm:$0xff]
    %v1046 = vld [vmem:[%s1 + $0x1578] sm:$0xff]
    %v1047 = vld [vmem:[%s1 + $0x1580] sm:$0xff]
    %v1048 = vld [vmem:[%s1 + $0x1588] sm:$0xff]
    %v1049 = vld [vmem:[%s1 + $0x1590] sm:$0xff]
    %v1050 = vld [vmem:[%s1 + $0x1598] sm:$0xff]
    %v1051 = vld [vmem:[%s1 + $0x15a0] sm:$0xff]
    %v1052 = vld [vmem:[%s1 + $0x15a8] sm:$0xff]
    %v1053 = vld [vmem:[%s1 + $0x15b0] sm:$0xff]
    %v1054 = vld [vmem:[%s1 + $0x15b8] sm:$0xff]
    %v1055 = vld [vmem:[%s1 + $0x15c0] sm:$0xff]
    %v1056 = vld [vmem:[%s1 + $0x15c8] sm:$0xff]
    %v1057 = vld [vmem:[%s1 + $0x15d0] sm:$0xff]
    %v1058 = vld [vmem:[%s1 + $0x15d8] sm:$0xff]
    %v1059 = vld [vmem:[%s1 + $0x15e0] sm:$0xff]
    %v1060 = vld [vmem:[%s1 + $0x15e8] sm:$0xff]
    %v1061 = vld [vmem:[%s1 + $0x15f0] sm:$0xff]
    %v1062 = vld [vmem:[%s1 + $0x15f8] sm:$0xff]
    %v1063 = vld [vmem:[%s1 + $0x1600] sm:$0xff]
    %v1064 = vld [vmem:[%s1 + $0x1608] sm:$0xff]
    %v1065 = vld [vmem:[%s1 + $0x1610] sm:$0xff]
    %v1066 = vld [vmem:[%s1 + $0x1618] sm:$0xff]
    %v1067 = vld [vmem:[%s1 + $0x1620] sm:$0xff]
    %v1068 = vld [vmem:[%s1 + $0x1628] sm:$0xff]
    %v1069 = vld [vmem:[%s1 + $0x1630] sm:$0xff]
    %v1070 = vld [vmem:[%s1 + $0x1638] sm:$0xff]
    %v1071 = vld [vmem:[%s1 + $0x1640] sm:$0xff]
    %v1072 = vld [vmem:[%s1 + $0x1648] sm:$0xff]
    %v1073 = vld [vmem:[%s1 + $0x1650] sm:$0xff]
    %v1074 = vld [vmem:[%s1 + $0x1658] sm:$0xff]
    %v1075 = vld [vmem:[%s1 + $0x1660] sm:$0xff]
    %v1076 = vld [vmem:[%s1 + $0x1668] sm:$0xff]
    %v1077 = vld [vmem:[%s1 + $0x1670] sm:$0xff]
    %v1078 = vld [vmem:[%s1 + $0x1678] sm:$0xff]
    %v1079 = vld [vmem:[%s1 + $0x1680] sm:$0xff]
    %v1080 = vld [vmem:[%s1 + $0x1688] sm:$0xff]
    %v1081 = vld [vmem:[%s1 + $0x1690] sm:$0xff]
    %v1082 = vld [vmem:[%s1 + $0x1698] sm:$0xff]
    %v1083 = vld [vmem:[%s1 + $0x16a0] sm:$0xff]
    %v1084 = vld [vmem:[%s1 + $0x16a8] sm:$0xff]
    %v1085 = vld [vmem:[%s1 + $0x16b0] sm:$0xff]
    %v1086 = vld [vmem:[%s1 + $0x16b8] sm:$0xff]
    %v1087 = vld [vmem:[%s1 + $0x16c0] sm:$0xff]
    %v1088 = vld [vmem:[%s1 + $0x16c8] sm:$0xff]
    %v1089 = vld [vmem:[%s1 + $0x16d0] sm:$0xff]
    %v1090 = vld [vmem:[%s1 + $0x16d8] sm:$0xff]
    %v1091 = vld [vmem:[%s1 + $0x16e0] sm:$0xff]
    %v1092 = vld [vmem:[%s1 + $0x16e8] sm:$0xff]
    %v1093 = vld [vmem:[%s1 + $0x16f0] sm:$0xff]
    %v1094 = vld [vmem:[%s1 + $0x16f8] sm:$0xff]
    %v1095 = vld [vmem:[%s1 + $0x1700] sm:$0xff]
    %v1096 = vld [vmem:[%s1 + $0x1708] sm:$0xff]
    %v1097 = vld [vmem:[%s1 + $0x1710] sm:$0xff]
    %v1098 = vld [vmem:[%s1 + $0x1718] sm:$0xff]
    %v1099 = vld [vmem:[%s1 + $0x1720] sm:$0xff]
    %v1100 = vld [vmem:[%s1 + $0x1728] sm:$0xff]
    %v1101 = vld [vmem:[%s1 + $0x1730] sm:$0xff]
    %v1102 = vld [vmem:[%s1 + $0x1738] sm:$0xff]
    %v1103 = vld [vmem:[%s1 + $0x1740] sm:$0xff]
    %v1104 = vld [vmem:[%s1 + $0x1748] sm:$0xff]
    %v1105 = vld [vmem:[%s1 + $0x1750] sm:$0xff]
    %v1106 = vld [vmem:[%s1 + $0x1758] sm:$0xff]
    %v1107 = vld [vmem:[%s1 + $0x1760] sm:$0xff]
    %v1108 = vld [vmem:[%s1 + $0x1768] sm:$0xff]
    %v1109 = vld [vmem:[%s1 + $0x1770] sm:$0xff]
    %v1110 = vld [vmem:[%s1 + $0x1778] sm:$0xff]
    %v1111 = vld [vmem:[%s1 + $0x1780] sm:$0xff]
    %v1112 = vld [vmem:[%s1 + $0x1788] sm:$0xff]
    %v1113 = vld [vmem:[%s1 + $0x1790] sm:$0xff]
    %v1114 = vld [vmem:[%s1 + $0x1798] sm:$0xff]
    %v1115 = vld [vmem:[%s1 + $0x17a0] sm:$0xff]
    %v1116 = vld [vmem:[%s1 + $0x17a8] sm:$0xff]
    %v1117 = vld [vmem:[%s1 + $0x17b0] sm:$0xff]
    %v1118 = vld [vmem:[%s1 + $0x17b8] sm:$0xff]
    %v1119 = vld [vmem:[%s1 + $0x17c0] sm:$0xff]
    %v1120 = vld [vmem:[%s1 + $0x17c8] sm:$0xff]
    %v1121 = vld [vmem:[%s1 + $0x17d0] sm:$0xff]
    %v1122 = vld [vmem:[%s1 + $0x17d8] sm:$0xff]
    %v1123 = vld [vmem:[%s1 + $0x17e0] sm:$0xff]
    %v1124 = vld [vmem:[%s1 + $0x17e8] sm:$0xff]
    %v1125 = vld [vmem:[%s1 + $0x17f0] sm:$0xff]
    %v1126 = vld [vmem:[%s1 + $0x17f8] sm:$0xff]
    %v1127 = vld [vmem:[%s1 + $0x1800] sm:$0xff]
    %v1128 = vld [vmem:[%s1 + $0x1808] sm:$0xff]
    %v1129 = vld [vmem:[%s1 + $0x1810] sm:$0xff]
    %v1130 = vld [vmem:[%s1 + $0x1818] sm:$0xff]
    %v1131 = vld [vmem:[%s1 + $0x1820] sm:$0xff]
    %v1132 = vld [vmem:[%s1 + $0x1828] sm:$0xff]
    %v1133 = vld [vmem:[%s1 + $0x1830] sm:$0xff]
    %v1134 = vld [vmem:[%s1 + $0x1838] sm:$0xff]
    %v1135 = vld [vmem:[%s1 + $0x1840] sm:$0xff]
    %v1136 = vld [vmem:[%s1 + $0x1848] sm:$0xff]
    %v1137 = vld [vmem:[%s1 + $0x1850] sm:$0xff]
    %v1138 = vld [vmem:[%s1 + $0x1858] sm:$0xff]
    %v1139 = vld [vmem:[%s1 + $0x1860] sm:$0xff]
    %v1140 = vld [vmem:[%s1 + $0x1868] sm:$0xff]
    %v1141 = vld [vmem:[%s1 + $0x1870] sm:$0xff]
    %v1142 = vld [vmem:[%s1 + $0x1878] sm:$0xff]
    %v1143 = vld [vmem:[%s1 + $0x1880] sm:$0xff]
    %v1144 = vld [vmem:[%s1 + $0x1888] sm:$0xff]
    %v1145 = vld [vmem:[%s1 + $0x1890] sm:$0xff]
    %v1146 = vld [vmem:[%s1 + $0x1898] sm:$0xff]
    %v1147 = vld [vmem:[%s1 + $0x18a0] sm:$0xff]
    %v1148 = vld [vmem:[%s1 + $0x18a8] sm:$0xff]
    %v1149 = vld [vmem:[%s1 + $0x18b0] sm:$0xff]
    %v1150 = vld [vmem:[%s1 + $0x18b8] sm:$0xff]
    %v1151 = vld [vmem:[%s1 + $0x18c0] sm:$0xff]
    %v1152 = vld [vmem:[%s1 + $0x18c8] sm:$0xff]
    %v1153 = vld [vmem:[%s1 + $0x18d0] sm:$0xff]
    %v1154 = vld [vmem:[%s1 + $0x18d8] sm:$0xff]
    %v1155 = vld [vmem:[%s1 + $0x18e0] sm:$0xff]
    %v1156 = vld [vmem:[%s1 + $0x18e8] sm:$0xff]
    %v1157 = vld [vmem:[%s1 + $0x18f0] sm:$0xff]
    %v1158 = vld [vmem:[%s1 + $0x18f8] sm:$0xff]
    %v1159 = vld [vmem:[%s2] sm:$0x3]
    %v1161 = vlaneseq
    %v1162 = vshrl.u32 %v1161, 7
    %v1163 = vsub.s32 0, %v1162
    %v1164 = vrot.slane %v1159, %v1163
    %v1165 = vlaneseq
    %v1166 = vshrl.u32 %v1165, 7
    %v1167 = vsub.s32 1, %v1166
    %v1168 = vrot.slane %v1159, %v1167
    %v1971 = vunpack.c.l.b16 %v359
    %v1972 = vunpack.c.h.b16 %v359
    %v1973 = vunpack.c.l.b16 %v360
    %v1974 = vunpack.c.h.b16 %v360
    %v1975 = vunpack.c.l.b16 %v361
    %v1976 = vunpack.c.h.b16 %v361
    %v1977 = vunpack.c.l.b16 %v362
    %v1978 = vunpack.c.h.b16 %v362
    %v1979 = vunpack.c.l.b16 %v363
    %v1980 = vunpack.c.h.b16 %v363
    %v1981 = vunpack.c.l.b16 %v364
    %v1982 = vunpack.c.h.b16 %v364
    %v1983 = vunpack.c.l.b16 %v365
    %v1984 = vunpack.c.h.b16 %v365
    %v1985 = vunpack.c.l.b16 %v366
    %v1986 = vunpack.c.h.b16 %v366
    %v1987 = vunpack.c.l.b16 %v367
    %v1988 = vunpack.c.h.b16 %v367
    %v1989 = vunpack.c.l.b16 %v368
    %v1990 = vunpack.c.h.b16 %v368
    %v1991 = vunpack.c.l.b16 %v369
    %v1992 = vunpack.c.h.b16 %v369
    %v1993 = vunpack.c.l.b16 %v370
    %v1994 = vunpack.c.h.b16 %v370
    %v1995 = vunpack.c.l.b16 %v371
    %v1996 = vunpack.c.h.b16 %v371
    %v1997 = vunpack.c.l.b16 %v372
    %v1998 = vunpack.c.h.b16 %v372
    %v1999 = vunpack.c.l.b16 %v373
    %v2000 = vunpack.c.h.b16 %v373
    %v2001 = vunpack.c.l.b16 %v374
    %v2002 = vunpack.c.h.b16 %v374
    %v2003 = vunpack.c.l.b16 %v375
    %v2004 = vunpack.c.h.b16 %v375
    %v2005 = vunpack.c.l.b16 %v376
    %v2006 = vunpack.c.h.b16 %v376
    %v2007 = vunpack.c.l.b16 %v377
    %v2008 = vunpack.c.h.b16 %v377
    %v2009 = vunpack.c.l.b16 %v378
    %v2010 = vunpack.c.h.b16 %v378
    %v2011 = vunpack.c.l.b16 %v379
    %v2012 = vunpack.c.h.b16 %v379
    %v2013 = vunpack.c.l.b16 %v380
    %v2014 = vunpack.c.h.b16 %v380
    %v2015 = vunpack.c.l.b16 %v381
    %v2016 = vunpack.c.h.b16 %v381
    %v2017 = vunpack.c.l.b16 %v382
    %v2018 = vunpack.c.h.b16 %v382
    %v2019 = vunpack.c.l.b16 %v383
    %v2020 = vunpack.c.h.b16 %v383
    %v2021 = vunpack.c.l.b16 %v384
    %v2022 = vunpack.c.h.b16 %v384
    %v2023 = vunpack.c.l.b16 %v385
    %v2024 = vunpack.c.h.b16 %v385
    %v2025 = vunpack.c.l.b16 %v386
    %v2026 = vunpack.c.h.b16 %v386
    %v2027 = vunpack.c.l.b16 %v387
    %v2028 = vunpack.c.h.b16 %v387
    %v2029 = vunpack.c.l.b16 %v388
    %v2030 = vunpack.c.h.b16 %v388
    %v2031 = vunpack.c.l.b16 %v389
    %v2032 = vunpack.c.h.b16 %v389
    %v2033 = vunpack.c.l.b16 %v390
    %v2034 = vunpack.c.h.b16 %v390
    %v2035 = vunpack.c.l.b16 %v391
    %v2036 = vunpack.c.h.b16 %v391
    %v2037 = vunpack.c.l.b16 %v392
    %v2038 = vunpack.c.h.b16 %v392
    %v2039 = vunpack.c.l.b16 %v393
    %v2040 = vunpack.c.h.b16 %v393
    %v2041 = vunpack.c.l.b16 %v394
    %v2042 = vunpack.c.h.b16 %v394
    %v2043 = vunpack.c.l.b16 %v395
    %v2044 = vunpack.c.h.b16 %v395
    %v2045 = vunpack.c.l.b16 %v396
    %v2046 = vunpack.c.h.b16 %v396
    %v2047 = vunpack.c.l.b16 %v397
    %v2048 = vunpack.c.h.b16 %v397
    %v2049 = vunpack.c.l.b16 %v398
    %v2050 = vunpack.c.h.b16 %v398
    %v2051 = vunpack.c.l.b16 %v399
    %v2052 = vunpack.c.h.b16 %v399
    %v2053 = vunpack.c.l.b16 %v400
    %v2054 = vunpack.c.h.b16 %v400
    %v2055 = vunpack.c.l.b16 %v401
    %v2056 = vunpack.c.h.b16 %v401
    %v2057 = vunpack.c.l.b16 %v402
    %v2058 = vunpack.c.h.b16 %v402
    %v2059 = vunpack.c.l.b16 %v403
    %v2060 = vunpack.c.h.b16 %v403
    %v2061 = vunpack.c.l.b16 %v404
    %v2062 = vunpack.c.h.b16 %v404
    %v2063 = vunpack.c.l.b16 %v405
    %v2064 = vunpack.c.h.b16 %v405
    %v2065 = vunpack.c.l.b16 %v406
    %v2066 = vunpack.c.h.b16 %v406
    %v2067 = vunpack.c.l.b16 %v407
    %v2068 = vunpack.c.h.b16 %v407
    %v2069 = vunpack.c.l.b16 %v408
    %v2070 = vunpack.c.h.b16 %v408
    %v2071 = vunpack.c.l.b16 %v409
    %v2072 = vunpack.c.h.b16 %v409
    %v2073 = vunpack.c.l.b16 %v410
    %v2074 = vunpack.c.h.b16 %v410
    %v2075 = vunpack.c.l.b16 %v411
    %v2076 = vunpack.c.h.b16 %v411
    %v2077 = vunpack.c.l.b16 %v412
    %v2078 = vunpack.c.h.b16 %v412
    %v2079 = vunpack.c.l.b16 %v413
    %v2080 = vunpack.c.h.b16 %v413
    %v2081 = vunpack.c.l.b16 %v414
    %v2082 = vunpack.c.h.b16 %v414
    %v2083 = vunpack.c.l.b16 %v415
    %v2084 = vunpack.c.h.b16 %v415
    %v2085 = vunpack.c.l.b16 %v416
    %v2086 = vunpack.c.h.b16 %v416
    %v2087 = vunpack.c.l.b16 %v417
    %v2088 = vunpack.c.h.b16 %v417
    %v2089 = vunpack.c.l.b16 %v418
    %v2090 = vunpack.c.h.b16 %v418
    %v2091 = vunpack.c.l.b16 %v419
    %v2092 = vunpack.c.h.b16 %v419
    %v2093 = vunpack.c.l.b16 %v420
    %v2094 = vunpack.c.h.b16 %v420
    %v2095 = vunpack.c.l.b16 %v421
    %v2096 = vunpack.c.h.b16 %v421
    %v2097 = vunpack.c.l.b16 %v422
    %v2098 = vunpack.c.h.b16 %v422
    %v2099 = vunpack.c.l.b16 %v423
    %v2100 = vunpack.c.h.b16 %v423
    %v2101 = vunpack.c.l.b16 %v424
    %v2102 = vunpack.c.h.b16 %v424
    %v2103 = vunpack.c.l.b16 %v425
    %v2104 = vunpack.c.h.b16 %v425
    %v2105 = vunpack.c.l.b16 %v426
    %v2106 = vunpack.c.h.b16 %v426
    %v2107 = vunpack.c.l.b16 %v427
    %v2108 = vunpack.c.h.b16 %v427
    %v2109 = vunpack.c.l.b16 %v428
    %v2110 = vunpack.c.h.b16 %v428
    %v2111 = vunpack.c.l.b16 %v429
    %v2112 = vunpack.c.h.b16 %v429
    %v2113 = vunpack.c.l.b16 %v430
    %v2114 = vunpack.c.h.b16 %v430
    %v2115 = vunpack.c.l.b16 %v431
    %v2116 = vunpack.c.h.b16 %v431
    %v2117 = vunpack.c.l.b16 %v432
    %v2118 = vunpack.c.h.b16 %v432
    %v2119 = vunpack.c.l.b16 %v433
    %v2120 = vunpack.c.h.b16 %v433
    %v2121 = vunpack.c.l.b16 %v434
    %v2122 = vunpack.c.h.b16 %v434
    %v2123 = vunpack.c.l.b16 %v435
    %v2124 = vunpack.c.h.b16 %v435
    %v2125 = vunpack.c.l.b16 %v436
    %v2126 = vunpack.c.h.b16 %v436
    %v2127 = vunpack.c.l.b16 %v437
    %v2128 = vunpack.c.h.b16 %v437
    %v2129 = vunpack.c.l.b16 %v438
    %v2130 = vunpack.c.h.b16 %v438
    %v2131 = vunpack.c.l.b16 %v439
    %v2132 = vunpack.c.h.b16 %v439
    %v2133 = vunpack.c.l.b16 %v440
    %v2134 = vunpack.c.h.b16 %v440
    %v2135 = vunpack.c.l.b16 %v441
    %v2136 = vunpack.c.h.b16 %v441
    %v2137 = vunpack.c.l.b16 %v442
    %v2138 = vunpack.c.h.b16 %v442
    %v2139 = vunpack.c.l.b16 %v443
    %v2140 = vunpack.c.h.b16 %v443
    %v2141 = vunpack.c.l.b16 %v444
    %v2142 = vunpack.c.h.b16 %v444
    %v2143 = vunpack.c.l.b16 %v445
    %v2144 = vunpack.c.h.b16 %v445
    %v2145 = vunpack.c.l.b16 %v446
    %v2146 = vunpack.c.h.b16 %v446
    %v2147 = vunpack.c.l.b16 %v447
    %v2148 = vunpack.c.h.b16 %v447
    %v2149 = vunpack.c.l.b16 %v448
    %v2150 = vunpack.c.h.b16 %v448
    %v2151 = vunpack.c.l.b16 %v449
    %v2152 = vunpack.c.h.b16 %v449
    %v2153 = vunpack.c.l.b16 %v450
    %v2154 = vunpack.c.h.b16 %v450
    %v2155 = vunpack.c.l.b16 %v451
    %v2156 = vunpack.c.h.b16 %v451
    %v2157 = vunpack.c.l.b16 %v452
    %v2158 = vunpack.c.h.b16 %v452
    %v2159 = vunpack.c.l.b16 %v453
    %v2160 = vunpack.c.h.b16 %v453
    %v2161 = vunpack.c.l.b16 %v454
    %v2162 = vunpack.c.h.b16 %v454
    %v2163 = vunpack.c.l.b16 %v455
    %v2164 = vunpack.c.h.b16 %v455
    %v2165 = vunpack.c.l.b16 %v456
    %v2166 = vunpack.c.h.b16 %v456
    %v2167 = vunpack.c.l.b16 %v457
    %v2168 = vunpack.c.h.b16 %v457
    %v2169 = vunpack.c.l.b16 %v458
    %v2170 = vunpack.c.h.b16 %v458
    %v2171 = vunpack.c.l.b16 %v459
    %v2172 = vunpack.c.h.b16 %v459
    %v2173 = vunpack.c.l.b16 %v460
    %v2174 = vunpack.c.h.b16 %v460
    %v2175 = vunpack.c.l.b16 %v461
    %v2176 = vunpack.c.h.b16 %v461
    %v2177 = vunpack.c.l.b16 %v462
    %v2178 = vunpack.c.h.b16 %v462
    %v2179 = vunpack.c.l.b16 %v463
    %v2180 = vunpack.c.h.b16 %v463
    %v2181 = vunpack.c.l.b16 %v464
    %v2182 = vunpack.c.h.b16 %v464
    %v2183 = vunpack.c.l.b16 %v465
    %v2184 = vunpack.c.h.b16 %v465
    %v2185 = vunpack.c.l.b16 %v466
    %v2186 = vunpack.c.h.b16 %v466
    %v2187 = vunpack.c.l.b16 %v467
    %v2188 = vunpack.c.h.b16 %v467
    %v2189 = vunpack.c.l.b16 %v468
    %v2190 = vunpack.c.h.b16 %v468
    %v2191 = vunpack.c.l.b16 %v469
    %v2192 = vunpack.c.h.b16 %v469
    %v2193 = vunpack.c.l.b16 %v470
    %v2194 = vunpack.c.h.b16 %v470
    %v2195 = vunpack.c.l.b16 %v471
    %v2196 = vunpack.c.h.b16 %v471
    %v2197 = vunpack.c.l.b16 %v472
    %v2198 = vunpack.c.h.b16 %v472
    %v2199 = vunpack.c.l.b16 %v473
    %v2200 = vunpack.c.h.b16 %v473
    %v2201 = vunpack.c.l.b16 %v474
    %v2202 = vunpack.c.h.b16 %v474
    %v2203 = vunpack.c.l.b16 %v475
    %v2204 = vunpack.c.h.b16 %v475
    %v2205 = vunpack.c.l.b16 %v476
    %v2206 = vunpack.c.h.b16 %v476
    %v2207 = vunpack.c.l.b16 %v477
    %v2208 = vunpack.c.h.b16 %v477
    %v2209 = vunpack.c.l.b16 %v478
    %v2210 = vunpack.c.h.b16 %v478
    %v2211 = vunpack.c.l.b16 %v479
    %v2212 = vunpack.c.h.b16 %v479
    %v2213 = vunpack.c.l.b16 %v480
    %v2214 = vunpack.c.h.b16 %v480
    %v2215 = vunpack.c.l.b16 %v481
    %v2216 = vunpack.c.h.b16 %v481
    %v2217 = vunpack.c.l.b16 %v482
    %v2218 = vunpack.c.h.b16 %v482
    %v2219 = vunpack.c.l.b16 %v483
    %v2220 = vunpack.c.h.b16 %v483
    %v2221 = vunpack.c.l.b16 %v484
    %v2222 = vunpack.c.h.b16 %v484
    %v2223 = vunpack.c.l.b16 %v485
    %v2224 = vunpack.c.h.b16 %v485
    %v2225 = vunpack.c.l.b16 %v486
    %v2226 = vunpack.c.h.b16 %v486
    %v2227 = vunpack.c.l.b16 %v487
    %v2228 = vunpack.c.h.b16 %v487
    %v2229 = vunpack.c.l.b16 %v488
    %v2230 = vunpack.c.h.b16 %v488
    %v2231 = vunpack.c.l.b16 %v489
    %v2232 = vunpack.c.h.b16 %v489
    %v2233 = vunpack.c.l.b16 %v490
    %v2234 = vunpack.c.h.b16 %v490
    %v2235 = vunpack.c.l.b16 %v491
    %v2236 = vunpack.c.h.b16 %v491
    %v2237 = vunpack.c.l.b16 %v492
    %v2238 = vunpack.c.h.b16 %v492
    %v2239 = vunpack.c.l.b16 %v493
    %v2240 = vunpack.c.h.b16 %v493
    %v2241 = vunpack.c.l.b16 %v494
    %v2242 = vunpack.c.h.b16 %v494
    %v2243 = vunpack.c.l.b16 %v495
    %v2244 = vunpack.c.h.b16 %v495
    %v2245 = vunpack.c.l.b16 %v496
    %v2246 = vunpack.c.h.b16 %v496
    %v2247 = vunpack.c.l.b16 %v497
    %v2248 = vunpack.c.h.b16 %v497
    %v2249 = vunpack.c.l.b16 %v498
    %v2250 = vunpack.c.h.b16 %v498
    %v2251 = vunpack.c.l.b16 %v499
    %v2252 = vunpack.c.h.b16 %v499
    %v2253 = vunpack.c.l.b16 %v500
    %v2254 = vunpack.c.h.b16 %v500
    %v2255 = vunpack.c.l.b16 %v501
    %v2256 = vunpack.c.h.b16 %v501
    %v2257 = vunpack.c.l.b16 %v502
    %v2258 = vunpack.c.h.b16 %v502
    %v2259 = vunpack.c.l.b16 %v503
    %v2260 = vunpack.c.h.b16 %v503
    %v2261 = vunpack.c.l.b16 %v504
    %v2262 = vunpack.c.h.b16 %v504
    %v2263 = vunpack.c.l.b16 %v505
    %v2264 = vunpack.c.h.b16 %v505
    %v2265 = vunpack.c.l.b16 %v506
    %v2266 = vunpack.c.h.b16 %v506
    %v2267 = vunpack.c.l.b16 %v507
    %v2268 = vunpack.c.h.b16 %v507
    %v2269 = vunpack.c.l.b16 %v508
    %v2270 = vunpack.c.h.b16 %v508
    %v2271 = vunpack.c.l.b16 %v509
    %v2272 = vunpack.c.h.b16 %v509
    %v2273 = vunpack.c.l.b16 %v510
    %v2274 = vunpack.c.h.b16 %v510
    %v2275 = vunpack.c.l.b16 %v511
    %v2276 = vunpack.c.h.b16 %v511
    %v2277 = vunpack.c.l.b16 %v512
    %v2278 = vunpack.c.h.b16 %v512
    %v2279 = vunpack.c.l.b16 %v513
    %v2280 = vunpack.c.h.b16 %v513
    %v2281 = vunpack.c.l.b16 %v514
    %v2282 = vunpack.c.h.b16 %v514
    %v2283 = vunpack.c.l.b16 %v515
    %v2284 = vunpack.c.h.b16 %v515
    %v2285 = vunpack.c.l.b16 %v516
    %v2286 = vunpack.c.h.b16 %v516
    %v2287 = vunpack.c.l.b16 %v517
    %v2288 = vunpack.c.h.b16 %v517
    %v2289 = vunpack.c.l.b16 %v518
    %v2290 = vunpack.c.h.b16 %v518
    %v2291 = vunpack.c.l.b16 %v519
    %v2292 = vunpack.c.h.b16 %v519
    %v2293 = vunpack.c.l.b16 %v520
    %v2294 = vunpack.c.h.b16 %v520
    %v2295 = vunpack.c.l.b16 %v521
    %v2296 = vunpack.c.h.b16 %v521
    %v2297 = vunpack.c.l.b16 %v522
    %v2298 = vunpack.c.h.b16 %v522
    %v2299 = vunpack.c.l.b16 %v523
    %v2300 = vunpack.c.h.b16 %v523
    %v2301 = vunpack.c.l.b16 %v524
    %v2302 = vunpack.c.h.b16 %v524
    %v2303 = vunpack.c.l.b16 %v525
    %v2304 = vunpack.c.h.b16 %v525
    %v2305 = vunpack.c.l.b16 %v526
    %v2306 = vunpack.c.h.b16 %v526
    %v2307 = vunpack.c.l.b16 %v527
    %v2308 = vunpack.c.h.b16 %v527
    %v2309 = vunpack.c.l.b16 %v528
    %v2310 = vunpack.c.h.b16 %v528
    %v2311 = vunpack.c.l.b16 %v529
    %v2312 = vunpack.c.h.b16 %v529
    %v2313 = vunpack.c.l.b16 %v530
    %v2314 = vunpack.c.h.b16 %v530
    %v2315 = vunpack.c.l.b16 %v531
    %v2316 = vunpack.c.h.b16 %v531
    %v2317 = vunpack.c.l.b16 %v532
    %v2318 = vunpack.c.h.b16 %v532
    %v2319 = vunpack.c.l.b16 %v533
    %v2320 = vunpack.c.h.b16 %v533
    %v2321 = vunpack.c.l.b16 %v534
    %v2322 = vunpack.c.h.b16 %v534
    %v2323 = vunpack.c.l.b16 %v535
    %v2324 = vunpack.c.h.b16 %v535
    %v2325 = vunpack.c.l.b16 %v536
    %v2326 = vunpack.c.h.b16 %v536
    %v2327 = vunpack.c.l.b16 %v537
    %v2328 = vunpack.c.h.b16 %v537
    %v2329 = vunpack.c.l.b16 %v538
    %v2330 = vunpack.c.h.b16 %v538
    %v2331 = vunpack.c.l.b16 %v539
    %v2332 = vunpack.c.h.b16 %v539
    %v2333 = vunpack.c.l.b16 %v540
    %v2334 = vunpack.c.h.b16 %v540
    %v2335 = vunpack.c.l.b16 %v541
    %v2336 = vunpack.c.h.b16 %v541
    %v2337 = vunpack.c.l.b16 %v542
    %v2338 = vunpack.c.h.b16 %v542
    %v2339 = vunpack.c.l.b16 %v543
    %v2340 = vunpack.c.h.b16 %v543
    %v2341 = vunpack.c.l.b16 %v544
    %v2342 = vunpack.c.h.b16 %v544
    %v2343 = vunpack.c.l.b16 %v545
    %v2344 = vunpack.c.h.b16 %v545
    %v2345 = vunpack.c.l.b16 %v546
    %v2346 = vunpack.c.h.b16 %v546
    %v2347 = vunpack.c.l.b16 %v547
    %v2348 = vunpack.c.h.b16 %v547
    %v2349 = vunpack.c.l.b16 %v548
    %v2350 = vunpack.c.h.b16 %v548
    %v2351 = vunpack.c.l.b16 %v549
    %v2352 = vunpack.c.h.b16 %v549
    %v2353 = vunpack.c.l.b16 %v550
    %v2354 = vunpack.c.h.b16 %v550
    %v2355 = vunpack.c.l.b16 %v551
    %v2356 = vunpack.c.h.b16 %v551
    %v2357 = vunpack.c.l.b16 %v552
    %v2358 = vunpack.c.h.b16 %v552
    %v2359 = vunpack.c.l.b16 %v553
    %v2360 = vunpack.c.h.b16 %v553
    %v2361 = vunpack.c.l.b16 %v554
    %v2362 = vunpack.c.h.b16 %v554
    %v2363 = vunpack.c.l.b16 %v555
    %v2364 = vunpack.c.h.b16 %v555
    %v2365 = vunpack.c.l.b16 %v556
    %v2366 = vunpack.c.h.b16 %v556
    %v2367 = vunpack.c.l.b16 %v557
    %v2368 = vunpack.c.h.b16 %v557
    %v2369 = vunpack.c.l.b16 %v558
    %v2370 = vunpack.c.h.b16 %v558
    %v2371 = vunpack.c.l.b16 %v559
    %v2372 = vunpack.c.h.b16 %v559
    %v2373 = vunpack.c.l.b16 %v560
    %v2374 = vunpack.c.h.b16 %v560
    %v2375 = vunpack.c.l.b16 %v561
    %v2376 = vunpack.c.h.b16 %v561
    %v2377 = vunpack.c.l.b16 %v562
    %v2378 = vunpack.c.h.b16 %v562
    %v2379 = vunpack.c.l.b16 %v563
    %v2380 = vunpack.c.h.b16 %v563
    %v2381 = vunpack.c.l.b16 %v564
    %v2382 = vunpack.c.h.b16 %v564
    %v2383 = vunpack.c.l.b16 %v565
    %v2384 = vunpack.c.h.b16 %v565
    %v2385 = vunpack.c.l.b16 %v566
    %v2386 = vunpack.c.h.b16 %v566
    %v2387 = vunpack.c.l.b16 %v567
    %v2388 = vunpack.c.h.b16 %v567
    %v2389 = vunpack.c.l.b16 %v568
    %v2390 = vunpack.c.h.b16 %v568
    %v2391 = vunpack.c.l.b16 %v569
    %v2392 = vunpack.c.h.b16 %v569
    %v2393 = vunpack.c.l.b16 %v570
    %v2394 = vunpack.c.h.b16 %v570
    %v2395 = vunpack.c.l.b16 %v571
    %v2396 = vunpack.c.h.b16 %v571
    %v2397 = vunpack.c.l.b16 %v572
    %v2398 = vunpack.c.h.b16 %v572
    %v2399 = vunpack.c.l.b16 %v573
    %v2400 = vunpack.c.h.b16 %v573
    %v2401 = vunpack.c.l.b16 %v574
    %v2402 = vunpack.c.h.b16 %v574
    %v2403 = vunpack.c.l.b16 %v575
    %v2404 = vunpack.c.h.b16 %v575
    %v2405 = vunpack.c.l.b16 %v576
    %v2406 = vunpack.c.h.b16 %v576
    %v2407 = vunpack.c.l.b16 %v577
    %v2408 = vunpack.c.h.b16 %v577
    %v2409 = vunpack.c.l.b16 %v578
    %v2410 = vunpack.c.h.b16 %v578
    %v2411 = vunpack.c.l.b16 %v579
    %v2412 = vunpack.c.h.b16 %v579
    %v2413 = vunpack.c.l.b16 %v580
    %v2414 = vunpack.c.h.b16 %v580
    %v2415 = vunpack.c.l.b16 %v581
    %v2416 = vunpack.c.h.b16 %v581
    %v2417 = vunpack.c.l.b16 %v582
    %v2418 = vunpack.c.h.b16 %v582
    %v2419 = vunpack.c.l.b16 %v583
    %v2420 = vunpack.c.h.b16 %v583
    %v2421 = vunpack.c.l.b16 %v584
    %v2422 = vunpack.c.h.b16 %v584
    %v2423 = vunpack.c.l.b16 %v585
    %v2424 = vunpack.c.h.b16 %v585
    %v2425 = vunpack.c.l.b16 %v586
    %v2426 = vunpack.c.h.b16 %v586
    %v2427 = vunpack.c.l.b16 %v587
    %v2428 = vunpack.c.h.b16 %v587
    %v2429 = vunpack.c.l.b16 %v588
    %v2430 = vunpack.c.h.b16 %v588
    %v2431 = vunpack.c.l.b16 %v589
    %v2432 = vunpack.c.h.b16 %v589
    %v2433 = vunpack.c.l.b16 %v590
    %v2434 = vunpack.c.h.b16 %v590
    %v2435 = vunpack.c.l.b16 %v591
    %v2436 = vunpack.c.h.b16 %v591
    %v2437 = vunpack.c.l.b16 %v592
    %v2438 = vunpack.c.h.b16 %v592
    %v2439 = vunpack.c.l.b16 %v593
    %v2440 = vunpack.c.h.b16 %v593
    %v2441 = vunpack.c.l.b16 %v594
    %v2442 = vunpack.c.h.b16 %v594
    %v2443 = vunpack.c.l.b16 %v595
    %v2444 = vunpack.c.h.b16 %v595
    %v2445 = vunpack.c.l.b16 %v596
    %v2446 = vunpack.c.h.b16 %v596
    %v2447 = vunpack.c.l.b16 %v597
    %v2448 = vunpack.c.h.b16 %v597
    %v2449 = vunpack.c.l.b16 %v598
    %v2450 = vunpack.c.h.b16 %v598
    %v2451 = vunpack.c.l.b16 %v599
    %v2452 = vunpack.c.h.b16 %v599
    %v2453 = vunpack.c.l.b16 %v600
    %v2454 = vunpack.c.h.b16 %v600
    %v2455 = vunpack.c.l.b16 %v601
    %v2456 = vunpack.c.h.b16 %v601
    %v2457 = vunpack.c.l.b16 %v602
    %v2458 = vunpack.c.h.b16 %v602
    %v2459 = vunpack.c.l.b16 %v603
    %v2460 = vunpack.c.h.b16 %v603
    %v2461 = vunpack.c.l.b16 %v604
    %v2462 = vunpack.c.h.b16 %v604
    %v2463 = vunpack.c.l.b16 %v605
    %v2464 = vunpack.c.h.b16 %v605
    %v2465 = vunpack.c.l.b16 %v606
    %v2466 = vunpack.c.h.b16 %v606
    %v2467 = vunpack.c.l.b16 %v607
    %v2468 = vunpack.c.h.b16 %v607
    %v2469 = vunpack.c.l.b16 %v608
    %v2470 = vunpack.c.h.b16 %v608
    %v2471 = vunpack.c.l.b16 %v609
    %v2472 = vunpack.c.h.b16 %v609
    %v2473 = vunpack.c.l.b16 %v610
    %v2474 = vunpack.c.h.b16 %v610
    %v2475 = vunpack.c.l.b16 %v611
    %v2476 = vunpack.c.h.b16 %v611
    %v2477 = vunpack.c.l.b16 %v612
    %v2478 = vunpack.c.h.b16 %v612
    %v2479 = vunpack.c.l.b16 %v613
    %v2480 = vunpack.c.h.b16 %v613
    %v2481 = vunpack.c.l.b16 %v614
    %v2482 = vunpack.c.h.b16 %v614
    %v2483 = vunpack.c.l.b16 %v615
    %v2484 = vunpack.c.h.b16 %v615
    %v2485 = vunpack.c.l.b16 %v616
    %v2486 = vunpack.c.h.b16 %v616
    %v2487 = vunpack.c.l.b16 %v617
    %v2488 = vunpack.c.h.b16 %v617
    %v2489 = vunpack.c.l.b16 %v618
    %v2490 = vunpack.c.h.b16 %v618
    %v2491 = vunpack.c.l.b16 %v619
    %v2492 = vunpack.c.h.b16 %v619
    %v2493 = vunpack.c.l.b16 %v620
    %v2494 = vunpack.c.h.b16 %v620
    %v2495 = vunpack.c.l.b16 %v621
    %v2496 = vunpack.c.h.b16 %v621
    %v2497 = vunpack.c.l.b16 %v622
    %v2498 = vunpack.c.h.b16 %v622
    %v2499 = vunpack.c.l.b16 %v623
    %v2500 = vunpack.c.h.b16 %v623
    %v2501 = vunpack.c.l.b16 %v624
    %v2502 = vunpack.c.h.b16 %v624
    %v2503 = vunpack.c.l.b16 %v625
    %v2504 = vunpack.c.h.b16 %v625
    %v2505 = vunpack.c.l.b16 %v626
    %v2506 = vunpack.c.h.b16 %v626
    %v2507 = vunpack.c.l.b16 %v627
    %v2508 = vunpack.c.h.b16 %v627
    %v2509 = vunpack.c.l.b16 %v628
    %v2510 = vunpack.c.h.b16 %v628
    %v2511 = vunpack.c.l.b16 %v629
    %v2512 = vunpack.c.h.b16 %v629
    %v2513 = vunpack.c.l.b16 %v630
    %v2514 = vunpack.c.h.b16 %v630
    %v2515 = vunpack.c.l.b16 %v631
    %v2516 = vunpack.c.h.b16 %v631
    %v2517 = vunpack.c.l.b16 %v632
    %v2518 = vunpack.c.h.b16 %v632
    %v2519 = vunpack.c.l.b16 %v633
    %v2520 = vunpack.c.h.b16 %v633
    %v2521 = vunpack.c.l.b16 %v634
    %v2522 = vunpack.c.h.b16 %v634
    %v2523 = vunpack.c.l.b16 %v635
    %v2524 = vunpack.c.h.b16 %v635
    %v2525 = vunpack.c.l.b16 %v636
    %v2526 = vunpack.c.h.b16 %v636
    %v2527 = vunpack.c.l.b16 %v637
    %v2528 = vunpack.c.h.b16 %v637
    %v2529 = vunpack.c.l.b16 %v638
    %v2530 = vunpack.c.h.b16 %v638
    %v2531 = vunpack.c.l.b16 %v639
    %v2532 = vunpack.c.h.b16 %v639
    %v2533 = vunpack.c.l.b16 %v640
    %v2534 = vunpack.c.h.b16 %v640
    %v2535 = vunpack.c.l.b16 %v641
    %v2536 = vunpack.c.h.b16 %v641
    %v2537 = vunpack.c.l.b16 %v642
    %v2538 = vunpack.c.h.b16 %v642
    %v2539 = vunpack.c.l.b16 %v643
    %v2540 = vunpack.c.h.b16 %v643
    %v2541 = vunpack.c.l.b16 %v644
    %v2542 = vunpack.c.h.b16 %v644
    %v2543 = vunpack.c.l.b16 %v645
    %v2544 = vunpack.c.h.b16 %v645
    %v2545 = vunpack.c.l.b16 %v646
    %v2546 = vunpack.c.h.b16 %v646
    %v2547 = vunpack.c.l.b16 %v647
    %v2548 = vunpack.c.h.b16 %v647
    %v2549 = vunpack.c.l.b16 %v648
    %v2550 = vunpack.c.h.b16 %v648
    %v2551 = vunpack.c.l.b16 %v649
    %v2552 = vunpack.c.h.b16 %v649
    %v2553 = vunpack.c.l.b16 %v650
    %v2554 = vunpack.c.h.b16 %v650
    %v2555 = vunpack.c.l.b16 %v651
    %v2556 = vunpack.c.h.b16 %v651
    %v2557 = vunpack.c.l.b16 %v652
    %v2558 = vunpack.c.h.b16 %v652
    %v2559 = vunpack.c.l.b16 %v653
    %v2560 = vunpack.c.h.b16 %v653
    %v2561 = vunpack.c.l.b16 %v654
    %v2562 = vunpack.c.h.b16 %v654
    %v2563 = vunpack.c.l.b16 %v655
    %v2564 = vunpack.c.h.b16 %v655
    %v2565 = vunpack.c.l.b16 %v656
    %v2566 = vunpack.c.h.b16 %v656
    %v2567 = vunpack.c.l.b16 %v657
    %v2568 = vunpack.c.h.b16 %v657
    %v2569 = vunpack.c.l.b16 %v658
    %v2570 = vunpack.c.h.b16 %v658
    %v2571 = vunpack.c.l.b16 %v659
    %v2572 = vunpack.c.h.b16 %v659
    %v2573 = vunpack.c.l.b16 %v660
    %v2574 = vunpack.c.h.b16 %v660
    %v2575 = vunpack.c.l.b16 %v661
    %v2576 = vunpack.c.h.b16 %v661
    %v2577 = vunpack.c.l.b16 %v662
    %v2578 = vunpack.c.h.b16 %v662
    %v2579 = vunpack.c.l.b16 %v663
    %v2580 = vunpack.c.h.b16 %v663
    %v2581 = vunpack.c.l.b16 %v664
    %v2582 = vunpack.c.h.b16 %v664
    %v2583 = vunpack.c.l.b16 %v665
    %v2584 = vunpack.c.h.b16 %v665
    %v2585 = vunpack.c.l.b16 %v666
    %v2586 = vunpack.c.h.b16 %v666
    %v2587 = vunpack.c.l.b16 %v667
    %v2588 = vunpack.c.h.b16 %v667
    %v2589 = vunpack.c.l.b16 %v668
    %v2590 = vunpack.c.h.b16 %v668
    %v2591 = vunpack.c.l.b16 %v669
    %v2592 = vunpack.c.h.b16 %v669
    %v2593 = vunpack.c.l.b16 %v670
    %v2594 = vunpack.c.h.b16 %v670
    %v2595 = vunpack.c.l.b16 %v671
    %v2596 = vunpack.c.h.b16 %v671
    %v2597 = vunpack.c.l.b16 %v672
    %v2598 = vunpack.c.h.b16 %v672
    %v2599 = vunpack.c.l.b16 %v673
    %v2600 = vunpack.c.h.b16 %v673
    %v2601 = vunpack.c.l.b16 %v674
    %v2602 = vunpack.c.h.b16 %v674
    %v2603 = vunpack.c.l.b16 %v675
    %v2604 = vunpack.c.h.b16 %v675
    %v2605 = vunpack.c.l.b16 %v676
    %v2606 = vunpack.c.h.b16 %v676
    %v2607 = vunpack.c.l.b16 %v677
    %v2608 = vunpack.c.h.b16 %v677
    %v2609 = vunpack.c.l.b16 %v678
    %v2610 = vunpack.c.h.b16 %v678
    %v2611 = vunpack.c.l.b16 %v679
    %v2612 = vunpack.c.h.b16 %v679
    %v2613 = vunpack.c.l.b16 %v680
    %v2614 = vunpack.c.h.b16 %v680
    %v2615 = vunpack.c.l.b16 %v681
    %v2616 = vunpack.c.h.b16 %v681
    %v2617 = vunpack.c.l.b16 %v682
    %v2618 = vunpack.c.h.b16 %v682
    %v2619 = vunpack.c.l.b16 %v683
    %v2620 = vunpack.c.h.b16 %v683
    %v2621 = vunpack.c.l.b16 %v684
    %v2622 = vunpack.c.h.b16 %v684
    %v2623 = vunpack.c.l.b16 %v685
    %v2624 = vunpack.c.h.b16 %v685
    %v2625 = vunpack.c.l.b16 %v686
    %v2626 = vunpack.c.h.b16 %v686
    %v2627 = vunpack.c.l.b16 %v687
    %v2628 = vunpack.c.h.b16 %v687
    %v2629 = vunpack.c.l.b16 %v688
    %v2630 = vunpack.c.h.b16 %v688
    %v2631 = vunpack.c.l.b16 %v689
    %v2632 = vunpack.c.h.b16 %v689
    %v2633 = vunpack.c.l.b16 %v690
    %v2634 = vunpack.c.h.b16 %v690
    %v2635 = vunpack.c.l.b16 %v691
    %v2636 = vunpack.c.h.b16 %v691
    %v2637 = vunpack.c.l.b16 %v692
    %v2638 = vunpack.c.h.b16 %v692
    %v2639 = vunpack.c.l.b16 %v693
    %v2640 = vunpack.c.h.b16 %v693
    %v2641 = vunpack.c.l.b16 %v694
    %v2642 = vunpack.c.h.b16 %v694
    %v2643 = vunpack.c.l.b16 %v695
    %v2644 = vunpack.c.h.b16 %v695
    %v2645 = vunpack.c.l.b16 %v696
    %v2646 = vunpack.c.h.b16 %v696
    %v2647 = vunpack.c.l.b16 %v697
    %v2648 = vunpack.c.h.b16 %v697
    %v2649 = vunpack.c.l.b16 %v698
    %v2650 = vunpack.c.h.b16 %v698
    %v2651 = vunpack.c.l.b16 %v699
    %v2652 = vunpack.c.h.b16 %v699
    %v2653 = vunpack.c.l.b16 %v700
    %v2654 = vunpack.c.h.b16 %v700
    %v2655 = vunpack.c.l.b16 %v701
    %v2656 = vunpack.c.h.b16 %v701
    %v2657 = vunpack.c.l.b16 %v702
    %v2658 = vunpack.c.h.b16 %v702
    %v2659 = vunpack.c.l.b16 %v703
    %v2660 = vunpack.c.h.b16 %v703
    %v2661 = vunpack.c.l.b16 %v704
    %v2662 = vunpack.c.h.b16 %v704
    %v2663 = vunpack.c.l.b16 %v705
    %v2664 = vunpack.c.h.b16 %v705
    %v2665 = vunpack.c.l.b16 %v706
    %v2666 = vunpack.c.h.b16 %v706
    %v2667 = vunpack.c.l.b16 %v707
    %v2668 = vunpack.c.h.b16 %v707
    %v2669 = vunpack.c.l.b16 %v708
    %v2670 = vunpack.c.h.b16 %v708
    %v2671 = vunpack.c.l.b16 %v709
    %v2672 = vunpack.c.h.b16 %v709
    %v2673 = vunpack.c.l.b16 %v710
    %v2674 = vunpack.c.h.b16 %v710
    %v2675 = vunpack.c.l.b16 %v711
    %v2676 = vunpack.c.h.b16 %v711
    %v2677 = vunpack.c.l.b16 %v712
    %v2678 = vunpack.c.h.b16 %v712
    %v2679 = vunpack.c.l.b16 %v713
    %v2680 = vunpack.c.h.b16 %v713
    %v2681 = vunpack.c.l.b16 %v714
    %v2682 = vunpack.c.h.b16 %v714
    %v2683 = vunpack.c.l.b16 %v715
    %v2684 = vunpack.c.h.b16 %v715
    %v2685 = vunpack.c.l.b16 %v716
    %v2686 = vunpack.c.h.b16 %v716
    %v2687 = vunpack.c.l.b16 %v717
    %v2688 = vunpack.c.h.b16 %v717
    %v2689 = vunpack.c.l.b16 %v718
    %v2690 = vunpack.c.h.b16 %v718
    %v2691 = vunpack.c.l.b16 %v719
    %v2692 = vunpack.c.h.b16 %v719
    %v2693 = vunpack.c.l.b16 %v720
    %v2694 = vunpack.c.h.b16 %v720
    %v2695 = vunpack.c.l.b16 %v721
    %v2696 = vunpack.c.h.b16 %v721
    %v2697 = vunpack.c.l.b16 %v722
    %v2698 = vunpack.c.h.b16 %v722
    %v2699 = vunpack.c.l.b16 %v723
    %v2700 = vunpack.c.h.b16 %v723
    %v2701 = vunpack.c.l.b16 %v724
    %v2702 = vunpack.c.h.b16 %v724
    %v2703 = vunpack.c.l.b16 %v725
    %v2704 = vunpack.c.h.b16 %v725
    %v2705 = vunpack.c.l.b16 %v726
    %v2706 = vunpack.c.h.b16 %v726
    %v2707 = vunpack.c.l.b16 %v727
    %v2708 = vunpack.c.h.b16 %v727
    %v2709 = vunpack.c.l.b16 %v728
    %v2710 = vunpack.c.h.b16 %v728
    %v2711 = vunpack.c.l.b16 %v729
    %v2712 = vunpack.c.h.b16 %v729
    %v2713 = vunpack.c.l.b16 %v730
    %v2714 = vunpack.c.h.b16 %v730
    %v2715 = vunpack.c.l.b16 %v731
    %v2716 = vunpack.c.h.b16 %v731
    %v2717 = vunpack.c.l.b16 %v732
    %v2718 = vunpack.c.h.b16 %v732
    %v2719 = vunpack.c.l.b16 %v733
    %v2720 = vunpack.c.h.b16 %v733
    %v2721 = vunpack.c.l.b16 %v734
    %v2722 = vunpack.c.h.b16 %v734
    %v2723 = vunpack.c.l.b16 %v735
    %v2724 = vunpack.c.h.b16 %v735
    %v2725 = vunpack.c.l.b16 %v736
    %v2726 = vunpack.c.h.b16 %v736
    %v2727 = vunpack.c.l.b16 %v737
    %v2728 = vunpack.c.h.b16 %v737
    %v2729 = vunpack.c.l.b16 %v738
    %v2730 = vunpack.c.h.b16 %v738
    %v2731 = vunpack.c.l.b16 %v739
    %v2732 = vunpack.c.h.b16 %v739
    %v2733 = vunpack.c.l.b16 %v740
    %v2734 = vunpack.c.h.b16 %v740
    %v2735 = vunpack.c.l.b16 %v741
    %v2736 = vunpack.c.h.b16 %v741
    %v2737 = vunpack.c.l.b16 %v742
    %v2738 = vunpack.c.h.b16 %v742
    %v2739 = vunpack.c.l.b16 %v743
    %v2740 = vunpack.c.h.b16 %v743
    %v2741 = vunpack.c.l.b16 %v744
    %v2742 = vunpack.c.h.b16 %v744
    %v2743 = vunpack.c.l.b16 %v745
    %v2744 = vunpack.c.h.b16 %v745
    %v2745 = vunpack.c.l.b16 %v746
    %v2746 = vunpack.c.h.b16 %v746
    %v2747 = vunpack.c.l.b16 %v747
    %v2748 = vunpack.c.h.b16 %v747
    %v2749 = vunpack.c.l.b16 %v748
    %v2750 = vunpack.c.h.b16 %v748
    %v2751 = vunpack.c.l.b16 %v749
    %v2752 = vunpack.c.h.b16 %v749
    %v2753 = vunpack.c.l.b16 %v750
    %v2754 = vunpack.c.h.b16 %v750
    %v2755 = vunpack.c.l.b16 %v751
    %v2756 = vunpack.c.h.b16 %v751
    %v2757 = vunpack.c.l.b16 %v752
    %v2758 = vunpack.c.h.b16 %v752
    %v2759 = vunpack.c.l.b16 %v753
    %v2760 = vunpack.c.h.b16 %v753
    %v2761 = vunpack.c.l.b16 %v754
    %v2762 = vunpack.c.h.b16 %v754
    %v2763 = vunpack.c.l.b16 %v755
    %v2764 = vunpack.c.h.b16 %v755
    %v2765 = vunpack.c.l.b16 %v756
    %v2766 = vunpack.c.h.b16 %v756
    %v2767 = vunpack.c.l.b16 %v757
    %v2768 = vunpack.c.h.b16 %v757
    %v2769 = vunpack.c.l.b16 %v758
    %v2770 = vunpack.c.h.b16 %v758
    %v2771 = vunpack.c.l.b16 %v759
    %v2772 = vunpack.c.h.b16 %v759
    %v2773 = vunpack.c.l.b16 %v760
    %v2774 = vunpack.c.h.b16 %v760
    %v2775 = vunpack.c.l.b16 %v761
    %v2776 = vunpack.c.h.b16 %v761
    %v2777 = vunpack.c.l.b16 %v762
    %v2778 = vunpack.c.h.b16 %v762
    %v2779 = vunpack.c.l.b16 %v763
    %v2780 = vunpack.c.h.b16 %v763
    %v2781 = vunpack.c.l.b16 %v764
    %v2782 = vunpack.c.h.b16 %v764
    %v2783 = vunpack.c.l.b16 %v765
    %v2784 = vunpack.c.h.b16 %v765
    %v2785 = vunpack.c.l.b16 %v766
    %v2786 = vunpack.c.h.b16 %v766
    %v2787 = vunpack.c.l.b16 %v767
    %v2788 = vunpack.c.h.b16 %v767
    %v2789 = vunpack.c.l.b16 %v768
    %v2790 = vunpack.c.h.b16 %v768
    %v2791 = vunpack.c.l.b16 %v769
    %v2792 = vunpack.c.h.b16 %v769
    %v2793 = vunpack.c.l.b16 %v770
    %v2794 = vunpack.c.h.b16 %v770
    %v2795 = vunpack.c.l.b16 %v771
    %v2796 = vunpack.c.h.b16 %v771
    %v2797 = vunpack.c.l.b16 %v772
    %v2798 = vunpack.c.h.b16 %v772
    %v2799 = vunpack.c.l.b16 %v773
    %v2800 = vunpack.c.h.b16 %v773
    %v2801 = vunpack.c.l.b16 %v774
    %v2802 = vunpack.c.h.b16 %v774
    %v2803 = vunpack.c.l.b16 %v775
    %v2804 = vunpack.c.h.b16 %v775
    %v2805 = vunpack.c.l.b16 %v776
    %v2806 = vunpack.c.h.b16 %v776
    %v2807 = vunpack.c.l.b16 %v777
    %v2808 = vunpack.c.h.b16 %v777
    %v2809 = vunpack.c.l.b16 %v778
    %v2810 = vunpack.c.h.b16 %v778
    %v2811 = vunpack.c.l.b16 %v779
    %v2812 = vunpack.c.h.b16 %v779
    %v2813 = vunpack.c.l.b16 %v780
    %v2814 = vunpack.c.h.b16 %v780
    %v2815 = vunpack.c.l.b16 %v781
    %v2816 = vunpack.c.h.b16 %v781
    %v2817 = vunpack.c.l.b16 %v782
    %v2818 = vunpack.c.h.b16 %v782
    %v2819 = vunpack.c.l.b16 %v783
    %v2820 = vunpack.c.h.b16 %v783
    %v2821 = vunpack.c.l.b16 %v784
    %v2822 = vunpack.c.h.b16 %v784
    %v2823 = vunpack.c.l.b16 %v785
    %v2824 = vunpack.c.h.b16 %v785
    %v2825 = vunpack.c.l.b16 %v786
    %v2826 = vunpack.c.h.b16 %v786
    %v2827 = vunpack.c.l.b16 %v787
    %v2828 = vunpack.c.h.b16 %v787
    %v2829 = vunpack.c.l.b16 %v788
    %v2830 = vunpack.c.h.b16 %v788
    %v2831 = vunpack.c.l.b16 %v789
    %v2832 = vunpack.c.h.b16 %v789
    %v2833 = vunpack.c.l.b16 %v790
    %v2834 = vunpack.c.h.b16 %v790
    %v2835 = vunpack.c.l.b16 %v791
    %v2836 = vunpack.c.h.b16 %v791
    %v2837 = vunpack.c.l.b16 %v792
    %v2838 = vunpack.c.h.b16 %v792
    %v2839 = vunpack.c.l.b16 %v793
    %v2840 = vunpack.c.h.b16 %v793
    %v2841 = vunpack.c.l.b16 %v794
    %v2842 = vunpack.c.h.b16 %v794
    %v2843 = vunpack.c.l.b16 %v795
    %v2844 = vunpack.c.h.b16 %v795
    %v2845 = vunpack.c.l.b16 %v796
    %v2846 = vunpack.c.h.b16 %v796
    %v2847 = vunpack.c.l.b16 %v797
    %v2848 = vunpack.c.h.b16 %v797
    %v2849 = vunpack.c.l.b16 %v798
    %v2850 = vunpack.c.h.b16 %v798
    %v2851 = vunpack.c.l.b16 %v799
    %v2852 = vunpack.c.h.b16 %v799
    %v2853 = vunpack.c.l.b16 %v800
    %v2854 = vunpack.c.h.b16 %v800
    %v2855 = vunpack.c.l.b16 %v801
    %v2856 = vunpack.c.h.b16 %v801
    %v2857 = vunpack.c.l.b16 %v802
    %v2858 = vunpack.c.h.b16 %v802
    %v2859 = vunpack.c.l.b16 %v803
    %v2860 = vunpack.c.h.b16 %v803
    %v2861 = vunpack.c.l.b16 %v804
    %v2862 = vunpack.c.h.b16 %v804
    %v2863 = vunpack.c.l.b16 %v805
    %v2864 = vunpack.c.h.b16 %v805
    %v2865 = vunpack.c.l.b16 %v806
    %v2866 = vunpack.c.h.b16 %v806
    %v2867 = vunpack.c.l.b16 %v807
    %v2868 = vunpack.c.h.b16 %v807
    %v2869 = vunpack.c.l.b16 %v808
    %v2870 = vunpack.c.h.b16 %v808
    %v2871 = vunpack.c.l.b16 %v809
    %v2872 = vunpack.c.h.b16 %v809
    %v2873 = vunpack.c.l.b16 %v810
    %v2874 = vunpack.c.h.b16 %v810
    %v2875 = vunpack.c.l.b16 %v811
    %v2876 = vunpack.c.h.b16 %v811
    %v2877 = vunpack.c.l.b16 %v812
    %v2878 = vunpack.c.h.b16 %v812
    %v2879 = vunpack.c.l.b16 %v813
    %v2880 = vunpack.c.h.b16 %v813
    %v2881 = vunpack.c.l.b16 %v814
    %v2882 = vunpack.c.h.b16 %v814
    %v2883 = vunpack.c.l.b16 %v815
    %v2884 = vunpack.c.h.b16 %v815
    %v2885 = vunpack.c.l.b16 %v816
    %v2886 = vunpack.c.h.b16 %v816
    %v2887 = vunpack.c.l.b16 %v817
    %v2888 = vunpack.c.h.b16 %v817
    %v2889 = vunpack.c.l.b16 %v818
    %v2890 = vunpack.c.h.b16 %v818
    %v2891 = vunpack.c.l.b16 %v819
    %v2892 = vunpack.c.h.b16 %v819
    %v2893 = vunpack.c.l.b16 %v820
    %v2894 = vunpack.c.h.b16 %v820
    %v2895 = vunpack.c.l.b16 %v821
    %v2896 = vunpack.c.h.b16 %v821
    %v2897 = vunpack.c.l.b16 %v822
    %v2898 = vunpack.c.h.b16 %v822
    %v2899 = vunpack.c.l.b16 %v823
    %v2900 = vunpack.c.h.b16 %v823
    %v2901 = vunpack.c.l.b16 %v824
    %v2902 = vunpack.c.h.b16 %v824
    %v2903 = vunpack.c.l.b16 %v825
    %v2904 = vunpack.c.h.b16 %v825
    %v2905 = vunpack.c.l.b16 %v826
    %v2906 = vunpack.c.h.b16 %v826
    %v2907 = vunpack.c.l.b16 %v827
    %v2908 = vunpack.c.h.b16 %v827
    %v2909 = vunpack.c.l.b16 %v828
    %v2910 = vunpack.c.h.b16 %v828
    %v2911 = vunpack.c.l.b16 %v829
    %v2912 = vunpack.c.h.b16 %v829
    %v2913 = vunpack.c.l.b16 %v830
    %v2914 = vunpack.c.h.b16 %v830
    %v2915 = vunpack.c.l.b16 %v831
    %v2916 = vunpack.c.h.b16 %v831
    %v2917 = vunpack.c.l.b16 %v832
    %v2918 = vunpack.c.h.b16 %v832
    %v2919 = vunpack.c.l.b16 %v833
    %v2920 = vunpack.c.h.b16 %v833
    %v2921 = vunpack.c.l.b16 %v834
    %v2922 = vunpack.c.h.b16 %v834
    %v2923 = vunpack.c.l.b16 %v835
    %v2924 = vunpack.c.h.b16 %v835
    %v2925 = vunpack.c.l.b16 %v836
    %v2926 = vunpack.c.h.b16 %v836
    %v2927 = vunpack.c.l.b16 %v837
    %v2928 = vunpack.c.h.b16 %v837
    %v2929 = vunpack.c.l.b16 %v838
    %v2930 = vunpack.c.h.b16 %v838
    %v2931 = vunpack.c.l.b16 %v839
    %v2932 = vunpack.c.h.b16 %v839
    %v2933 = vunpack.c.l.b16 %v840
    %v2934 = vunpack.c.h.b16 %v840
    %v2935 = vunpack.c.l.b16 %v841
    %v2936 = vunpack.c.h.b16 %v841
    %v2937 = vunpack.c.l.b16 %v842
    %v2938 = vunpack.c.h.b16 %v842
    %v2939 = vunpack.c.l.b16 %v843
    %v2940 = vunpack.c.h.b16 %v843
    %v2941 = vunpack.c.l.b16 %v844
    %v2942 = vunpack.c.h.b16 %v844
    %v2943 = vunpack.c.l.b16 %v845
    %v2944 = vunpack.c.h.b16 %v845
    %v2945 = vunpack.c.l.b16 %v846
    %v2946 = vunpack.c.h.b16 %v846
    %v2947 = vunpack.c.l.b16 %v847
    %v2948 = vunpack.c.h.b16 %v847
    %v2949 = vunpack.c.l.b16 %v848
    %v2950 = vunpack.c.h.b16 %v848
    %v2951 = vunpack.c.l.b16 %v849
    %v2952 = vunpack.c.h.b16 %v849
    %v2953 = vunpack.c.l.b16 %v850
    %v2954 = vunpack.c.h.b16 %v850
    %v2955 = vunpack.c.l.b16 %v851
    %v2956 = vunpack.c.h.b16 %v851
    %v2957 = vunpack.c.l.b16 %v852
    %v2958 = vunpack.c.h.b16 %v852
    %v2959 = vunpack.c.l.b16 %v853
    %v2960 = vunpack.c.h.b16 %v853
    %v2961 = vunpack.c.l.b16 %v854
    %v2962 = vunpack.c.h.b16 %v854
    %v2963 = vunpack.c.l.b16 %v855
    %v2964 = vunpack.c.h.b16 %v855
    %v2965 = vunpack.c.l.b16 %v856
    %v2966 = vunpack.c.h.b16 %v856
    %v2967 = vunpack.c.l.b16 %v857
    %v2968 = vunpack.c.h.b16 %v857
    %v2969 = vunpack.c.l.b16 %v858
    %v2970 = vunpack.c.h.b16 %v858
    %v2971 = vunpack.c.l.b16 %v859
    %v2972 = vunpack.c.h.b16 %v859
    %v2973 = vunpack.c.l.b16 %v860
    %v2974 = vunpack.c.h.b16 %v860
    %v2975 = vunpack.c.l.b16 %v861
    %v2976 = vunpack.c.h.b16 %v861
    %v2977 = vunpack.c.l.b16 %v862
    %v2978 = vunpack.c.h.b16 %v862
    %v2979 = vunpack.c.l.b16 %v863
    %v2980 = vunpack.c.h.b16 %v863
    %v2981 = vunpack.c.l.b16 %v864
    %v2982 = vunpack.c.h.b16 %v864
    %v2983 = vunpack.c.l.b16 %v865
    %v2984 = vunpack.c.h.b16 %v865
    %v2985 = vunpack.c.l.b16 %v866
    %v2986 = vunpack.c.h.b16 %v866
    %v2987 = vunpack.c.l.b16 %v867
    %v2988 = vunpack.c.h.b16 %v867
    %v2989 = vunpack.c.l.b16 %v868
    %v2990 = vunpack.c.h.b16 %v868
    %v2991 = vunpack.c.l.b16 %v869
    %v2992 = vunpack.c.h.b16 %v869
    %v2993 = vunpack.c.l.b16 %v870
    %v2994 = vunpack.c.h.b16 %v870
    %v2995 = vunpack.c.l.b16 %v871
    %v2996 = vunpack.c.h.b16 %v871
    %v2997 = vunpack.c.l.b16 %v872
    %v2998 = vunpack.c.h.b16 %v872
    %v2999 = vunpack.c.l.b16 %v873
    %v3000 = vunpack.c.h.b16 %v873
    %v3001 = vunpack.c.l.b16 %v874
    %v3002 = vunpack.c.h.b16 %v874
    %v3003 = vunpack.c.l.b16 %v875
    %v3004 = vunpack.c.h.b16 %v875
    %v3005 = vunpack.c.l.b16 %v876
    %v3006 = vunpack.c.h.b16 %v876
    %v3007 = vunpack.c.l.b16 %v877
    %v3008 = vunpack.c.h.b16 %v877
    %v3009 = vunpack.c.l.b16 %v878
    %v3010 = vunpack.c.h.b16 %v878
    %v3011 = vunpack.c.l.b16 %v879
    %v3012 = vunpack.c.h.b16 %v879
    %v3013 = vunpack.c.l.b16 %v880
    %v3014 = vunpack.c.h.b16 %v880
    %v3015 = vunpack.c.l.b16 %v881
    %v3016 = vunpack.c.h.b16 %v881
    %v3017 = vunpack.c.l.b16 %v882
    %v3018 = vunpack.c.h.b16 %v882
    %v3019 = vunpack.c.l.b16 %v883
    %v3020 = vunpack.c.h.b16 %v883
    %v3021 = vunpack.c.l.b16 %v884
    %v3022 = vunpack.c.h.b16 %v884
    %v3023 = vunpack.c.l.b16 %v885
    %v3024 = vunpack.c.h.b16 %v885
    %v3025 = vunpack.c.l.b16 %v886
    %v3026 = vunpack.c.h.b16 %v886
    %v3027 = vunpack.c.l.b16 %v887
    %v3028 = vunpack.c.h.b16 %v887
    %v3029 = vunpack.c.l.b16 %v888
    %v3030 = vunpack.c.h.b16 %v888
    %v3031 = vunpack.c.l.b16 %v889
    %v3032 = vunpack.c.h.b16 %v889
    %v3033 = vunpack.c.l.b16 %v890
    %v3034 = vunpack.c.h.b16 %v890
    %v3035 = vunpack.c.l.b16 %v891
    %v3036 = vunpack.c.h.b16 %v891
    %v3037 = vunpack.c.l.b16 %v892
    %v3038 = vunpack.c.h.b16 %v892
    %v3039 = vunpack.c.l.b16 %v893
    %v3040 = vunpack.c.h.b16 %v893
    %v3041 = vunpack.c.l.b16 %v894
    %v3042 = vunpack.c.h.b16 %v894
    %v3043 = vunpack.c.l.b16 %v895
    %v3044 = vunpack.c.h.b16 %v895
    %v3045 = vunpack.c.l.b16 %v896
    %v3046 = vunpack.c.h.b16 %v896
    %v3047 = vunpack.c.l.b16 %v897
    %v3048 = vunpack.c.h.b16 %v897
    %v3049 = vunpack.c.l.b16 %v898
    %v3050 = vunpack.c.h.b16 %v898
    %v3051 = vunpack.c.l.b16 %v899
    %v3052 = vunpack.c.h.b16 %v899
    %v3053 = vunpack.c.l.b16 %v900
    %v3054 = vunpack.c.h.b16 %v900
    %v3055 = vunpack.c.l.b16 %v901
    %v3056 = vunpack.c.h.b16 %v901
    %v3057 = vunpack.c.l.b16 %v902
    %v3058 = vunpack.c.h.b16 %v902
    %v3059 = vunpack.c.l.b16 %v903
    %v3060 = vunpack.c.h.b16 %v903
    %v3061 = vunpack.c.l.b16 %v904
    %v3062 = vunpack.c.h.b16 %v904
    %v3063 = vunpack.c.l.b16 %v905
    %v3064 = vunpack.c.h.b16 %v905
    %v3065 = vunpack.c.l.b16 %v906
    %v3066 = vunpack.c.h.b16 %v906
    %v3067 = vunpack.c.l.b16 %v907
    %v3068 = vunpack.c.h.b16 %v907
    %v3069 = vunpack.c.l.b16 %v908
    %v3070 = vunpack.c.h.b16 %v908
    %v3071 = vunpack.c.l.b16 %v909
    %v3072 = vunpack.c.h.b16 %v909
    %v3073 = vunpack.c.l.b16 %v910
    %v3074 = vunpack.c.h.b16 %v910
    %v3075 = vunpack.c.l.b16 %v911
    %v3076 = vunpack.c.h.b16 %v911
    %v3077 = vunpack.c.l.b16 %v912
    %v3078 = vunpack.c.h.b16 %v912
    %v3079 = vunpack.c.l.b16 %v913
    %v3080 = vunpack.c.h.b16 %v913
    %v3081 = vunpack.c.l.b16 %v914
    %v3082 = vunpack.c.h.b16 %v914
    %v3083 = vunpack.c.l.b16 %v915
    %v3084 = vunpack.c.h.b16 %v915
    %v3085 = vunpack.c.l.b16 %v916
    %v3086 = vunpack.c.h.b16 %v916
    %v3087 = vunpack.c.l.b16 %v917
    %v3088 = vunpack.c.h.b16 %v917
    %v3089 = vunpack.c.l.b16 %v918
    %v3090 = vunpack.c.h.b16 %v918
    %v3091 = vunpack.c.l.b16 %v919
    %v3092 = vunpack.c.h.b16 %v919
    %v3093 = vunpack.c.l.b16 %v920
    %v3094 = vunpack.c.h.b16 %v920
    %v3095 = vunpack.c.l.b16 %v921
    %v3096 = vunpack.c.h.b16 %v921
    %v3097 = vunpack.c.l.b16 %v922
    %v3098 = vunpack.c.h.b16 %v922
    %v3099 = vunpack.c.l.b16 %v923
    %v3100 = vunpack.c.h.b16 %v923
    %v3101 = vunpack.c.l.b16 %v924
    %v3102 = vunpack.c.h.b16 %v924
    %v3103 = vunpack.c.l.b16 %v925
    %v3104 = vunpack.c.h.b16 %v925
    %v3105 = vunpack.c.l.b16 %v926
    %v3106 = vunpack.c.h.b16 %v926
    %v3107 = vunpack.c.l.b16 %v927
    %v3108 = vunpack.c.h.b16 %v927
    %v3109 = vunpack.c.l.b16 %v928
    %v3110 = vunpack.c.h.b16 %v928
    %v3111 = vunpack.c.l.b16 %v929
    %v3112 = vunpack.c.h.b16 %v929
    %v3113 = vunpack.c.l.b16 %v930
    %v3114 = vunpack.c.h.b16 %v930
    %v3115 = vunpack.c.l.b16 %v931
    %v3116 = vunpack.c.h.b16 %v931
    %v3117 = vunpack.c.l.b16 %v932
    %v3118 = vunpack.c.h.b16 %v932
    %v3119 = vunpack.c.l.b16 %v933
    %v3120 = vunpack.c.h.b16 %v933
    %v3121 = vunpack.c.l.b16 %v934
    %v3122 = vunpack.c.h.b16 %v934
    %v3123 = vunpack.c.l.b16 %v935
    %v3124 = vunpack.c.h.b16 %v935
    %v3125 = vunpack.c.l.b16 %v936
    %v3126 = vunpack.c.h.b16 %v936
    %v3127 = vunpack.c.l.b16 %v937
    %v3128 = vunpack.c.h.b16 %v937
    %v3129 = vunpack.c.l.b16 %v938
    %v3130 = vunpack.c.h.b16 %v938
    %v3131 = vunpack.c.l.b16 %v939
    %v3132 = vunpack.c.h.b16 %v939
    %v3133 = vunpack.c.l.b16 %v940
    %v3134 = vunpack.c.h.b16 %v940
    %v3135 = vunpack.c.l.b16 %v941
    %v3136 = vunpack.c.h.b16 %v941
    %v3137 = vunpack.c.l.b16 %v942
    %v3138 = vunpack.c.h.b16 %v942
    %v3139 = vunpack.c.l.b16 %v943
    %v3140 = vunpack.c.h.b16 %v943
    %v3141 = vunpack.c.l.b16 %v944
    %v3142 = vunpack.c.h.b16 %v944
    %v3143 = vunpack.c.l.b16 %v945
    %v3144 = vunpack.c.h.b16 %v945
    %v3145 = vunpack.c.l.b16 %v946
    %v3146 = vunpack.c.h.b16 %v946
    %v3147 = vunpack.c.l.b16 %v947
    %v3148 = vunpack.c.h.b16 %v947
    %v3149 = vunpack.c.l.b16 %v948
    %v3150 = vunpack.c.h.b16 %v948
    %v3151 = vunpack.c.l.b16 %v949
    %v3152 = vunpack.c.h.b16 %v949
    %v3153 = vunpack.c.l.b16 %v950
    %v3154 = vunpack.c.h.b16 %v950
    %v3155 = vunpack.c.l.b16 %v951
    %v3156 = vunpack.c.h.b16 %v951
    %v3157 = vunpack.c.l.b16 %v952
    %v3158 = vunpack.c.h.b16 %v952
    %v3159 = vunpack.c.l.b16 %v953
    %v3160 = vunpack.c.h.b16 %v953
    %v3161 = vunpack.c.l.b16 %v954
    %v3162 = vunpack.c.h.b16 %v954
    %v3163 = vunpack.c.l.b16 %v955
    %v3164 = vunpack.c.h.b16 %v955
    %v3165 = vunpack.c.l.b16 %v956
    %v3166 = vunpack.c.h.b16 %v956
    %v3167 = vunpack.c.l.b16 %v957
    %v3168 = vunpack.c.h.b16 %v957
    %v3169 = vunpack.c.l.b16 %v958
    %v3170 = vunpack.c.h.b16 %v958
    %v3171 = vunpack.c.l.b16 %v959
    %v3172 = vunpack.c.h.b16 %v959
    %v3173 = vunpack.c.l.b16 %v960
    %v3174 = vunpack.c.h.b16 %v960
    %v3175 = vunpack.c.l.b16 %v961
    %v3176 = vunpack.c.h.b16 %v961
    %v3177 = vunpack.c.l.b16 %v962
    %v3178 = vunpack.c.h.b16 %v962
    %v3179 = vunpack.c.l.b16 %v963
    %v3180 = vunpack.c.h.b16 %v963
    %v3181 = vunpack.c.l.b16 %v964
    %v3182 = vunpack.c.h.b16 %v964
    %v3183 = vunpack.c.l.b16 %v965
    %v3184 = vunpack.c.h.b16 %v965
    %v3185 = vunpack.c.l.b16 %v966
    %v3186 = vunpack.c.h.b16 %v966
    %v3187 = vunpack.c.l.b16 %v967
    %v3188 = vunpack.c.h.b16 %v967
    %v3189 = vunpack.c.l.b16 %v968
    %v3190 = vunpack.c.h.b16 %v968
    %v3191 = vunpack.c.l.b16 %v969
    %v3192 = vunpack.c.h.b16 %v969
    %v3193 = vunpack.c.l.b16 %v970
    %v3194 = vunpack.c.h.b16 %v970
    %v3195 = vunpack.c.l.b16 %v971
    %v3196 = vunpack.c.h.b16 %v971
    %v3197 = vunpack.c.l.b16 %v972
    %v3198 = vunpack.c.h.b16 %v972
    %v3199 = vunpack.c.l.b16 %v973
    %v3200 = vunpack.c.h.b16 %v973
    %v3201 = vunpack.c.l.b16 %v974
    %v3202 = vunpack.c.h.b16 %v974
    %v3203 = vunpack.c.l.b16 %v975
    %v3204 = vunpack.c.h.b16 %v975
    %v3205 = vunpack.c.l.b16 %v976
    %v3206 = vunpack.c.h.b16 %v976
    %v3207 = vunpack.c.l.b16 %v977
    %v3208 = vunpack.c.h.b16 %v977
    %v3209 = vunpack.c.l.b16 %v978
    %v3210 = vunpack.c.h.b16 %v978
    %v3211 = vunpack.c.l.b16 %v979
    %v3212 = vunpack.c.h.b16 %v979
    %v3213 = vunpack.c.l.b16 %v980
    %v3214 = vunpack.c.h.b16 %v980
    %v3215 = vunpack.c.l.b16 %v981
    %v3216 = vunpack.c.h.b16 %v981
    %v3217 = vunpack.c.l.b16 %v982
    %v3218 = vunpack.c.h.b16 %v982
    %v3219 = vunpack.c.l.b16 %v983
    %v3220 = vunpack.c.h.b16 %v983
    %v3221 = vunpack.c.l.b16 %v984
    %v3222 = vunpack.c.h.b16 %v984
    %v3223 = vunpack.c.l.b16 %v985
    %v3224 = vunpack.c.h.b16 %v985
    %v3225 = vunpack.c.l.b16 %v986
    %v3226 = vunpack.c.h.b16 %v986
    %v3227 = vunpack.c.l.b16 %v987
    %v3228 = vunpack.c.h.b16 %v987
    %v3229 = vunpack.c.l.b16 %v988
    %v3230 = vunpack.c.h.b16 %v988
    %v3231 = vunpack.c.l.b16 %v989
    %v3232 = vunpack.c.h.b16 %v989
    %v3233 = vunpack.c.l.b16 %v990
    %v3234 = vunpack.c.h.b16 %v990
    %v3235 = vunpack.c.l.b16 %v991
    %v3236 = vunpack.c.h.b16 %v991
    %v3237 = vunpack.c.l.b16 %v992
    %v3238 = vunpack.c.h.b16 %v992
    %v3239 = vunpack.c.l.b16 %v993
    %v3240 = vunpack.c.h.b16 %v993
    %v3241 = vunpack.c.l.b16 %v994
    %v3242 = vunpack.c.h.b16 %v994
    %v3243 = vunpack.c.l.b16 %v995
    %v3244 = vunpack.c.h.b16 %v995
    %v3245 = vunpack.c.l.b16 %v996
    %v3246 = vunpack.c.h.b16 %v996
    %v3247 = vunpack.c.l.b16 %v997
    %v3248 = vunpack.c.h.b16 %v997
    %v3249 = vunpack.c.l.b16 %v998
    %v3250 = vunpack.c.h.b16 %v998
    %v3251 = vunpack.c.l.b16 %v999
    %v3252 = vunpack.c.h.b16 %v999
    %v3253 = vunpack.c.l.b16 %v1000
    %v3254 = vunpack.c.h.b16 %v1000
    %v3255 = vunpack.c.l.b16 %v1001
    %v3256 = vunpack.c.h.b16 %v1001
    %v3257 = vunpack.c.l.b16 %v1002
    %v3258 = vunpack.c.h.b16 %v1002
    %v3259 = vunpack.c.l.b16 %v1003
    %v3260 = vunpack.c.h.b16 %v1003
    %v3261 = vunpack.c.l.b16 %v1004
    %v3262 = vunpack.c.h.b16 %v1004
    %v3263 = vunpack.c.l.b16 %v1005
    %v3264 = vunpack.c.h.b16 %v1005
    %v3265 = vunpack.c.l.b16 %v1006
    %v3266 = vunpack.c.h.b16 %v1006
    %v3267 = vunpack.c.l.b16 %v1007
    %v3268 = vunpack.c.h.b16 %v1007
    %v3269 = vunpack.c.l.b16 %v1008
    %v3270 = vunpack.c.h.b16 %v1008
    %v3271 = vunpack.c.l.b16 %v1009
    %v3272 = vunpack.c.h.b16 %v1009
    %v3273 = vunpack.c.l.b16 %v1010
    %v3274 = vunpack.c.h.b16 %v1010
    %v3275 = vunpack.c.l.b16 %v1011
    %v3276 = vunpack.c.h.b16 %v1011
    %v3277 = vunpack.c.l.b16 %v1012
    %v3278 = vunpack.c.h.b16 %v1012
    %v3279 = vunpack.c.l.b16 %v1013
    %v3280 = vunpack.c.h.b16 %v1013
    %v3281 = vunpack.c.l.b16 %v1014
    %v3282 = vunpack.c.h.b16 %v1014
    %v3283 = vunpack.c.l.b16 %v1015
    %v3284 = vunpack.c.h.b16 %v1015
    %v3285 = vunpack.c.l.b16 %v1016
    %v3286 = vunpack.c.h.b16 %v1016
    %v3287 = vunpack.c.l.b16 %v1017
    %v3288 = vunpack.c.h.b16 %v1017
    %v3289 = vunpack.c.l.b16 %v1018
    %v3290 = vunpack.c.h.b16 %v1018
    %v3291 = vunpack.c.l.b16 %v1019
    %v3292 = vunpack.c.h.b16 %v1019
    %v3293 = vunpack.c.l.b16 %v1020
    %v3294 = vunpack.c.h.b16 %v1020
    %v3295 = vunpack.c.l.b16 %v1021
    %v3296 = vunpack.c.h.b16 %v1021
    %v3297 = vunpack.c.l.b16 %v1022
    %v3298 = vunpack.c.h.b16 %v1022
    %v3299 = vunpack.c.l.b16 %v1023
    %v3300 = vunpack.c.h.b16 %v1023
    %v3301 = vunpack.c.l.b16 %v1024
    %v3302 = vunpack.c.h.b16 %v1024
    %v3303 = vunpack.c.l.b16 %v1025
    %v3304 = vunpack.c.h.b16 %v1025
    %v3305 = vunpack.c.l.b16 %v1026
    %v3306 = vunpack.c.h.b16 %v1026
    %v3307 = vunpack.c.l.b16 %v1027
    %v3308 = vunpack.c.h.b16 %v1027
    %v3309 = vunpack.c.l.b16 %v1028
    %v3310 = vunpack.c.h.b16 %v1028
    %v3311 = vunpack.c.l.b16 %v1029
    %v3312 = vunpack.c.h.b16 %v1029
    %v3313 = vunpack.c.l.b16 %v1030
    %v3314 = vunpack.c.h.b16 %v1030
    %v3315 = vunpack.c.l.b16 %v1031
    %v3316 = vunpack.c.h.b16 %v1031
    %v3317 = vunpack.c.l.b16 %v1032
    %v3318 = vunpack.c.h.b16 %v1032
    %v3319 = vunpack.c.l.b16 %v1033
    %v3320 = vunpack.c.h.b16 %v1033
    %v3321 = vunpack.c.l.b16 %v1034
    %v3322 = vunpack.c.h.b16 %v1034
    %v3323 = vunpack.c.l.b16 %v1035
    %v3324 = vunpack.c.h.b16 %v1035
    %v3325 = vunpack.c.l.b16 %v1036
    %v3326 = vunpack.c.h.b16 %v1036
    %v3327 = vunpack.c.l.b16 %v1037
    %v3328 = vunpack.c.h.b16 %v1037
    %v3329 = vunpack.c.l.b16 %v1038
    %v3330 = vunpack.c.h.b16 %v1038
    %v3331 = vunpack.c.l.b16 %v1039
    %v3332 = vunpack.c.h.b16 %v1039
    %v3333 = vunpack.c.l.b16 %v1040
    %v3334 = vunpack.c.h.b16 %v1040
    %v3335 = vunpack.c.l.b16 %v1041
    %v3336 = vunpack.c.h.b16 %v1041
    %v3337 = vunpack.c.l.b16 %v1042
    %v3338 = vunpack.c.h.b16 %v1042
    %v3339 = vunpack.c.l.b16 %v1043
    %v3340 = vunpack.c.h.b16 %v1043
    %v3341 = vunpack.c.l.b16 %v1044
    %v3342 = vunpack.c.h.b16 %v1044
    %v3343 = vunpack.c.l.b16 %v1045
    %v3344 = vunpack.c.h.b16 %v1045
    %v3345 = vunpack.c.l.b16 %v1046
    %v3346 = vunpack.c.h.b16 %v1046
    %v3347 = vunpack.c.l.b16 %v1047
    %v3348 = vunpack.c.h.b16 %v1047
    %v3349 = vunpack.c.l.b16 %v1048
    %v3350 = vunpack.c.h.b16 %v1048
    %v3351 = vunpack.c.l.b16 %v1049
    %v3352 = vunpack.c.h.b16 %v1049
    %v3353 = vunpack.c.l.b16 %v1050
    %v3354 = vunpack.c.h.b16 %v1050
    %v3355 = vunpack.c.l.b16 %v1051
    %v3356 = vunpack.c.h.b16 %v1051
    %v3357 = vunpack.c.l.b16 %v1052
    %v3358 = vunpack.c.h.b16 %v1052
    %v3359 = vunpack.c.l.b16 %v1053
    %v3360 = vunpack.c.h.b16 %v1053
    %v3361 = vunpack.c.l.b16 %v1054
    %v3362 = vunpack.c.h.b16 %v1054
    %v3363 = vunpack.c.l.b16 %v1055
    %v3364 = vunpack.c.h.b16 %v1055
    %v3365 = vunpack.c.l.b16 %v1056
    %v3366 = vunpack.c.h.b16 %v1056
    %v3367 = vunpack.c.l.b16 %v1057
    %v3368 = vunpack.c.h.b16 %v1057
    %v3369 = vunpack.c.l.b16 %v1058
    %v3370 = vunpack.c.h.b16 %v1058
    %v3371 = vunpack.c.l.b16 %v1059
    %v3372 = vunpack.c.h.b16 %v1059
    %v3373 = vunpack.c.l.b16 %v1060
    %v3374 = vunpack.c.h.b16 %v1060
    %v3375 = vunpack.c.l.b16 %v1061
    %v3376 = vunpack.c.h.b16 %v1061
    %v3377 = vunpack.c.l.b16 %v1062
    %v3378 = vunpack.c.h.b16 %v1062
    %v3379 = vunpack.c.l.b16 %v1063
    %v3380 = vunpack.c.h.b16 %v1063
    %v3381 = vunpack.c.l.b16 %v1064
    %v3382 = vunpack.c.h.b16 %v1064
    %v3383 = vunpack.c.l.b16 %v1065
    %v3384 = vunpack.c.h.b16 %v1065
    %v3385 = vunpack.c.l.b16 %v1066
    %v3386 = vunpack.c.h.b16 %v1066
    %v3387 = vunpack.c.l.b16 %v1067
    %v3388 = vunpack.c.h.b16 %v1067
    %v3389 = vunpack.c.l.b16 %v1068
    %v3390 = vunpack.c.h.b16 %v1068
    %v3391 = vunpack.c.l.b16 %v1069
    %v3392 = vunpack.c.h.b16 %v1069
    %v3393 = vunpack.c.l.b16 %v1070
    %v3394 = vunpack.c.h.b16 %v1070
    %v3395 = vunpack.c.l.b16 %v1071
    %v3396 = vunpack.c.h.b16 %v1071
    %v3397 = vunpack.c.l.b16 %v1072
    %v3398 = vunpack.c.h.b16 %v1072
    %v3399 = vunpack.c.l.b16 %v1073
    %v3400 = vunpack.c.h.b16 %v1073
    %v3401 = vunpack.c.l.b16 %v1074
    %v3402 = vunpack.c.h.b16 %v1074
    %v3403 = vunpack.c.l.b16 %v1075
    %v3404 = vunpack.c.h.b16 %v1075
    %v3405 = vunpack.c.l.b16 %v1076
    %v3406 = vunpack.c.h.b16 %v1076
    %v3407 = vunpack.c.l.b16 %v1077
    %v3408 = vunpack.c.h.b16 %v1077
    %v3409 = vunpack.c.l.b16 %v1078
    %v3410 = vunpack.c.h.b16 %v1078
    %v3411 = vunpack.c.l.b16 %v1079
    %v3412 = vunpack.c.h.b16 %v1079
    %v3413 = vunpack.c.l.b16 %v1080
    %v3414 = vunpack.c.h.b16 %v1080
    %v3415 = vunpack.c.l.b16 %v1081
    %v3416 = vunpack.c.h.b16 %v1081
    %v3417 = vunpack.c.l.b16 %v1082
    %v3418 = vunpack.c.h.b16 %v1082
    %v3419 = vunpack.c.l.b16 %v1083
    %v3420 = vunpack.c.h.b16 %v1083
    %v3421 = vunpack.c.l.b16 %v1084
    %v3422 = vunpack.c.h.b16 %v1084
    %v3423 = vunpack.c.l.b16 %v1085
    %v3424 = vunpack.c.h.b16 %v1085
    %v3425 = vunpack.c.l.b16 %v1086
    %v3426 = vunpack.c.h.b16 %v1086
    %v3427 = vunpack.c.l.b16 %v1087
    %v3428 = vunpack.c.h.b16 %v1087
    %v3429 = vunpack.c.l.b16 %v1088
    %v3430 = vunpack.c.h.b16 %v1088
    %v3431 = vunpack.c.l.b16 %v1089
    %v3432 = vunpack.c.h.b16 %v1089
    %v3433 = vunpack.c.l.b16 %v1090
    %v3434 = vunpack.c.h.b16 %v1090
    %v3435 = vunpack.c.l.b16 %v1091
    %v3436 = vunpack.c.h.b16 %v1091
    %v3437 = vunpack.c.l.b16 %v1092
    %v3438 = vunpack.c.h.b16 %v1092
    %v3439 = vunpack.c.l.b16 %v1093
    %v3440 = vunpack.c.h.b16 %v1093
    %v3441 = vunpack.c.l.b16 %v1094
    %v3442 = vunpack.c.h.b16 %v1094
    %v3443 = vunpack.c.l.b16 %v1095
    %v3444 = vunpack.c.h.b16 %v1095
    %v3445 = vunpack.c.l.b16 %v1096
    %v3446 = vunpack.c.h.b16 %v1096
    %v3447 = vunpack.c.l.b16 %v1097
    %v3448 = vunpack.c.h.b16 %v1097
    %v3449 = vunpack.c.l.b16 %v1098
    %v3450 = vunpack.c.h.b16 %v1098
    %v3451 = vunpack.c.l.b16 %v1099
    %v3452 = vunpack.c.h.b16 %v1099
    %v3453 = vunpack.c.l.b16 %v1100
    %v3454 = vunpack.c.h.b16 %v1100
    %v3455 = vunpack.c.l.b16 %v1101
    %v3456 = vunpack.c.h.b16 %v1101
    %v3457 = vunpack.c.l.b16 %v1102
    %v3458 = vunpack.c.h.b16 %v1102
    %v3459 = vunpack.c.l.b16 %v1103
    %v3460 = vunpack.c.h.b16 %v1103
    %v3461 = vunpack.c.l.b16 %v1104
    %v3462 = vunpack.c.h.b16 %v1104
    %v3463 = vunpack.c.l.b16 %v1105
    %v3464 = vunpack.c.h.b16 %v1105
    %v3465 = vunpack.c.l.b16 %v1106
    %v3466 = vunpack.c.h.b16 %v1106
    %v3467 = vunpack.c.l.b16 %v1107
    %v3468 = vunpack.c.h.b16 %v1107
    %v3469 = vunpack.c.l.b16 %v1108
    %v3470 = vunpack.c.h.b16 %v1108
    %v3471 = vunpack.c.l.b16 %v1109
    %v3472 = vunpack.c.h.b16 %v1109
    %v3473 = vunpack.c.l.b16 %v1110
    %v3474 = vunpack.c.h.b16 %v1110
    %v3475 = vunpack.c.l.b16 %v1111
    %v3476 = vunpack.c.h.b16 %v1111
    %v3477 = vunpack.c.l.b16 %v1112
    %v3478 = vunpack.c.h.b16 %v1112
    %v3479 = vunpack.c.l.b16 %v1113
    %v3480 = vunpack.c.h.b16 %v1113
    %v3481 = vunpack.c.l.b16 %v1114
    %v3482 = vunpack.c.h.b16 %v1114
    %v3483 = vunpack.c.l.b16 %v1115
    %v3484 = vunpack.c.h.b16 %v1115
    %v3485 = vunpack.c.l.b16 %v1116
    %v3486 = vunpack.c.h.b16 %v1116
    %v3487 = vunpack.c.l.b16 %v1117
    %v3488 = vunpack.c.h.b16 %v1117
    %v3489 = vunpack.c.l.b16 %v1118
    %v3490 = vunpack.c.h.b16 %v1118
    %v3491 = vunpack.c.l.b16 %v1119
    %v3492 = vunpack.c.h.b16 %v1119
    %v3493 = vunpack.c.l.b16 %v1120
    %v3494 = vunpack.c.h.b16 %v1120
    %v3495 = vunpack.c.l.b16 %v1121
    %v3496 = vunpack.c.h.b16 %v1121
    %v3497 = vunpack.c.l.b16 %v1122
    %v3498 = vunpack.c.h.b16 %v1122
    %v3499 = vunpack.c.l.b16 %v1123
    %v3500 = vunpack.c.h.b16 %v1123
    %v3501 = vunpack.c.l.b16 %v1124
    %v3502 = vunpack.c.h.b16 %v1124
    %v3503 = vunpack.c.l.b16 %v1125
    %v3504 = vunpack.c.h.b16 %v1125
    %v3505 = vunpack.c.l.b16 %v1126
    %v3506 = vunpack.c.h.b16 %v1126
    %v3507 = vunpack.c.l.b16 %v1127
    %v3508 = vunpack.c.h.b16 %v1127
    %v3509 = vunpack.c.l.b16 %v1128
    %v3510 = vunpack.c.h.b16 %v1128
    %v3511 = vunpack.c.l.b16 %v1129
    %v3512 = vunpack.c.h.b16 %v1129
    %v3513 = vunpack.c.l.b16 %v1130
    %v3514 = vunpack.c.h.b16 %v1130
    %v3515 = vunpack.c.l.b16 %v1131
    %v3516 = vunpack.c.h.b16 %v1131
    %v3517 = vunpack.c.l.b16 %v1132
    %v3518 = vunpack.c.h.b16 %v1132
    %v3519 = vunpack.c.l.b16 %v1133
    %v3520 = vunpack.c.h.b16 %v1133
    %v3521 = vunpack.c.l.b16 %v1134
    %v3522 = vunpack.c.h.b16 %v1134
    %v3523 = vunpack.c.l.b16 %v1135
    %v3524 = vunpack.c.h.b16 %v1135
    %v3525 = vunpack.c.l.b16 %v1136
    %v3526 = vunpack.c.h.b16 %v1136
    %v3527 = vunpack.c.l.b16 %v1137
    %v3528 = vunpack.c.h.b16 %v1137
    %v3529 = vunpack.c.l.b16 %v1138
    %v3530 = vunpack.c.h.b16 %v1138
    %v3531 = vunpack.c.l.b16 %v1139
    %v3532 = vunpack.c.h.b16 %v1139
    %v3533 = vunpack.c.l.b16 %v1140
    %v3534 = vunpack.c.h.b16 %v1140
    %v3535 = vunpack.c.l.b16 %v1141
    %v3536 = vunpack.c.h.b16 %v1141
    %v3537 = vunpack.c.l.b16 %v1142
    %v3538 = vunpack.c.h.b16 %v1142
    %v3539 = vunpack.c.l.b16 %v1143
    %v3540 = vunpack.c.h.b16 %v1143
    %v3541 = vunpack.c.l.b16 %v1144
    %v3542 = vunpack.c.h.b16 %v1144
    %v3543 = vunpack.c.l.b16 %v1145
    %v3544 = vunpack.c.h.b16 %v1145
    %v3545 = vunpack.c.l.b16 %v1146
    %v3546 = vunpack.c.h.b16 %v1146
    %v3547 = vunpack.c.l.b16 %v1147
    %v3548 = vunpack.c.h.b16 %v1147
    %v3549 = vunpack.c.l.b16 %v1148
    %v3550 = vunpack.c.h.b16 %v1148
    %v3551 = vunpack.c.l.b16 %v1149
    %v3552 = vunpack.c.h.b16 %v1149
    %v3553 = vunpack.c.l.b16 %v1150
    %v3554 = vunpack.c.h.b16 %v1150
    %v3555 = vunpack.c.l.b16 %v1151
    %v3556 = vunpack.c.h.b16 %v1151
    %v3557 = vunpack.c.l.b16 %v1152
    %v3558 = vunpack.c.h.b16 %v1152
    %v3559 = vunpack.c.l.b16 %v1153
    %v3560 = vunpack.c.h.b16 %v1153
    %v3561 = vunpack.c.l.b16 %v1154
    %v3562 = vunpack.c.h.b16 %v1154
    %v3563 = vunpack.c.l.b16 %v1155
    %v3564 = vunpack.c.h.b16 %v1155
    %v3565 = vunpack.c.l.b16 %v1156
    %v3566 = vunpack.c.h.b16 %v1156
    %v3567 = vunpack.c.l.b16 %v1157
    %v3568 = vunpack.c.h.b16 %v1157
    %v3569 = vunpack.c.l.b16 %v1158
    %v3570 = vunpack.c.h.b16 %v1158
    %v3571 = vpack.c.b16 %v1973, %v1971
    %v3572 = vpack.c.b16 %v1974, %v1972
    %v3573 = vpack.c.b16 %v1977, %v1975
    %v3574 = vpack.c.b16 %v1978, %v1976
    %v3575 = vpack.c.b16 %v1981, %v1979
    %v3576 = vpack.c.b16 %v1982, %v1980
    %v3577 = vpack.c.b16 %v1985, %v1983
    %v3578 = vpack.c.b16 %v1986, %v1984
    %v3579 = vpack.c.b16 %v1989, %v1987
    %v3580 = vpack.c.b16 %v1990, %v1988
    %v3581 = vpack.c.b16 %v1993, %v1991
    %v3582 = vpack.c.b16 %v1994, %v1992
    %v3583 = vpack.c.b16 %v1997, %v1995
    %v3584 = vpack.c.b16 %v1998, %v1996
    %v3585 = vpack.c.b16 %v2001, %v1999
    %v3586 = vpack.c.b16 %v2002, %v2000
    %v3587 = vpack.c.b16 %v2005, %v2003
    %v3588 = vpack.c.b16 %v2006, %v2004
    %v3589 = vpack.c.b16 %v2009, %v2007
    %v3590 = vpack.c.b16 %v2010, %v2008
    %v3591 = vpack.c.b16 %v2013, %v2011
    %v3592 = vpack.c.b16 %v2014, %v2012
    %v3593 = vpack.c.b16 %v2017, %v2015
    %v3594 = vpack.c.b16 %v2018, %v2016
    %v3595 = vpack.c.b16 %v2021, %v2019
    %v3596 = vpack.c.b16 %v2022, %v2020
    %v3597 = vpack.c.b16 %v2025, %v2023
    %v3598 = vpack.c.b16 %v2026, %v2024
    %v3599 = vpack.c.b16 %v2029, %v2027
    %v3600 = vpack.c.b16 %v2030, %v2028
    %v3601 = vpack.c.b16 %v2033, %v2031
    %v3602 = vpack.c.b16 %v2034, %v2032
    %v3603 = vpack.c.b16 %v2037, %v2035
    %v3604 = vpack.c.b16 %v2038, %v2036
    %v3605 = vpack.c.b16 %v2041, %v2039
    %v3606 = vpack.c.b16 %v2042, %v2040
    %v3607 = vpack.c.b16 %v2045, %v2043
    %v3608 = vpack.c.b16 %v2046, %v2044
    %v3609 = vpack.c.b16 %v2049, %v2047
    %v3610 = vpack.c.b16 %v2050, %v2048
    %v3611 = vpack.c.b16 %v2053, %v2051
    %v3612 = vpack.c.b16 %v2054, %v2052
    %v3613 = vpack.c.b16 %v2057, %v2055
    %v3614 = vpack.c.b16 %v2058, %v2056
    %v3615 = vpack.c.b16 %v2061, %v2059
    %v3616 = vpack.c.b16 %v2062, %v2060
    %v3617 = vpack.c.b16 %v2065, %v2063
    %v3618 = vpack.c.b16 %v2066, %v2064
    %v3619 = vpack.c.b16 %v2069, %v2067
    %v3620 = vpack.c.b16 %v2070, %v2068
    %v3621 = vpack.c.b16 %v2073, %v2071
    %v3622 = vpack.c.b16 %v2074, %v2072
    %v3623 = vpack.c.b16 %v2077, %v2075
    %v3624 = vpack.c.b16 %v2078, %v2076
    %v3625 = vpack.c.b16 %v2081, %v2079
    %v3626 = vpack.c.b16 %v2082, %v2080
    %v3627 = vpack.c.b16 %v2085, %v2083
    %v3628 = vpack.c.b16 %v2086, %v2084
    %v3629 = vpack.c.b16 %v2089, %v2087
    %v3630 = vpack.c.b16 %v2090, %v2088
    %v3631 = vpack.c.b16 %v2093, %v2091
    %v3632 = vpack.c.b16 %v2094, %v2092
    %v3633 = vpack.c.b16 %v2097, %v2095
    %v3634 = vpack.c.b16 %v2098, %v2096
    %v3635 = vpack.c.b16 %v2101, %v2099
    %v3636 = vpack.c.b16 %v2102, %v2100
    %v3637 = vpack.c.b16 %v2105, %v2103
    %v3638 = vpack.c.b16 %v2106, %v2104
    %v3639 = vpack.c.b16 %v2109, %v2107
    %v3640 = vpack.c.b16 %v2110, %v2108
    %v3641 = vpack.c.b16 %v2113, %v2111
    %v3642 = vpack.c.b16 %v2114, %v2112
    %v3643 = vpack.c.b16 %v2117, %v2115
    %v3644 = vpack.c.b16 %v2118, %v2116
    %v3645 = vpack.c.b16 %v2121, %v2119
    %v3646 = vpack.c.b16 %v2122, %v2120
    %v3647 = vpack.c.b16 %v2125, %v2123
    %v3648 = vpack.c.b16 %v2126, %v2124
    %v3649 = vpack.c.b16 %v2129, %v2127
    %v3650 = vpack.c.b16 %v2130, %v2128
    %v3651 = vpack.c.b16 %v2133, %v2131
    %v3652 = vpack.c.b16 %v2134, %v2132
    %v3653 = vpack.c.b16 %v2137, %v2135
    %v3654 = vpack.c.b16 %v2138, %v2136
    %v3655 = vpack.c.b16 %v2141, %v2139
    %v3656 = vpack.c.b16 %v2142, %v2140
    %v3657 = vpack.c.b16 %v2145, %v2143
    %v3658 = vpack.c.b16 %v2146, %v2144
    %v3659 = vpack.c.b16 %v2149, %v2147
    %v3660 = vpack.c.b16 %v2150, %v2148
    %v3661 = vpack.c.b16 %v2153, %v2151
    %v3662 = vpack.c.b16 %v2154, %v2152
    %v3663 = vpack.c.b16 %v2157, %v2155
    %v3664 = vpack.c.b16 %v2158, %v2156
    %v3665 = vpack.c.b16 %v2161, %v2159
    %v3666 = vpack.c.b16 %v2162, %v2160
    %v3667 = vpack.c.b16 %v2165, %v2163
    %v3668 = vpack.c.b16 %v2166, %v2164
    %v3669 = vpack.c.b16 %v2169, %v2167
    %v3670 = vpack.c.b16 %v2170, %v2168
    %v3671 = vpack.c.b16 %v2173, %v2171
    %v3672 = vpack.c.b16 %v2174, %v2172
    %v3673 = vpack.c.b16 %v2177, %v2175
    %v3674 = vpack.c.b16 %v2178, %v2176
    %v3675 = vpack.c.b16 %v2181, %v2179
    %v3676 = vpack.c.b16 %v2182, %v2180
    %v3677 = vpack.c.b16 %v2185, %v2183
    %v3678 = vpack.c.b16 %v2186, %v2184
    %v3679 = vpack.c.b16 %v2189, %v2187
    %v3680 = vpack.c.b16 %v2190, %v2188
    %v3681 = vpack.c.b16 %v2193, %v2191
    %v3682 = vpack.c.b16 %v2194, %v2192
    %v3683 = vpack.c.b16 %v2197, %v2195
    %v3684 = vpack.c.b16 %v2198, %v2196
    %v3685 = vpack.c.b16 %v2201, %v2199
    %v3686 = vpack.c.b16 %v2202, %v2200
    %v3687 = vpack.c.b16 %v2205, %v2203
    %v3688 = vpack.c.b16 %v2206, %v2204
    %v3689 = vpack.c.b16 %v2209, %v2207
    %v3690 = vpack.c.b16 %v2210, %v2208
    %v3691 = vpack.c.b16 %v2213, %v2211
    %v3692 = vpack.c.b16 %v2214, %v2212
    %v3693 = vpack.c.b16 %v2217, %v2215
    %v3694 = vpack.c.b16 %v2218, %v2216
    %v3695 = vpack.c.b16 %v2221, %v2219
    %v3696 = vpack.c.b16 %v2222, %v2220
    %v3697 = vpack.c.b16 %v2225, %v2223
    %v3698 = vpack.c.b16 %v2226, %v2224
    %v3699 = vpack.c.b16 %v2229, %v2227
    %v3700 = vpack.c.b16 %v2230, %v2228
    %v3701 = vpack.c.b16 %v2233, %v2231
    %v3702 = vpack.c.b16 %v2234, %v2232
    %v3703 = vpack.c.b16 %v2237, %v2235
    %v3704 = vpack.c.b16 %v2238, %v2236
    %v3705 = vpack.c.b16 %v2241, %v2239
    %v3706 = vpack.c.b16 %v2242, %v2240
    %v3707 = vpack.c.b16 %v2245, %v2243
    %v3708 = vpack.c.b16 %v2246, %v2244
    %v3709 = vpack.c.b16 %v2249, %v2247
    %v3710 = vpack.c.b16 %v2250, %v2248
    %v3711 = vpack.c.b16 %v2253, %v2251
    %v3712 = vpack.c.b16 %v2254, %v2252
    %v3713 = vpack.c.b16 %v2257, %v2255
    %v3714 = vpack.c.b16 %v2258, %v2256
    %v3715 = vpack.c.b16 %v2261, %v2259
    %v3716 = vpack.c.b16 %v2262, %v2260
    %v3717 = vpack.c.b16 %v2265, %v2263
    %v3718 = vpack.c.b16 %v2266, %v2264
    %v3719 = vpack.c.b16 %v2269, %v2267
    %v3720 = vpack.c.b16 %v2270, %v2268
    %v3721 = vpack.c.b16 %v2273, %v2271
    %v3722 = vpack.c.b16 %v2274, %v2272
    %v3723 = vpack.c.b16 %v2277, %v2275
    %v3724 = vpack.c.b16 %v2278, %v2276
    %v3725 = vpack.c.b16 %v2281, %v2279
    %v3726 = vpack.c.b16 %v2282, %v2280
    %v3727 = vpack.c.b16 %v2285, %v2283
    %v3728 = vpack.c.b16 %v2286, %v2284
    %v3729 = vpack.c.b16 %v2289, %v2287
    %v3730 = vpack.c.b16 %v2290, %v2288
    %v3731 = vpack.c.b16 %v2293, %v2291
    %v3732 = vpack.c.b16 %v2294, %v2292
    %v3733 = vpack.c.b16 %v2297, %v2295
    %v3734 = vpack.c.b16 %v2298, %v2296
    %v3735 = vpack.c.b16 %v2301, %v2299
    %v3736 = vpack.c.b16 %v2302, %v2300
    %v3737 = vpack.c.b16 %v2305, %v2303
    %v3738 = vpack.c.b16 %v2306, %v2304
    %v3739 = vpack.c.b16 %v2309, %v2307
    %v3740 = vpack.c.b16 %v2310, %v2308
    %v3741 = vpack.c.b16 %v2313, %v2311
    %v3742 = vpack.c.b16 %v2314, %v2312
    %v3743 = vpack.c.b16 %v2317, %v2315
    %v3744 = vpack.c.b16 %v2318, %v2316
    %v3745 = vpack.c.b16 %v2321, %v2319
    %v3746 = vpack.c.b16 %v2322, %v2320
    %v3747 = vpack.c.b16 %v2325, %v2323
    %v3748 = vpack.c.b16 %v2326, %v2324
    %v3749 = vpack.c.b16 %v2329, %v2327
    %v3750 = vpack.c.b16 %v2330, %v2328
    %v3751 = vpack.c.b16 %v2333, %v2331
    %v3752 = vpack.c.b16 %v2334, %v2332
    %v3753 = vpack.c.b16 %v2337, %v2335
    %v3754 = vpack.c.b16 %v2338, %v2336
    %v3755 = vpack.c.b16 %v2341, %v2339
    %v3756 = vpack.c.b16 %v2342, %v2340
    %v3757 = vpack.c.b16 %v2345, %v2343
    %v3758 = vpack.c.b16 %v2346, %v2344
    %v3759 = vpack.c.b16 %v2349, %v2347
    %v3760 = vpack.c.b16 %v2350, %v2348
    %v3761 = vpack.c.b16 %v2353, %v2351
    %v3762 = vpack.c.b16 %v2354, %v2352
    %v3763 = vpack.c.b16 %v2357, %v2355
    %v3764 = vpack.c.b16 %v2358, %v2356
    %v3765 = vpack.c.b16 %v2361, %v2359
    %v3766 = vpack.c.b16 %v2362, %v2360
    %v3767 = vpack.c.b16 %v2365, %v2363
    %v3768 = vpack.c.b16 %v2366, %v2364
    %v3769 = vpack.c.b16 %v2369, %v2367
    %v3770 = vpack.c.b16 %v2370, %v2368
    %v3771 = vpack.c.b16 %v2373, %v2371
    %v3772 = vpack.c.b16 %v2374, %v2372
    %v3773 = vpack.c.b16 %v2377, %v2375
    %v3774 = vpack.c.b16 %v2378, %v2376
    %v3775 = vpack.c.b16 %v2381, %v2379
    %v3776 = vpack.c.b16 %v2382, %v2380
    %v3777 = vpack.c.b16 %v2385, %v2383
    %v3778 = vpack.c.b16 %v2386, %v2384
    %v3779 = vpack.c.b16 %v2389, %v2387
    %v3780 = vpack.c.b16 %v2390, %v2388
    %v3781 = vpack.c.b16 %v2393, %v2391
    %v3782 = vpack.c.b16 %v2394, %v2392
    %v3783 = vpack.c.b16 %v2397, %v2395
    %v3784 = vpack.c.b16 %v2398, %v2396
    %v3785 = vpack.c.b16 %v2401, %v2399
    %v3786 = vpack.c.b16 %v2402, %v2400
    %v3787 = vpack.c.b16 %v2405, %v2403
    %v3788 = vpack.c.b16 %v2406, %v2404
    %v3789 = vpack.c.b16 %v2409, %v2407
    %v3790 = vpack.c.b16 %v2410, %v2408
    %v3791 = vpack.c.b16 %v2413, %v2411
    %v3792 = vpack.c.b16 %v2414, %v2412
    %v3793 = vpack.c.b16 %v2417, %v2415
    %v3794 = vpack.c.b16 %v2418, %v2416
    %v3795 = vpack.c.b16 %v2421, %v2419
    %v3796 = vpack.c.b16 %v2422, %v2420
    %v3797 = vpack.c.b16 %v2425, %v2423
    %v3798 = vpack.c.b16 %v2426, %v2424
    %v3799 = vpack.c.b16 %v2429, %v2427
    %v3800 = vpack.c.b16 %v2430, %v2428
    %v3801 = vpack.c.b16 %v2433, %v2431
    %v3802 = vpack.c.b16 %v2434, %v2432
    %v3803 = vpack.c.b16 %v2437, %v2435
    %v3804 = vpack.c.b16 %v2438, %v2436
    %v3805 = vpack.c.b16 %v2441, %v2439
    %v3806 = vpack.c.b16 %v2442, %v2440
    %v3807 = vpack.c.b16 %v2445, %v2443
    %v3808 = vpack.c.b16 %v2446, %v2444
    %v3809 = vpack.c.b16 %v2449, %v2447
    %v3810 = vpack.c.b16 %v2450, %v2448
    %v3811 = vpack.c.b16 %v2453, %v2451
    %v3812 = vpack.c.b16 %v2454, %v2452
    %v3813 = vpack.c.b16 %v2457, %v2455
    %v3814 = vpack.c.b16 %v2458, %v2456
    %v3815 = vpack.c.b16 %v2461, %v2459
    %v3816 = vpack.c.b16 %v2462, %v2460
    %v3817 = vpack.c.b16 %v2465, %v2463
    %v3818 = vpack.c.b16 %v2466, %v2464
    %v3819 = vpack.c.b16 %v2469, %v2467
    %v3820 = vpack.c.b16 %v2470, %v2468
    %v3821 = vpack.c.b16 %v2473, %v2471
    %v3822 = vpack.c.b16 %v2474, %v2472
    %v3823 = vpack.c.b16 %v2477, %v2475
    %v3824 = vpack.c.b16 %v2478, %v2476
    %v3825 = vpack.c.b16 %v2481, %v2479
    %v3826 = vpack.c.b16 %v2482, %v2480
    %v3827 = vpack.c.b16 %v2485, %v2483
    %v3828 = vpack.c.b16 %v2486, %v2484
    %v3829 = vpack.c.b16 %v2489, %v2487
    %v3830 = vpack.c.b16 %v2490, %v2488
    %v3831 = vpack.c.b16 %v2493, %v2491
    %v3832 = vpack.c.b16 %v2494, %v2492
    %v3833 = vpack.c.b16 %v2497, %v2495
    %v3834 = vpack.c.b16 %v2498, %v2496
    %v3835 = vpack.c.b16 %v2501, %v2499
    %v3836 = vpack.c.b16 %v2502, %v2500
    %v3837 = vpack.c.b16 %v2505, %v2503
    %v3838 = vpack.c.b16 %v2506, %v2504
    %v3839 = vpack.c.b16 %v2509, %v2507
    %v3840 = vpack.c.b16 %v2510, %v2508
    %v3841 = vpack.c.b16 %v2513, %v2511
    %v3842 = vpack.c.b16 %v2514, %v2512
    %v3843 = vpack.c.b16 %v2517, %v2515
    %v3844 = vpack.c.b16 %v2518, %v2516
    %v3845 = vpack.c.b16 %v2521, %v2519
    %v3846 = vpack.c.b16 %v2522, %v2520
    %v3847 = vpack.c.b16 %v2525, %v2523
    %v3848 = vpack.c.b16 %v2526, %v2524
    %v3849 = vpack.c.b16 %v2529, %v2527
    %v3850 = vpack.c.b16 %v2530, %v2528
    %v3851 = vpack.c.b16 %v2533, %v2531
    %v3852 = vpack.c.b16 %v2534, %v2532
    %v3853 = vpack.c.b16 %v2537, %v2535
    %v3854 = vpack.c.b16 %v2538, %v2536
    %v3855 = vpack.c.b16 %v2541, %v2539
    %v3856 = vpack.c.b16 %v2542, %v2540
    %v3857 = vpack.c.b16 %v2545, %v2543
    %v3858 = vpack.c.b16 %v2546, %v2544
    %v3859 = vpack.c.b16 %v2549, %v2547
    %v3860 = vpack.c.b16 %v2550, %v2548
    %v3861 = vpack.c.b16 %v2553, %v2551
    %v3862 = vpack.c.b16 %v2554, %v2552
    %v3863 = vpack.c.b16 %v2557, %v2555
    %v3864 = vpack.c.b16 %v2558, %v2556
    %v3865 = vpack.c.b16 %v2561, %v2559
    %v3866 = vpack.c.b16 %v2562, %v2560
    %v3867 = vpack.c.b16 %v2565, %v2563
    %v3868 = vpack.c.b16 %v2566, %v2564
    %v3869 = vpack.c.b16 %v2569, %v2567
    %v3870 = vpack.c.b16 %v2570, %v2568
    %v3871 = vpack.c.b16 %v2573, %v2571
    %v3872 = vpack.c.b16 %v2574, %v2572
    %v3873 = vpack.c.b16 %v2577, %v2575
    %v3874 = vpack.c.b16 %v2578, %v2576
    %v3875 = vpack.c.b16 %v2581, %v2579
    %v3876 = vpack.c.b16 %v2582, %v2580
    %v3877 = vpack.c.b16 %v2585, %v2583
    %v3878 = vpack.c.b16 %v2586, %v2584
    %v3879 = vpack.c.b16 %v2589, %v2587
    %v3880 = vpack.c.b16 %v2590, %v2588
    %v3881 = vpack.c.b16 %v2593, %v2591
    %v3882 = vpack.c.b16 %v2594, %v2592
    %v3883 = vpack.c.b16 %v2597, %v2595
    %v3884 = vpack.c.b16 %v2598, %v2596
    %v3885 = vpack.c.b16 %v2601, %v2599
    %v3886 = vpack.c.b16 %v2602, %v2600
    %v3887 = vpack.c.b16 %v2605, %v2603
    %v3888 = vpack.c.b16 %v2606, %v2604
    %v3889 = vpack.c.b16 %v2609, %v2607
    %v3890 = vpack.c.b16 %v2610, %v2608
    %v3891 = vpack.c.b16 %v2613, %v2611
    %v3892 = vpack.c.b16 %v2614, %v2612
    %v3893 = vpack.c.b16 %v2617, %v2615
    %v3894 = vpack.c.b16 %v2618, %v2616
    %v3895 = vpack.c.b16 %v2621, %v2619
    %v3896 = vpack.c.b16 %v2622, %v2620
    %v3897 = vpack.c.b16 %v2625, %v2623
    %v3898 = vpack.c.b16 %v2626, %v2624
    %v3899 = vpack.c.b16 %v2629, %v2627
    %v3900 = vpack.c.b16 %v2630, %v2628
    %v3901 = vpack.c.b16 %v2633, %v2631
    %v3902 = vpack.c.b16 %v2634, %v2632
    %v3903 = vpack.c.b16 %v2637, %v2635
    %v3904 = vpack.c.b16 %v2638, %v2636
    %v3905 = vpack.c.b16 %v2641, %v2639
    %v3906 = vpack.c.b16 %v2642, %v2640
    %v3907 = vpack.c.b16 %v2645, %v2643
    %v3908 = vpack.c.b16 %v2646, %v2644
    %v3909 = vpack.c.b16 %v2649, %v2647
    %v3910 = vpack.c.b16 %v2650, %v2648
    %v3911 = vpack.c.b16 %v2653, %v2651
    %v3912 = vpack.c.b16 %v2654, %v2652
    %v3913 = vpack.c.b16 %v2657, %v2655
    %v3914 = vpack.c.b16 %v2658, %v2656
    %v3915 = vpack.c.b16 %v2661, %v2659
    %v3916 = vpack.c.b16 %v2662, %v2660
    %v3917 = vpack.c.b16 %v2665, %v2663
    %v3918 = vpack.c.b16 %v2666, %v2664
    %v3919 = vpack.c.b16 %v2669, %v2667
    %v3920 = vpack.c.b16 %v2670, %v2668
    %v3921 = vpack.c.b16 %v2673, %v2671
    %v3922 = vpack.c.b16 %v2674, %v2672
    %v3923 = vpack.c.b16 %v2677, %v2675
    %v3924 = vpack.c.b16 %v2678, %v2676
    %v3925 = vpack.c.b16 %v2681, %v2679
    %v3926 = vpack.c.b16 %v2682, %v2680
    %v3927 = vpack.c.b16 %v2685, %v2683
    %v3928 = vpack.c.b16 %v2686, %v2684
    %v3929 = vpack.c.b16 %v2689, %v2687
    %v3930 = vpack.c.b16 %v2690, %v2688
    %v3931 = vpack.c.b16 %v2693, %v2691
    %v3932 = vpack.c.b16 %v2694, %v2692
    %v3933 = vpack.c.b16 %v2697, %v2695
    %v3934 = vpack.c.b16 %v2698, %v2696
    %v3935 = vpack.c.b16 %v2701, %v2699
    %v3936 = vpack.c.b16 %v2702, %v2700
    %v3937 = vpack.c.b16 %v2705, %v2703
    %v3938 = vpack.c.b16 %v2706, %v2704
    %v3939 = vpack.c.b16 %v2709, %v2707
    %v3940 = vpack.c.b16 %v2710, %v2708
    %v3941 = vpack.c.b16 %v2713, %v2711
    %v3942 = vpack.c.b16 %v2714, %v2712
    %v3943 = vpack.c.b16 %v2717, %v2715
    %v3944 = vpack.c.b16 %v2718, %v2716
    %v3945 = vpack.c.b16 %v2721, %v2719
    %v3946 = vpack.c.b16 %v2722, %v2720
    %v3947 = vpack.c.b16 %v2725, %v2723
    %v3948 = vpack.c.b16 %v2726, %v2724
    %v3949 = vpack.c.b16 %v2729, %v2727
    %v3950 = vpack.c.b16 %v2730, %v2728
    %v3951 = vpack.c.b16 %v2733, %v2731
    %v3952 = vpack.c.b16 %v2734, %v2732
    %v3953 = vpack.c.b16 %v2737, %v2735
    %v3954 = vpack.c.b16 %v2738, %v2736
    %v3955 = vpack.c.b16 %v2741, %v2739
    %v3956 = vpack.c.b16 %v2742, %v2740
    %v3957 = vpack.c.b16 %v2745, %v2743
    %v3958 = vpack.c.b16 %v2746, %v2744
    %v3959 = vpack.c.b16 %v2749, %v2747
    %v3960 = vpack.c.b16 %v2750, %v2748
    %v3961 = vpack.c.b16 %v2753, %v2751
    %v3962 = vpack.c.b16 %v2754, %v2752
    %v3963 = vpack.c.b16 %v2757, %v2755
    %v3964 = vpack.c.b16 %v2758, %v2756
    %v3965 = vpack.c.b16 %v2761, %v2759
    %v3966 = vpack.c.b16 %v2762, %v2760
    %v3967 = vpack.c.b16 %v2765, %v2763
    %v3968 = vpack.c.b16 %v2766, %v2764
    %v3969 = vpack.c.b16 %v2769, %v2767
    %v3970 = vpack.c.b16 %v2770, %v2768
    %v3971 = vpack.c.b16 %v2773, %v2771
    %v3972 = vpack.c.b16 %v2774, %v2772
    %v3973 = vpack.c.b16 %v2777, %v2775
    %v3974 = vpack.c.b16 %v2778, %v2776
    %v3975 = vpack.c.b16 %v2781, %v2779
    %v3976 = vpack.c.b16 %v2782, %v2780
    %v3977 = vpack.c.b16 %v2785, %v2783
    %v3978 = vpack.c.b16 %v2786, %v2784
    %v3979 = vpack.c.b16 %v2789, %v2787
    %v3980 = vpack.c.b16 %v2790, %v2788
    %v3981 = vpack.c.b16 %v2793, %v2791
    %v3982 = vpack.c.b16 %v2794, %v2792
    %v3983 = vpack.c.b16 %v2797, %v2795
    %v3984 = vpack.c.b16 %v2798, %v2796
    %v3985 = vpack.c.b16 %v2801, %v2799
    %v3986 = vpack.c.b16 %v2802, %v2800
    %v3987 = vpack.c.b16 %v2805, %v2803
    %v3988 = vpack.c.b16 %v2806, %v2804
    %v3989 = vpack.c.b16 %v2809, %v2807
    %v3990 = vpack.c.b16 %v2810, %v2808
    %v3991 = vpack.c.b16 %v2813, %v2811
    %v3992 = vpack.c.b16 %v2814, %v2812
    %v3993 = vpack.c.b16 %v2817, %v2815
    %v3994 = vpack.c.b16 %v2818, %v2816
    %v3995 = vpack.c.b16 %v2821, %v2819
    %v3996 = vpack.c.b16 %v2822, %v2820
    %v3997 = vpack.c.b16 %v2825, %v2823
    %v3998 = vpack.c.b16 %v2826, %v2824
    %v3999 = vpack.c.b16 %v2829, %v2827
    %v4000 = vpack.c.b16 %v2830, %v2828
    %v4001 = vpack.c.b16 %v2833, %v2831
    %v4002 = vpack.c.b16 %v2834, %v2832
    %v4003 = vpack.c.b16 %v2837, %v2835
    %v4004 = vpack.c.b16 %v2838, %v2836
    %v4005 = vpack.c.b16 %v2841, %v2839
    %v4006 = vpack.c.b16 %v2842, %v2840
    %v4007 = vpack.c.b16 %v2845, %v2843
    %v4008 = vpack.c.b16 %v2846, %v2844
    %v4009 = vpack.c.b16 %v2849, %v2847
    %v4010 = vpack.c.b16 %v2850, %v2848
    %v4011 = vpack.c.b16 %v2853, %v2851
    %v4012 = vpack.c.b16 %v2854, %v2852
    %v4013 = vpack.c.b16 %v2857, %v2855
    %v4014 = vpack.c.b16 %v2858, %v2856
    %v4015 = vpack.c.b16 %v2861, %v2859
    %v4016 = vpack.c.b16 %v2862, %v2860
    %v4017 = vpack.c.b16 %v2865, %v2863
    %v4018 = vpack.c.b16 %v2866, %v2864
    %v4019 = vpack.c.b16 %v2869, %v2867
    %v4020 = vpack.c.b16 %v2870, %v2868
    %v4021 = vpack.c.b16 %v2873, %v2871
    %v4022 = vpack.c.b16 %v2874, %v2872
    %v4023 = vpack.c.b16 %v2877, %v2875
    %v4024 = vpack.c.b16 %v2878, %v2876
    %v4025 = vpack.c.b16 %v2881, %v2879
    %v4026 = vpack.c.b16 %v2882, %v2880
    %v4027 = vpack.c.b16 %v2885, %v2883
    %v4028 = vpack.c.b16 %v2886, %v2884
    %v4029 = vpack.c.b16 %v2889, %v2887
    %v4030 = vpack.c.b16 %v2890, %v2888
    %v4031 = vpack.c.b16 %v2893, %v2891
    %v4032 = vpack.c.b16 %v2894, %v2892
    %v4033 = vpack.c.b16 %v2897, %v2895
    %v4034 = vpack.c.b16 %v2898, %v2896
    %v4035 = vpack.c.b16 %v2901, %v2899
    %v4036 = vpack.c.b16 %v2902, %v2900
    %v4037 = vpack.c.b16 %v2905, %v2903
    %v4038 = vpack.c.b16 %v2906, %v2904
    %v4039 = vpack.c.b16 %v2909, %v2907
    %v4040 = vpack.c.b16 %v2910, %v2908
    %v4041 = vpack.c.b16 %v2913, %v2911
    %v4042 = vpack.c.b16 %v2914, %v2912
    %v4043 = vpack.c.b16 %v2917, %v2915
    %v4044 = vpack.c.b16 %v2918, %v2916
    %v4045 = vpack.c.b16 %v2921, %v2919
    %v4046 = vpack.c.b16 %v2922, %v2920
    %v4047 = vpack.c.b16 %v2925, %v2923
    %v4048 = vpack.c.b16 %v2926, %v2924
    %v4049 = vpack.c.b16 %v2929, %v2927
    %v4050 = vpack.c.b16 %v2930, %v2928
    %v4051 = vpack.c.b16 %v2933, %v2931
    %v4052 = vpack.c.b16 %v2934, %v2932
    %v4053 = vpack.c.b16 %v2937, %v2935
    %v4054 = vpack.c.b16 %v2938, %v2936
    %v4055 = vpack.c.b16 %v2941, %v2939
    %v4056 = vpack.c.b16 %v2942, %v2940
    %v4057 = vpack.c.b16 %v2945, %v2943
    %v4058 = vpack.c.b16 %v2946, %v2944
    %v4059 = vpack.c.b16 %v2949, %v2947
    %v4060 = vpack.c.b16 %v2950, %v2948
    %v4061 = vpack.c.b16 %v2953, %v2951
    %v4062 = vpack.c.b16 %v2954, %v2952
    %v4063 = vpack.c.b16 %v2957, %v2955
    %v4064 = vpack.c.b16 %v2958, %v2956
    %v4065 = vpack.c.b16 %v2961, %v2959
    %v4066 = vpack.c.b16 %v2962, %v2960
    %v4067 = vpack.c.b16 %v2965, %v2963
    %v4068 = vpack.c.b16 %v2966, %v2964
    %v4069 = vpack.c.b16 %v2969, %v2967
    %v4070 = vpack.c.b16 %v2970, %v2968
    %v4071 = vpack.c.b16 %v2973, %v2971
    %v4072 = vpack.c.b16 %v2974, %v2972
    %v4073 = vpack.c.b16 %v2977, %v2975
    %v4074 = vpack.c.b16 %v2978, %v2976
    %v4075 = vpack.c.b16 %v2981, %v2979
    %v4076 = vpack.c.b16 %v2982, %v2980
    %v4077 = vpack.c.b16 %v2985, %v2983
    %v4078 = vpack.c.b16 %v2986, %v2984
    %v4079 = vpack.c.b16 %v2989, %v2987
    %v4080 = vpack.c.b16 %v2990, %v2988
    %v4081 = vpack.c.b16 %v2993, %v2991
    %v4082 = vpack.c.b16 %v2994, %v2992
    %v4083 = vpack.c.b16 %v2997, %v2995
    %v4084 = vpack.c.b16 %v2998, %v2996
    %v4085 = vpack.c.b16 %v3001, %v2999
    %v4086 = vpack.c.b16 %v3002, %v3000
    %v4087 = vpack.c.b16 %v3005, %v3003
    %v4088 = vpack.c.b16 %v3006, %v3004
    %v4089 = vpack.c.b16 %v3009, %v3007
    %v4090 = vpack.c.b16 %v3010, %v3008
    %v4091 = vpack.c.b16 %v3013, %v3011
    %v4092 = vpack.c.b16 %v3014, %v3012
    %v4093 = vpack.c.b16 %v3017, %v3015
    %v4094 = vpack.c.b16 %v3018, %v3016
    %v4095 = vpack.c.b16 %v3021, %v3019
    %v4096 = vpack.c.b16 %v3022, %v3020
    %v4097 = vpack.c.b16 %v3025, %v3023
    %v4098 = vpack.c.b16 %v3026, %v3024
    %v4099 = vpack.c.b16 %v3029, %v3027
    %v4100 = vpack.c.b16 %v3030, %v3028
    %v4101 = vpack.c.b16 %v3033, %v3031
    %v4102 = vpack.c.b16 %v3034, %v3032
    %v4103 = vpack.c.b16 %v3037, %v3035
    %v4104 = vpack.c.b16 %v3038, %v3036
    %v4105 = vpack.c.b16 %v3041, %v3039
    %v4106 = vpack.c.b16 %v3042, %v3040
    %v4107 = vpack.c.b16 %v3045, %v3043
    %v4108 = vpack.c.b16 %v3046, %v3044
    %v4109 = vpack.c.b16 %v3049, %v3047
    %v4110 = vpack.c.b16 %v3050, %v3048
    %v4111 = vpack.c.b16 %v3053, %v3051
    %v4112 = vpack.c.b16 %v3054, %v3052
    %v4113 = vpack.c.b16 %v3057, %v3055
    %v4114 = vpack.c.b16 %v3058, %v3056
    %v4115 = vpack.c.b16 %v3061, %v3059
    %v4116 = vpack.c.b16 %v3062, %v3060
    %v4117 = vpack.c.b16 %v3065, %v3063
    %v4118 = vpack.c.b16 %v3066, %v3064
    %v4119 = vpack.c.b16 %v3069, %v3067
    %v4120 = vpack.c.b16 %v3070, %v3068
    %v4121 = vpack.c.b16 %v3073, %v3071
    %v4122 = vpack.c.b16 %v3074, %v3072
    %v4123 = vpack.c.b16 %v3077, %v3075
    %v4124 = vpack.c.b16 %v3078, %v3076
    %v4125 = vpack.c.b16 %v3081, %v3079
    %v4126 = vpack.c.b16 %v3082, %v3080
    %v4127 = vpack.c.b16 %v3085, %v3083
    %v4128 = vpack.c.b16 %v3086, %v3084
    %v4129 = vpack.c.b16 %v3089, %v3087
    %v4130 = vpack.c.b16 %v3090, %v3088
    %v4131 = vpack.c.b16 %v3093, %v3091
    %v4132 = vpack.c.b16 %v3094, %v3092
    %v4133 = vpack.c.b16 %v3097, %v3095
    %v4134 = vpack.c.b16 %v3098, %v3096
    %v4135 = vpack.c.b16 %v3101, %v3099
    %v4136 = vpack.c.b16 %v3102, %v3100
    %v4137 = vpack.c.b16 %v3105, %v3103
    %v4138 = vpack.c.b16 %v3106, %v3104
    %v4139 = vpack.c.b16 %v3109, %v3107
    %v4140 = vpack.c.b16 %v3110, %v3108
    %v4141 = vpack.c.b16 %v3113, %v3111
    %v4142 = vpack.c.b16 %v3114, %v3112
    %v4143 = vpack.c.b16 %v3117, %v3115
    %v4144 = vpack.c.b16 %v3118, %v3116
    %v4145 = vpack.c.b16 %v3121, %v3119
    %v4146 = vpack.c.b16 %v3122, %v3120
    %v4147 = vpack.c.b16 %v3125, %v3123
    %v4148 = vpack.c.b16 %v3126, %v3124
    %v4149 = vpack.c.b16 %v3129, %v3127
    %v4150 = vpack.c.b16 %v3130, %v3128
    %v4151 = vpack.c.b16 %v3133, %v3131
    %v4152 = vpack.c.b16 %v3134, %v3132
    %v4153 = vpack.c.b16 %v3137, %v3135
    %v4154 = vpack.c.b16 %v3138, %v3136
    %v4155 = vpack.c.b16 %v3141, %v3139
    %v4156 = vpack.c.b16 %v3142, %v3140
    %v4157 = vpack.c.b16 %v3145, %v3143
    %v4158 = vpack.c.b16 %v3146, %v3144
    %v4159 = vpack.c.b16 %v3149, %v3147
    %v4160 = vpack.c.b16 %v3150, %v3148
    %v4161 = vpack.c.b16 %v3153, %v3151
    %v4162 = vpack.c.b16 %v3154, %v3152
    %v4163 = vpack.c.b16 %v3157, %v3155
    %v4164 = vpack.c.b16 %v3158, %v3156
    %v4165 = vpack.c.b16 %v3161, %v3159
    %v4166 = vpack.c.b16 %v3162, %v3160
    %v4167 = vpack.c.b16 %v3165, %v3163
    %v4168 = vpack.c.b16 %v3166, %v3164
    %v4169 = vpack.c.b16 %v3169, %v3167
    %v4170 = vpack.c.b16 %v3170, %v3168
    %v4171 = vpack.c.b16 %v3173, %v3171
    %v4172 = vpack.c.b16 %v3174, %v3172
    %v4173 = vpack.c.b16 %v3177, %v3175
    %v4174 = vpack.c.b16 %v3178, %v3176
    %v4175 = vpack.c.b16 %v3181, %v3179
    %v4176 = vpack.c.b16 %v3182, %v3180
    %v4177 = vpack.c.b16 %v3185, %v3183
    %v4178 = vpack.c.b16 %v3186, %v3184
    %v4179 = vpack.c.b16 %v3189, %v3187
    %v4180 = vpack.c.b16 %v3190, %v3188
    %v4181 = vpack.c.b16 %v3193, %v3191
    %v4182 = vpack.c.b16 %v3194, %v3192
    %v4183 = vpack.c.b16 %v3197, %v3195
    %v4184 = vpack.c.b16 %v3198, %v3196
    %v4185 = vpack.c.b16 %v3201, %v3199
    %v4186 = vpack.c.b16 %v3202, %v3200
    %v4187 = vpack.c.b16 %v3205, %v3203
    %v4188 = vpack.c.b16 %v3206, %v3204
    %v4189 = vpack.c.b16 %v3209, %v3207
    %v4190 = vpack.c.b16 %v3210, %v3208
    %v4191 = vpack.c.b16 %v3213, %v3211
    %v4192 = vpack.c.b16 %v3214, %v3212
    %v4193 = vpack.c.b16 %v3217, %v3215
    %v4194 = vpack.c.b16 %v3218, %v3216
    %v4195 = vpack.c.b16 %v3221, %v3219
    %v4196 = vpack.c.b16 %v3222, %v3220
    %v4197 = vpack.c.b16 %v3225, %v3223
    %v4198 = vpack.c.b16 %v3226, %v3224
    %v4199 = vpack.c.b16 %v3229, %v3227
    %v4200 = vpack.c.b16 %v3230, %v3228
    %v4201 = vpack.c.b16 %v3233, %v3231
    %v4202 = vpack.c.b16 %v3234, %v3232
    %v4203 = vpack.c.b16 %v3237, %v3235
    %v4204 = vpack.c.b16 %v3238, %v3236
    %v4205 = vpack.c.b16 %v3241, %v3239
    %v4206 = vpack.c.b16 %v3242, %v3240
    %v4207 = vpack.c.b16 %v3245, %v3243
    %v4208 = vpack.c.b16 %v3246, %v3244
    %v4209 = vpack.c.b16 %v3249, %v3247
    %v4210 = vpack.c.b16 %v3250, %v3248
    %v4211 = vpack.c.b16 %v3253, %v3251
    %v4212 = vpack.c.b16 %v3254, %v3252
    %v4213 = vpack.c.b16 %v3257, %v3255
    %v4214 = vpack.c.b16 %v3258, %v3256
    %v4215 = vpack.c.b16 %v3261, %v3259
    %v4216 = vpack.c.b16 %v3262, %v3260
    %v4217 = vpack.c.b16 %v3265, %v3263
    %v4218 = vpack.c.b16 %v3266, %v3264
    %v4219 = vpack.c.b16 %v3269, %v3267
    %v4220 = vpack.c.b16 %v3270, %v3268
    %v4221 = vpack.c.b16 %v3273, %v3271
    %v4222 = vpack.c.b16 %v3274, %v3272
    %v4223 = vpack.c.b16 %v3277, %v3275
    %v4224 = vpack.c.b16 %v3278, %v3276
    %v4225 = vpack.c.b16 %v3281, %v3279
    %v4226 = vpack.c.b16 %v3282, %v3280
    %v4227 = vpack.c.b16 %v3285, %v3283
    %v4228 = vpack.c.b16 %v3286, %v3284
    %v4229 = vpack.c.b16 %v3289, %v3287
    %v4230 = vpack.c.b16 %v3290, %v3288
    %v4231 = vpack.c.b16 %v3293, %v3291
    %v4232 = vpack.c.b16 %v3294, %v3292
    %v4233 = vpack.c.b16 %v3297, %v3295
    %v4234 = vpack.c.b16 %v3298, %v3296
    %v4235 = vpack.c.b16 %v3301, %v3299
    %v4236 = vpack.c.b16 %v3302, %v3300
    %v4237 = vpack.c.b16 %v3305, %v3303
    %v4238 = vpack.c.b16 %v3306, %v3304
    %v4239 = vpack.c.b16 %v3309, %v3307
    %v4240 = vpack.c.b16 %v3310, %v3308
    %v4241 = vpack.c.b16 %v3313, %v3311
    %v4242 = vpack.c.b16 %v3314, %v3312
    %v4243 = vpack.c.b16 %v3317, %v3315
    %v4244 = vpack.c.b16 %v3318, %v3316
    %v4245 = vpack.c.b16 %v3321, %v3319
    %v4246 = vpack.c.b16 %v3322, %v3320
    %v4247 = vpack.c.b16 %v3325, %v3323
    %v4248 = vpack.c.b16 %v3326, %v3324
    %v4249 = vpack.c.b16 %v3329, %v3327
    %v4250 = vpack.c.b16 %v3330, %v3328
    %v4251 = vpack.c.b16 %v3333, %v3331
    %v4252 = vpack.c.b16 %v3334, %v3332
    %v4253 = vpack.c.b16 %v3337, %v3335
    %v4254 = vpack.c.b16 %v3338, %v3336
    %v4255 = vpack.c.b16 %v3341, %v3339
    %v4256 = vpack.c.b16 %v3342, %v3340
    %v4257 = vpack.c.b16 %v3345, %v3343
    %v4258 = vpack.c.b16 %v3346, %v3344
    %v4259 = vpack.c.b16 %v3349, %v3347
    %v4260 = vpack.c.b16 %v3350, %v3348
    %v4261 = vpack.c.b16 %v3353, %v3351
    %v4262 = vpack.c.b16 %v3354, %v3352
    %v4263 = vpack.c.b16 %v3357, %v3355
    %v4264 = vpack.c.b16 %v3358, %v3356
    %v4265 = vpack.c.b16 %v3361, %v3359
    %v4266 = vpack.c.b16 %v3362, %v3360
    %v4267 = vpack.c.b16 %v3365, %v3363
    %v4268 = vpack.c.b16 %v3366, %v3364
    %v4269 = vpack.c.b16 %v3369, %v3367
    %v4270 = vpack.c.b16 %v3370, %v3368
    %v4271 = vpack.c.b16 %v3373, %v3371
    %v4272 = vpack.c.b16 %v3374, %v3372
    %v4273 = vpack.c.b16 %v3377, %v3375
    %v4274 = vpack.c.b16 %v3378, %v3376
    %v4275 = vpack.c.b16 %v3381, %v3379
    %v4276 = vpack.c.b16 %v3382, %v3380
    %v4277 = vpack.c.b16 %v3385, %v3383
    %v4278 = vpack.c.b16 %v3386, %v3384
    %v4279 = vpack.c.b16 %v3389, %v3387
    %v4280 = vpack.c.b16 %v3390, %v3388
    %v4281 = vpack.c.b16 %v3393, %v3391
    %v4282 = vpack.c.b16 %v3394, %v3392
    %v4283 = vpack.c.b16 %v3397, %v3395
    %v4284 = vpack.c.b16 %v3398, %v3396
    %v4285 = vpack.c.b16 %v3401, %v3399
    %v4286 = vpack.c.b16 %v3402, %v3400
    %v4287 = vpack.c.b16 %v3405, %v3403
    %v4288 = vpack.c.b16 %v3406, %v3404
    %v4289 = vpack.c.b16 %v3409, %v3407
    %v4290 = vpack.c.b16 %v3410, %v3408
    %v4291 = vpack.c.b16 %v3413, %v3411
    %v4292 = vpack.c.b16 %v3414, %v3412
    %v4293 = vpack.c.b16 %v3417, %v3415
    %v4294 = vpack.c.b16 %v3418, %v3416
    %v4295 = vpack.c.b16 %v3421, %v3419
    %v4296 = vpack.c.b16 %v3422, %v3420
    %v4297 = vpack.c.b16 %v3425, %v3423
    %v4298 = vpack.c.b16 %v3426, %v3424
    %v4299 = vpack.c.b16 %v3429, %v3427
    %v4300 = vpack.c.b16 %v3430, %v3428
    %v4301 = vpack.c.b16 %v3433, %v3431
    %v4302 = vpack.c.b16 %v3434, %v3432
    %v4303 = vpack.c.b16 %v3437, %v3435
    %v4304 = vpack.c.b16 %v3438, %v3436
    %v4305 = vpack.c.b16 %v3441, %v3439
    %v4306 = vpack.c.b16 %v3442, %v3440
    %v4307 = vpack.c.b16 %v3445, %v3443
    %v4308 = vpack.c.b16 %v3446, %v3444
    %v4309 = vpack.c.b16 %v3449, %v3447
    %v4310 = vpack.c.b16 %v3450, %v3448
    %v4311 = vpack.c.b16 %v3453, %v3451
    %v4312 = vpack.c.b16 %v3454, %v3452
    %v4313 = vpack.c.b16 %v3457, %v3455
    %v4314 = vpack.c.b16 %v3458, %v3456
    %v4315 = vpack.c.b16 %v3461, %v3459
    %v4316 = vpack.c.b16 %v3462, %v3460
    %v4317 = vpack.c.b16 %v3465, %v3463
    %v4318 = vpack.c.b16 %v3466, %v3464
    %v4319 = vpack.c.b16 %v3469, %v3467
    %v4320 = vpack.c.b16 %v3470, %v3468
    %v4321 = vpack.c.b16 %v3473, %v3471
    %v4322 = vpack.c.b16 %v3474, %v3472
    %v4323 = vpack.c.b16 %v3477, %v3475
    %v4324 = vpack.c.b16 %v3478, %v3476
    %v4325 = vpack.c.b16 %v3481, %v3479
    %v4326 = vpack.c.b16 %v3482, %v3480
    %v4327 = vpack.c.b16 %v3485, %v3483
    %v4328 = vpack.c.b16 %v3486, %v3484
    %v4329 = vpack.c.b16 %v3489, %v3487
    %v4330 = vpack.c.b16 %v3490, %v3488
    %v4331 = vpack.c.b16 %v3493, %v3491
    %v4332 = vpack.c.b16 %v3494, %v3492
    %v4333 = vpack.c.b16 %v3497, %v3495
    %v4334 = vpack.c.b16 %v3498, %v3496
    %v4335 = vpack.c.b16 %v3501, %v3499
    %v4336 = vpack.c.b16 %v3502, %v3500
    %v4337 = vpack.c.b16 %v3505, %v3503
    %v4338 = vpack.c.b16 %v3506, %v3504
    %v4339 = vpack.c.b16 %v3509, %v3507
    %v4340 = vpack.c.b16 %v3510, %v3508
    %v4341 = vpack.c.b16 %v3513, %v3511
    %v4342 = vpack.c.b16 %v3514, %v3512
    %v4343 = vpack.c.b16 %v3517, %v3515
    %v4344 = vpack.c.b16 %v3518, %v3516
    %v4345 = vpack.c.b16 %v3521, %v3519
    %v4346 = vpack.c.b16 %v3522, %v3520
    %v4347 = vpack.c.b16 %v3525, %v3523
    %v4348 = vpack.c.b16 %v3526, %v3524
    %v4349 = vpack.c.b16 %v3529, %v3527
    %v4350 = vpack.c.b16 %v3530, %v3528
    %v4351 = vpack.c.b16 %v3533, %v3531
    %v4352 = vpack.c.b16 %v3534, %v3532
    %v4353 = vpack.c.b16 %v3537, %v3535
    %v4354 = vpack.c.b16 %v3538, %v3536
    %v4355 = vpack.c.b16 %v3541, %v3539
    %v4356 = vpack.c.b16 %v3542, %v3540
    %v4357 = vpack.c.b16 %v3545, %v3543
    %v4358 = vpack.c.b16 %v3546, %v3544
    %v4359 = vpack.c.b16 %v3549, %v3547
    %v4360 = vpack.c.b16 %v3550, %v3548
    %v4361 = vpack.c.b16 %v3553, %v3551
    %v4362 = vpack.c.b16 %v3554, %v3552
    %v4363 = vpack.c.b16 %v3557, %v3555
    %v4364 = vpack.c.b16 %v3558, %v3556
    %v4365 = vpack.c.b16 %v3561, %v3559
    %v4366 = vpack.c.b16 %v3562, %v3560
    %v4367 = vpack.c.b16 %v3565, %v3563
    %v4368 = vpack.c.b16 %v3566, %v3564
    %v4369 = vpack.c.b16 %v3569, %v3567
    %v4370 = vpack.c.b16 %v3570, %v3568
    %5171 = vmatprep.subr.bf16.mxu0 %v3572
    %5172 = vmatpush1.bf16.msra.mxu0 %v3571
    %5173 = vmatprep.subr.bf16.mxu0 %v3574
    %5174 = vmatpush1.bf16.msra.mxu0 %v3573
    %5175 = vmatprep.subr.bf16.mxu0 %v3576
    %5176 = vmatpush1.bf16.msra.mxu0 %v3575
    %5177 = vmatprep.subr.bf16.mxu0 %v3578
    %5178 = vmatpush1.bf16.msra.mxu0 %v3577
    %5179 = vmatprep.subr.bf16.mxu0 %v3580
    %5180 = vmatpush1.bf16.msra.mxu0 %v3579
    %5181 = vmatprep.subr.bf16.mxu0 %v3582
    %5182 = vmatpush1.bf16.msra.mxu0 %v3581
    %5183 = vmatprep.subr.bf16.mxu0 %v3584
    %5184 = vmatpush1.bf16.msra.mxu0 %v3583
    %5185 = vmatprep.subr.bf16.mxu0 %v3586
    %5186 = vmatpush1.bf16.msra.mxu0 %v3585
    %5187 = vmatprep.subr.bf16.mxu0 %v3588
    %5188 = vmatpush1.bf16.msra.mxu0 %v3587
    %5189 = vmatprep.subr.bf16.mxu0 %v3590
    %5190 = vmatpush1.bf16.msra.mxu0 %v3589
    %5191 = vmatprep.subr.bf16.mxu0 %v3592
    %5192 = vmatpush1.bf16.msra.mxu0 %v3591
    %5193 = vmatprep.subr.bf16.mxu0 %v3594
    %5194 = vmatpush1.bf16.msra.mxu0 %v3593
    %5195 = vmatprep.subr.bf16.mxu0 %v3596
    %5196 = vmatpush1.bf16.msra.mxu0 %v3595
    %5197 = vmatprep.subr.bf16.mxu0 %v3598
    %5198 = vmatpush1.bf16.msra.mxu0 %v3597
    %5199 = vmatprep.subr.bf16.mxu0 %v3600
    %5200 = vmatpush1.bf16.msra.mxu0 %v3599
    %5201 = vmatprep.subr.bf16.mxu0 %v3602
    %5202 = vmatpush1.bf16.msra.mxu0 %v3601
    %5203 = vmatprep.mubr.bf16.mxu0 %v310
    %5204 = vmatmul.mubr.bf16.gmra.mrb[0].mxu0 %v309
    %v5205 = vpop.f32.mrb[0].mxu0
    %v5206 = vadd.f32 %v1164, %v5205
    %v5207 = vpop.f32.mrb[0].mxu0
    %v5208 = vadd.f32 %v1168, %v5207
    %v5209 = vpop.f32.mrb[0].mxu0
    %v5210 = vpop.f32.mrb[0].mxu0
    %5211 = vdwg.mxu0
    %5212 = vmatprep.subr.bf16.mxu0 %v3604
    %5213 = vmatpush1.bf16.msra.mxu0 %v3603
    %5214 = vmatprep.subr.bf16.mxu0 %v3606
    %5215 = vmatpush1.bf16.msra.mxu0 %v3605
    %5216 = vmatprep.subr.bf16.mxu0 %v3608
    %5217 = vmatpush1.bf16.msra.mxu0 %v3607
    %5218 = vmatprep.subr.bf16.mxu0 %v3610
    %5219 = vmatpush1.bf16.msra.mxu0 %v3609
    %5220 = vmatprep.subr.bf16.mxu0 %v3612
    %5221 = vmatpush1.bf16.msra.mxu0 %v3611
    %5222 = vmatprep.subr.bf16.mxu0 %v3614
    %5223 = vmatpush1.bf16.msra.mxu0 %v3613
    %5224 = vmatprep.subr.bf16.mxu0 %v3616
    %5225 = vmatpush1.bf16.msra.mxu0 %v3615
    %5226 = vmatprep.subr.bf16.mxu0 %v3618
    %5227 = vmatpush1.bf16.msra.mxu0 %v3617
    %5228 = vmatprep.subr.bf16.mxu0 %v3620
    %5229 = vmatpush1.bf16.msra.mxu0 %v3619
    %5230 = vmatprep.subr.bf16.mxu0 %v3622
    %5231 = vmatpush1.bf16.msra.mxu0 %v3621
    %5232 = vmatprep.subr.bf16.mxu0 %v3624
    %5233 = vmatpush1.bf16.msra.mxu0 %v3623
    %5234 = vmatprep.subr.bf16.mxu0 %v3626
    %5235 = vmatpush1.bf16.msra.mxu0 %v3625
    %5236 = vmatprep.subr.bf16.mxu0 %v3628
    %5237 = vmatpush1.bf16.msra.mxu0 %v3627
    %5238 = vmatprep.subr.bf16.mxu0 %v3630
    %5239 = vmatpush1.bf16.msra.mxu0 %v3629
    %5240 = vmatprep.subr.bf16.mxu0 %v3632
    %5241 = vmatpush1.bf16.msra.mxu0 %v3631
    %5242 = vmatprep.subr.bf16.mxu0 %v3634
    %5243 = vmatpush1.bf16.msra.mxu0 %v3633
    %5244 = vmatprep.mubr.bf16.mxu0 %v312
    %5245 = vmatmul.mubr.bf16.gmra.mrb[0].mxu0 %v311
    %v5246 = vpop.f32.mrb[0].mxu0
    %v5247 = vadd.f32 %v5206, %v5246
    %v5248 = vpop.f32.mrb[0].mxu0
    %v5249 = vadd.f32 %v5208, %v5248
    %v5250 = vpop.f32.mrb[0].mxu0
    %v5251 = vpop.f32.mrb[0].mxu0
    %5252 = vdwg.mxu0
    %5253 = vmatprep.subr.bf16.mxu0 %v3636
    %5254 = vmatpush1.bf16.msra.mxu0 %v3635
    %5255 = vmatprep.subr.bf16.mxu0 %v3638
    %5256 = vmatpush1.bf16.msra.mxu0 %v3637
    %5257 = vmatprep.subr.bf16.mxu0 %v3640
    %5258 = vmatpush1.bf16.msra.mxu0 %v3639
    %5259 = vmatprep.subr.bf16.mxu0 %v3642
    %5260 = vmatpush1.bf16.msra.mxu0 %v3641
    %5261 = vmatprep.subr.bf16.mxu0 %v3644
    %5262 = vmatpush1.bf16.msra.mxu0 %v3643
    %5263 = vmatprep.subr.bf16.mxu0 %v3646
    %5264 = vmatpush1.bf16.msra.mxu0 %v3645
    %5265 = vmatprep.subr.bf16.mxu0 %v3648
    %5266 = vmatpush1.bf16.msra.mxu0 %v3647
    %5267 = vmatprep.subr.bf16.mxu0 %v3650
    %5268 = vmatpush1.bf16.msra.mxu0 %v3649
    %5269 = vmatprep.subr.bf16.mxu0 %v3652
    %5270 = vmatpush1.bf16.msra.mxu0 %v3651
    %5271 = vmatprep.subr.bf16.mxu0 %v3654
    %5272 = vmatpush1.bf16.msra.mxu0 %v3653
    %5273 = vmatprep.subr.bf16.mxu0 %v3656
    %5274 = vmatpush1.bf16.msra.mxu0 %v3655
    %5275 = vmatprep.subr.bf16.mxu0 %v3658
    %5276 = vmatpush1.bf16.msra.mxu0 %v3657
    %5277 = vmatprep.subr.bf16.mxu0 %v3660
    %5278 = vmatpush1.bf16.msra.mxu0 %v3659
    %5279 = vmatprep.subr.bf16.mxu0 %v3662
    %5280 = vmatpush1.bf16.msra.mxu0 %v3661
    %5281 = vmatprep.subr.bf16.mxu0 %v3664
    %5282 = vmatpush1.bf16.msra.mxu0 %v3663
    %5283 = vmatprep.subr.bf16.mxu0 %v3666
    %5284 = vmatpush1.bf16.msra.mxu0 %v3665
    %5285 = vmatprep.mubr.bf16.mxu0 %v314
    %5286 = vmatmul.mubr.bf16.gmra.mrb[0].mxu0 %v313
    %v5287 = vpop.f32.mrb[0].mxu0
    %v5288 = vadd.f32 %v5247, %v5287
    %v5289 = vpop.f32.mrb[0].mxu0
    %v5290 = vadd.f32 %v5249, %v5289
    %v5291 = vpop.f32.mrb[0].mxu0
    %v5292 = vpop.f32.mrb[0].mxu0
    %5293 = vdwg.mxu0
    %5294 = vmatprep.subr.bf16.mxu0 %v3668
    %5295 = vmatpush1.bf16.msra.mxu0 %v3667
    %5296 = vmatprep.subr.bf16.mxu0 %v3670
    %5297 = vmatpush1.bf16.msra.mxu0 %v3669
    %5298 = vmatprep.subr.bf16.mxu0 %v3672
    %5299 = vmatpush1.bf16.msra.mxu0 %v3671
    %5300 = vmatprep.subr.bf16.mxu0 %v3674
    %5301 = vmatpush1.bf16.msra.mxu0 %v3673
    %5302 = vmatprep.subr.bf16.mxu0 %v3676
    %5303 = vmatpush1.bf16.msra.mxu0 %v3675
    %5304 = vmatprep.subr.bf16.mxu0 %v3678
    %5305 = vmatpush1.bf16.msra.mxu0 %v3677
    %5306 = vmatprep.subr.bf16.mxu0 %v3680
    %5307 = vmatpush1.bf16.msra.mxu0 %v3679
    %5308 = vmatprep.subr.bf16.mxu0 %v3682
    %5309 = vmatpush1.bf16.msra.mxu0 %v3681
    %5310 = vmatprep.subr.bf16.mxu0 %v3684
    %5311 = vmatpush1.bf16.msra.mxu0 %v3683
    %5312 = vmatprep.subr.bf16.mxu0 %v3686
    %5313 = vmatpush1.bf16.msra.mxu0 %v3685
    %5314 = vmatprep.subr.bf16.mxu0 %v3688
    %5315 = vmatpush1.bf16.msra.mxu0 %v3687
    %5316 = vmatprep.subr.bf16.mxu0 %v3690
    %5317 = vmatpush1.bf16.msra.mxu0 %v3689
    %5318 = vmatprep.subr.bf16.mxu0 %v3692
    %5319 = vmatpush1.bf16.msra.mxu0 %v3691
    %5320 = vmatprep.subr.bf16.mxu0 %v3694
    %5321 = vmatpush1.bf16.msra.mxu0 %v3693
    %5322 = vmatprep.subr.bf16.mxu0 %v3696
    %5323 = vmatpush1.bf16.msra.mxu0 %v3695
    %5324 = vmatprep.subr.bf16.mxu0 %v3698
    %5325 = vmatpush1.bf16.msra.mxu0 %v3697
    %5326 = vmatprep.mubr.bf16.mxu0 %v316
    %5327 = vmatmul.mubr.bf16.gmra.mrb[0].mxu0 %v315
    %v5328 = vpop.f32.mrb[0].mxu0
    %v5329 = vadd.f32 %v5288, %v5328
    %v5330 = vpop.f32.mrb[0].mxu0
    %v5331 = vadd.f32 %v5290, %v5330
    %v5332 = vpop.f32.mrb[0].mxu0
    %v5333 = vpop.f32.mrb[0].mxu0
    %5334 = vdwg.mxu0
    %5335 = vmatprep.subr.bf16.mxu0 %v3700
    %5336 = vmatpush1.bf16.msra.mxu0 %v3699
    %5337 = vmatprep.subr.bf16.mxu0 %v3702
    %5338 = vmatpush1.bf16.msra.mxu0 %v3701
    %5339 = vmatprep.subr.bf16.mxu0 %v3704
    %5340 = vmatpush1.bf16.msra.mxu0 %v3703
    %5341 = vmatprep.subr.bf16.mxu0 %v3706
    %5342 = vmatpush1.bf16.msra.mxu0 %v3705
    %5343 = vmatprep.subr.bf16.mxu0 %v3708
    %5344 = vmatpush1.bf16.msra.mxu0 %v3707
    %5345 = vmatprep.subr.bf16.mxu0 %v3710
    %5346 = vmatpush1.bf16.msra.mxu0 %v3709
    %5347 = vmatprep.subr.bf16.mxu0 %v3712
    %5348 = vmatpush1.bf16.msra.mxu0 %v3711
    %5349 = vmatprep.subr.bf16.mxu0 %v3714
    %5350 = vmatpush1.bf16.msra.mxu0 %v3713
    %5351 = vmatprep.subr.bf16.mxu0 %v3716
    %5352 = vmatpush1.bf16.msra.mxu0 %v3715
    %5353 = vmatprep.subr.bf16.mxu0 %v3718
    %5354 = vmatpush1.bf16.msra.mxu0 %v3717
    %5355 = vmatprep.subr.bf16.mxu0 %v3720
    %5356 = vmatpush1.bf16.msra.mxu0 %v3719
    %5357 = vmatprep.subr.bf16.mxu0 %v3722
    %5358 = vmatpush1.bf16.msra.mxu0 %v3721
    %5359 = vmatprep.subr.bf16.mxu0 %v3724
    %5360 = vmatpush1.bf16.msra.mxu0 %v3723
    %5361 = vmatprep.subr.bf16.mxu0 %v3726
    %5362 = vmatpush1.bf16.msra.mxu0 %v3725
    %5363 = vmatprep.subr.bf16.mxu0 %v3728
    %5364 = vmatpush1.bf16.msra.mxu0 %v3727
    %5365 = vmatprep.subr.bf16.mxu0 %v3730
    %5366 = vmatpush1.bf16.msra.mxu0 %v3729
    %5367 = vmatprep.mubr.bf16.mxu0 %v318
    %5368 = vmatmul.mubr.bf16.gmra.mrb[0].mxu0 %v317
    %v5369 = vpop.f32.mrb[0].mxu0
    %v5370 = vadd.f32 %v5329, %v5369
    %v5371 = vpop.f32.mrb[0].mxu0
    %v5372 = vadd.f32 %v5331, %v5371
    %v5373 = vpop.f32.mrb[0].mxu0
    %v5374 = vpop.f32.mrb[0].mxu0
    %5375 = vdwg.mxu0
    %5376 = vmatprep.subr.bf16.mxu0 %v3732
    %5377 = vmatpush1.bf16.msra.mxu0 %v3731
    %5378 = vmatprep.subr.bf16.mxu0 %v3734
    %5379 = vmatpush1.bf16.msra.mxu0 %v3733
    %5380 = vmatprep.subr.bf16.mxu0 %v3736
    %5381 = vmatpush1.bf16.msra.mxu0 %v3735
    %5382 = vmatprep.subr.bf16.mxu0 %v3738
    %5383 = vmatpush1.bf16.msra.mxu0 %v3737
    %5384 = vmatprep.subr.bf16.mxu0 %v3740
    %5385 = vmatpush1.bf16.msra.mxu0 %v3739
    %5386 = vmatprep.subr.bf16.mxu0 %v3742
    %5387 = vmatpush1.bf16.msra.mxu0 %v3741
    %5388 = vmatprep.subr.bf16.mxu0 %v3744
    %5389 = vmatpush1.bf16.msra.mxu0 %v3743
    %5390 = vmatprep.subr.bf16.mxu0 %v3746
    %5391 = vmatpush1.bf16.msra.mxu0 %v3745
    %5392 = vmatprep.subr.bf16.mxu0 %v3748
    %5393 = vmatpush1.bf16.msra.mxu0 %v3747
    %5394 = vmatprep.subr.bf16.mxu0 %v3750
    %5395 = vmatpush1.bf16.msra.mxu0 %v3749
    %5396 = vmatprep.subr.bf16.mxu0 %v3752
    %5397 = vmatpush1.bf16.msra.mxu0 %v3751
    %5398 = vmatprep.subr.bf16.mxu0 %v3754
    %5399 = vmatpush1.bf16.msra.mxu0 %v3753
    %5400 = vmatprep.subr.bf16.mxu0 %v3756
    %5401 = vmatpush1.bf16.msra.mxu0 %v3755
    %5402 = vmatprep.subr.bf16.mxu0 %v3758
    %5403 = vmatpush1.bf16.msra.mxu0 %v3757
    %5404 = vmatprep.subr.bf16.mxu0 %v3760
    %5405 = vmatpush1.bf16.msra.mxu0 %v3759
    %5406 = vmatprep.subr.bf16.mxu0 %v3762
    %5407 = vmatpush1.bf16.msra.mxu0 %v3761
    %5408 = vmatprep.mubr.bf16.mxu0 %v320
    %5409 = vmatmul.mubr.bf16.gmra.mrb[0].mxu0 %v319
    %v5410 = vpop.f32.mrb[0].mxu0
    %v5411 = vadd.f32 %v5370, %v5410
    %v5412 = vpop.f32.mrb[0].mxu0
    %v5413 = vadd.f32 %v5372, %v5412
    %v5414 = vpop.f32.mrb[0].mxu0
    %v5415 = vpop.f32.mrb[0].mxu0
    %5416 = vdwg.mxu0
    %5417 = vmatprep.subr.bf16.mxu0 %v3764
    %5418 = vmatpush1.bf16.msra.mxu0 %v3763
    %5419 = vmatprep.subr.bf16.mxu0 %v3766
    %5420 = vmatpush1.bf16.msra.mxu0 %v3765
    %5421 = vmatprep.subr.bf16.mxu0 %v3768
    %5422 = vmatpush1.bf16.msra.mxu0 %v3767
    %5423 = vmatprep.subr.bf16.mxu0 %v3770
    %5424 = vmatpush1.bf16.msra.mxu0 %v3769
    %5425 = vmatprep.subr.bf16.mxu0 %v3772
    %5426 = vmatpush1.bf16.msra.mxu0 %v3771
    %5427 = vmatprep.subr.bf16.mxu0 %v3774
    %5428 = vmatpush1.bf16.msra.mxu0 %v3773
    %5429 = vmatprep.subr.bf16.mxu0 %v3776
    %5430 = vmatpush1.bf16.msra.mxu0 %v3775
    %5431 = vmatprep.subr.bf16.mxu0 %v3778
    %5432 = vmatpush1.bf16.msra.mxu0 %v3777
    %5433 = vmatprep.subr.bf16.mxu0 %v3780
    %5434 = vmatpush1.bf16.msra.mxu0 %v3779
    %5435 = vmatprep.subr.bf16.mxu0 %v3782
    %5436 = vmatpush1.bf16.msra.mxu0 %v3781
    %5437 = vmatprep.subr.bf16.mxu0 %v3784
    %5438 = vmatpush1.bf16.msra.mxu0 %v3783
    %5439 = vmatprep.subr.bf16.mxu0 %v3786
    %5440 = vmatpush1.bf16.msra.mxu0 %v3785
    %5441 = vmatprep.subr.bf16.mxu0 %v3788
    %5442 = vmatpush1.bf16.msra.mxu0 %v3787
    %5443 = vmatprep.subr.bf16.mxu0 %v3790
    %5444 = vmatpush1.bf16.msra.mxu0 %v3789
    %5445 = vmatprep.subr.bf16.mxu0 %v3792
    %5446 = vmatpush1.bf16.msra.mxu0 %v3791
    %5447 = vmatprep.subr.bf16.mxu0 %v3794
    %5448 = vmatpush1.bf16.msra.mxu0 %v3793
    %5449 = vmatprep.mubr.bf16.mxu0 %v322
    %5450 = vmatmul.mubr.bf16.gmra.mrb[0].mxu0 %v321
    %v5451 = vpop.f32.mrb[0].mxu0
    %v5452 = vadd.f32 %v5411, %v5451
    %v5453 = vpop.f32.mrb[0].mxu0
    %v5454 = vadd.f32 %v5413, %v5453
    %v5455 = vpop.f32.mrb[0].mxu0
    %v5456 = vpop.f32.mrb[0].mxu0
    %5457 = vdwg.mxu0
    %5458 = vmatprep.subr.bf16.mxu0 %v3796
    %5459 = vmatpush1.bf16.msra.mxu0 %v3795
    %5460 = vmatprep.subr.bf16.mxu0 %v3798
    %5461 = vmatpush1.bf16.msra.mxu0 %v3797
    %5462 = vmatprep.subr.bf16.mxu0 %v3800
    %5463 = vmatpush1.bf16.msra.mxu0 %v3799
    %5464 = vmatprep.subr.bf16.mxu0 %v3802
    %5465 = vmatpush1.bf16.msra.mxu0 %v3801
    %5466 = vmatprep.subr.bf16.mxu0 %v3804
    %5467 = vmatpush1.bf16.msra.mxu0 %v3803
    %5468 = vmatprep.subr.bf16.mxu0 %v3806
    %5469 = vmatpush1.bf16.msra.mxu0 %v3805
    %5470 = vmatprep.subr.bf16.mxu0 %v3808
    %5471 = vmatpush1.bf16.msra.mxu0 %v3807
    %5472 = vmatprep.subr.bf16.mxu0 %v3810
    %5473 = vmatpush1.bf16.msra.mxu0 %v3809
    %5474 = vmatprep.subr.bf16.mxu0 %v3812
    %5475 = vmatpush1.bf16.msra.mxu0 %v3811
    %5476 = vmatprep.subr.bf16.mxu0 %v3814
    %5477 = vmatpush1.bf16.msra.mxu0 %v3813
    %5478 = vmatprep.subr.bf16.mxu0 %v3816
    %5479 = vmatpush1.bf16.msra.mxu0 %v3815
    %5480 = vmatprep.subr.bf16.mxu0 %v3818
    %5481 = vmatpush1.bf16.msra.mxu0 %v3817
    %5482 = vmatprep.subr.bf16.mxu0 %v3820
    %5483 = vmatpush1.bf16.msra.mxu0 %v3819
    %5484 = vmatprep.subr.bf16.mxu0 %v3822
    %5485 = vmatpush1.bf16.msra.mxu0 %v3821
    %5486 = vmatprep.subr.bf16.mxu0 %v3824
    %5487 = vmatpush1.bf16.msra.mxu0 %v3823
    %5488 = vmatprep.subr.bf16.mxu0 %v3826
    %5489 = vmatpush1.bf16.msra.mxu0 %v3825
    %5490 = vmatprep.mubr.bf16.mxu0 %v324
    %5491 = vmatmul.mubr.bf16.gmra.mrb[0].mxu0 %v323
    %v5492 = vpop.f32.mrb[0].mxu0
    %v5493 = vadd.f32 %v5452, %v5492
    %v5494 = vpop.f32.mrb[0].mxu0
    %v5495 = vadd.f32 %v5454, %v5494
    %v5496 = vpop.f32.mrb[0].mxu0
    %v5497 = vpop.f32.mrb[0].mxu0
    %5498 = vdwg.mxu0
    %5499 = vmatprep.subr.bf16.mxu0 %v3828
    %5500 = vmatpush1.bf16.msra.mxu0 %v3827
    %5501 = vmatprep.subr.bf16.mxu0 %v3830
    %5502 = vmatpush1.bf16.msra.mxu0 %v3829
    %5503 = vmatprep.subr.bf16.mxu0 %v3832
    %5504 = vmatpush1.bf16.msra.mxu0 %v3831
    %5505 = vmatprep.subr.bf16.mxu0 %v3834
    %5506 = vmatpush1.bf16.msra.mxu0 %v3833
    %5507 = vmatprep.subr.bf16.mxu0 %v3836
    %5508 = vmatpush1.bf16.msra.mxu0 %v3835
    %5509 = vmatprep.subr.bf16.mxu0 %v3838
    %5510 = vmatpush1.bf16.msra.mxu0 %v3837
    %5511 = vmatprep.subr.bf16.mxu0 %v3840
    %5512 = vmatpush1.bf16.msra.mxu0 %v3839
    %5513 = vmatprep.subr.bf16.mxu0 %v3842
    %5514 = vmatpush1.bf16.msra.mxu0 %v3841
    %5515 = vmatprep.subr.bf16.mxu0 %v3844
    %5516 = vmatpush1.bf16.msra.mxu0 %v3843
    %5517 = vmatprep.subr.bf16.mxu0 %v3846
    %5518 = vmatpush1.bf16.msra.mxu0 %v3845
    %5519 = vmatprep.subr.bf16.mxu0 %v3848
    %5520 = vmatpush1.bf16.msra.mxu0 %v3847
    %5521 = vmatprep.subr.bf16.mxu0 %v3850
    %5522 = vmatpush1.bf16.msra.mxu0 %v3849
    %5523 = vmatprep.subr.bf16.mxu0 %v3852
    %5524 = vmatpush1.bf16.msra.mxu0 %v3851
    %5525 = vmatprep.subr.bf16.mxu0 %v3854
    %5526 = vmatpush1.bf16.msra.mxu0 %v3853
    %5527 = vmatprep.subr.bf16.mxu0 %v3856
    %5528 = vmatpush1.bf16.msra.mxu0 %v3855
    %5529 = vmatprep.subr.bf16.mxu0 %v3858
    %5530 = vmatpush1.bf16.msra.mxu0 %v3857
    %5531 = vmatprep.mubr.bf16.mxu0 %v326
    %5532 = vmatmul.mubr.bf16.gmra.mrb[0].mxu0 %v325
    %v5533 = vpop.f32.mrb[0].mxu0
    %v5534 = vadd.f32 %v5493, %v5533
    %v5535 = vpop.f32.mrb[0].mxu0
    %v5536 = vadd.f32 %v5495, %v5535
    %v5537 = vpop.f32.mrb[0].mxu0
    %v5538 = vpop.f32.mrb[0].mxu0
    %5539 = vdwg.mxu0
    %5540 = vmatprep.subr.bf16.mxu0 %v3860
    %5541 = vmatpush1.bf16.msra.mxu0 %v3859
    %5542 = vmatprep.subr.bf16.mxu0 %v3862
    %5543 = vmatpush1.bf16.msra.mxu0 %v3861
    %5544 = vmatprep.subr.bf16.mxu0 %v3864
    %5545 = vmatpush1.bf16.msra.mxu0 %v3863
    %5546 = vmatprep.subr.bf16.mxu0 %v3866
    %5547 = vmatpush1.bf16.msra.mxu0 %v3865
    %5548 = vmatprep.subr.bf16.mxu0 %v3868
    %5549 = vmatpush1.bf16.msra.mxu0 %v3867
    %5550 = vmatprep.subr.bf16.mxu0 %v3870
    %5551 = vmatpush1.bf16.msra.mxu0 %v3869
    %5552 = vmatprep.subr.bf16.mxu0 %v3872
    %5553 = vmatpush1.bf16.msra.mxu0 %v3871
    %5554 = vmatprep.subr.bf16.mxu0 %v3874
    %5555 = vmatpush1.bf16.msra.mxu0 %v3873
    %5556 = vmatprep.subr.bf16.mxu0 %v3876
    %5557 = vmatpush1.bf16.msra.mxu0 %v3875
    %5558 = vmatprep.subr.bf16.mxu0 %v3878
    %5559 = vmatpush1.bf16.msra.mxu0 %v3877
    %5560 = vmatprep.subr.bf16.mxu0 %v3880
    %5561 = vmatpush1.bf16.msra.mxu0 %v3879
    %5562 = vmatprep.subr.bf16.mxu0 %v3882
    %5563 = vmatpush1.bf16.msra.mxu0 %v3881
    %5564 = vmatprep.subr.bf16.mxu0 %v3884
    %5565 = vmatpush1.bf16.msra.mxu0 %v3883
    %5566 = vmatprep.subr.bf16.mxu0 %v3886
    %5567 = vmatpush1.bf16.msra.mxu0 %v3885
    %5568 = vmatprep.subr.bf16.mxu0 %v3888
    %5569 = vmatpush1.bf16.msra.mxu0 %v3887
    %5570 = vmatprep.subr.bf16.mxu0 %v3890
    %5571 = vmatpush1.bf16.msra.mxu0 %v3889
    %5572 = vmatprep.mubr.bf16.mxu0 %v328
    %5573 = vmatmul.mubr.bf16.gmra.mrb[0].mxu0 %v327
    %v5574 = vpop.f32.mrb[0].mxu0
    %v5575 = vadd.f32 %v5534, %v5574
    %v5576 = vpop.f32.mrb[0].mxu0
    %v5577 = vadd.f32 %v5536, %v5576
    %v5578 = vpop.f32.mrb[0].mxu0
    %v5579 = vpop.f32.mrb[0].mxu0
    %5580 = vdwg.mxu0
    %5581 = vmatprep.subr.bf16.mxu0 %v3892
    %5582 = vmatpush1.bf16.msra.mxu0 %v3891
    %5583 = vmatprep.subr.bf16.mxu0 %v3894
    %5584 = vmatpush1.bf16.msra.mxu0 %v3893
    %5585 = vmatprep.subr.bf16.mxu0 %v3896
    %5586 = vmatpush1.bf16.msra.mxu0 %v3895
    %5587 = vmatprep.subr.bf16.mxu0 %v3898
    %5588 = vmatpush1.bf16.msra.mxu0 %v3897
    %5589 = vmatprep.subr.bf16.mxu0 %v3900
    %5590 = vmatpush1.bf16.msra.mxu0 %v3899
    %5591 = vmatprep.subr.bf16.mxu0 %v3902
    %5592 = vmatpush1.bf16.msra.mxu0 %v3901
    %5593 = vmatprep.subr.bf16.mxu0 %v3904
    %5594 = vmatpush1.bf16.msra.mxu0 %v3903
    %5595 = vmatprep.subr.bf16.mxu0 %v3906
    %5596 = vmatpush1.bf16.msra.mxu0 %v3905
    %5597 = vmatprep.subr.bf16.mxu0 %v3908
    %5598 = vmatpush1.bf16.msra.mxu0 %v3907
    %5599 = vmatprep.subr.bf16.mxu0 %v3910
    %5600 = vmatpush1.bf16.msra.mxu0 %v3909
    %5601 = vmatprep.subr.bf16.mxu0 %v3912
    %5602 = vmatpush1.bf16.msra.mxu0 %v3911
    %5603 = vmatprep.subr.bf16.mxu0 %v3914
    %5604 = vmatpush1.bf16.msra.mxu0 %v3913
    %5605 = vmatprep.subr.bf16.mxu0 %v3916
    %5606 = vmatpush1.bf16.msra.mxu0 %v3915
    %5607 = vmatprep.subr.bf16.mxu0 %v3918
    %5608 = vmatpush1.bf16.msra.mxu0 %v3917
    %5609 = vmatprep.subr.bf16.mxu0 %v3920
    %5610 = vmatpush1.bf16.msra.mxu0 %v3919
    %5611 = vmatprep.subr.bf16.mxu0 %v3922
    %5612 = vmatpush1.bf16.msra.mxu0 %v3921
    %5613 = vmatprep.mubr.bf16.mxu0 %v330
    %5614 = vmatmul.mubr.bf16.gmra.mrb[0].mxu0 %v329
    %v5615 = vpop.f32.mrb[0].mxu0
    %v5616 = vadd.f32 %v5575, %v5615
    %v5617 = vpop.f32.mrb[0].mxu0
    %v5618 = vadd.f32 %v5577, %v5617
    %v5619 = vpop.f32.mrb[0].mxu0
    %v5620 = vpop.f32.mrb[0].mxu0
    %5621 = vdwg.mxu0
    %5622 = vmatprep.subr.bf16.mxu0 %v3924
    %5623 = vmatpush1.bf16.msra.mxu0 %v3923
    %5624 = vmatprep.subr.bf16.mxu0 %v3926
    %5625 = vmatpush1.bf16.msra.mxu0 %v3925
    %5626 = vmatprep.subr.bf16.mxu0 %v3928
    %5627 = vmatpush1.bf16.msra.mxu0 %v3927
    %5628 = vmatprep.subr.bf16.mxu0 %v3930
    %5629 = vmatpush1.bf16.msra.mxu0 %v3929
    %5630 = vmatprep.subr.bf16.mxu0 %v3932
    %5631 = vmatpush1.bf16.msra.mxu0 %v3931
    %5632 = vmatprep.subr.bf16.mxu0 %v3934
    %5633 = vmatpush1.bf16.msra.mxu0 %v3933
    %5634 = vmatprep.subr.bf16.mxu0 %v3936
    %5635 = vmatpush1.bf16.msra.mxu0 %v3935
    %5636 = vmatprep.subr.bf16.mxu0 %v3938
    %5637 = vmatpush1.bf16.msra.mxu0 %v3937
    %5638 = vmatprep.subr.bf16.mxu0 %v3940
    %5639 = vmatpush1.bf16.msra.mxu0 %v3939
    %5640 = vmatprep.subr.bf16.mxu0 %v3942
    %5641 = vmatpush1.bf16.msra.mxu0 %v3941
    %5642 = vmatprep.subr.bf16.mxu0 %v3944
    %5643 = vmatpush1.bf16.msra.mxu0 %v3943
    %5644 = vmatprep.subr.bf16.mxu0 %v3946
    %5645 = vmatpush1.bf16.msra.mxu0 %v3945
    %5646 = vmatprep.subr.bf16.mxu0 %v3948
    %5647 = vmatpush1.bf16.msra.mxu0 %v3947
    %5648 = vmatprep.subr.bf16.mxu0 %v3950
    %5649 = vmatpush1.bf16.msra.mxu0 %v3949
    %5650 = vmatprep.subr.bf16.mxu0 %v3952
    %5651 = vmatpush1.bf16.msra.mxu0 %v3951
    %5652 = vmatprep.subr.bf16.mxu0 %v3954
    %5653 = vmatpush1.bf16.msra.mxu0 %v3953
    %5654 = vmatprep.mubr.bf16.mxu0 %v332
    %5655 = vmatmul.mubr.bf16.gmra.mrb[0].mxu0 %v331
    %v5656 = vpop.f32.mrb[0].mxu0
    %v5657 = vadd.f32 %v5616, %v5656
    %v5658 = vpop.f32.mrb[0].mxu0
    %v5659 = vadd.f32 %v5618, %v5658
    %v5660 = vpop.f32.mrb[0].mxu0
    %v5661 = vpop.f32.mrb[0].mxu0
    %5662 = vdwg.mxu0
    %5663 = vmatprep.subr.bf16.mxu0 %v3956
    %5664 = vmatpush1.bf16.msra.mxu0 %v3955
    %5665 = vmatprep.subr.bf16.mxu0 %v3958
    %5666 = vmatpush1.bf16.msra.mxu0 %v3957
    %5667 = vmatprep.subr.bf16.mxu0 %v3960
    %5668 = vmatpush1.bf16.msra.mxu0 %v3959
    %5669 = vmatprep.subr.bf16.mxu0 %v3962
    %5670 = vmatpush1.bf16.msra.mxu0 %v3961
    %5671 = vmatprep.subr.bf16.mxu0 %v3964
    %5672 = vmatpush1.bf16.msra.mxu0 %v3963
    %5673 = vmatprep.subr.bf16.mxu0 %v3966
    %5674 = vmatpush1.bf16.msra.mxu0 %v3965
    %5675 = vmatprep.subr.bf16.mxu0 %v3968
    %5676 = vmatpush1.bf16.msra.mxu0 %v3967
    %5677 = vmatprep.subr.bf16.mxu0 %v3970
    %5678 = vmatpush1.bf16.msra.mxu0 %v3969
    %5679 = vmatprep.subr.bf16.mxu0 %v3972
    %5680 = vmatpush1.bf16.msra.mxu0 %v3971
    %5681 = vmatprep.subr.bf16.mxu0 %v3974
    %5682 = vmatpush1.bf16.msra.mxu0 %v3973
    %5683 = vmatprep.subr.bf16.mxu0 %v3976
    %5684 = vmatpush1.bf16.msra.mxu0 %v3975
    %5685 = vmatprep.subr.bf16.mxu0 %v3978
    %5686 = vmatpush1.bf16.msra.mxu0 %v3977
    %5687 = vmatprep.subr.bf16.mxu0 %v3980
    %5688 = vmatpush1.bf16.msra.mxu0 %v3979
    %5689 = vmatprep.subr.bf16.mxu0 %v3982
    %5690 = vmatpush1.bf16.msra.mxu0 %v3981
    %5691 = vmatprep.subr.bf16.mxu0 %v3984
    %5692 = vmatpush1.bf16.msra.mxu0 %v3983
    %5693 = vmatprep.subr.bf16.mxu0 %v3986
    %5694 = vmatpush1.bf16.msra.mxu0 %v3985
    %5695 = vmatprep.mubr.bf16.mxu0 %v334
    %5696 = vmatmul.mubr.bf16.gmra.mrb[0].mxu0 %v333
    %v5697 = vpop.f32.mrb[0].mxu0
    %v5698 = vadd.f32 %v5657, %v5697
    %v5699 = vpop.f32.mrb[0].mxu0
    %v5700 = vadd.f32 %v5659, %v5699
    %v5701 = vpop.f32.mrb[0].mxu0
    %v5702 = vpop.f32.mrb[0].mxu0
    %5703 = vdwg.mxu0
    %5704 = vmatprep.subr.bf16.mxu0 %v3988
    %5705 = vmatpush1.bf16.msra.mxu0 %v3987
    %5706 = vmatprep.subr.bf16.mxu0 %v3990
    %5707 = vmatpush1.bf16.msra.mxu0 %v3989
    %5708 = vmatprep.subr.bf16.mxu0 %v3992
    %5709 = vmatpush1.bf16.msra.mxu0 %v3991
    %5710 = vmatprep.subr.bf16.mxu0 %v3994
    %5711 = vmatpush1.bf16.msra.mxu0 %v3993
    %5712 = vmatprep.subr.bf16.mxu0 %v3996
    %5713 = vmatpush1.bf16.msra.mxu0 %v3995
    %5714 = vmatprep.subr.bf16.mxu0 %v3998
    %5715 = vmatpush1.bf16.msra.mxu0 %v3997
    %5716 = vmatprep.subr.bf16.mxu0 %v4000
    %5717 = vmatpush1.bf16.msra.mxu0 %v3999
    %5718 = vmatprep.subr.bf16.mxu0 %v4002
    %5719 = vmatpush1.bf16.msra.mxu0 %v4001
    %5720 = vmatprep.subr.bf16.mxu0 %v4004
    %5721 = vmatpush1.bf16.msra.mxu0 %v4003
    %5722 = vmatprep.subr.bf16.mxu0 %v4006
    %5723 = vmatpush1.bf16.msra.mxu0 %v4005
    %5724 = vmatprep.subr.bf16.mxu0 %v4008
    %5725 = vmatpush1.bf16.msra.mxu0 %v4007
    %5726 = vmatprep.subr.bf16.mxu0 %v4010
    %5727 = vmatpush1.bf16.msra.mxu0 %v4009
    %5728 = vmatprep.subr.bf16.mxu0 %v4012
    %5729 = vmatpush1.bf16.msra.mxu0 %v4011
    %5730 = vmatprep.subr.bf16.mxu0 %v4014
    %5731 = vmatpush1.bf16.msra.mxu0 %v4013
    %5732 = vmatprep.subr.bf16.mxu0 %v4016
    %5733 = vmatpush1.bf16.msra.mxu0 %v4015
    %5734 = vmatprep.subr.bf16.mxu0 %v4018
    %5735 = vmatpush1.bf16.msra.mxu0 %v4017
    %5736 = vmatprep.mubr.bf16.mxu0 %v336
    %5737 = vmatmul.mubr.bf16.gmra.mrb[0].mxu0 %v335
    %v5738 = vpop.f32.mrb[0].mxu0
    %v5739 = vadd.f32 %v5698, %v5738
    %v5740 = vpop.f32.mrb[0].mxu0
    %v5741 = vadd.f32 %v5700, %v5740
    %v5742 = vpop.f32.mrb[0].mxu0
    %v5743 = vpop.f32.mrb[0].mxu0
    %5744 = vdwg.mxu0
    %5745 = vmatprep.subr.bf16.mxu0 %v4020
    %5746 = vmatpush1.bf16.msra.mxu0 %v4019
    %5747 = vmatprep.subr.bf16.mxu0 %v4022
    %5748 = vmatpush1.bf16.msra.mxu0 %v4021
    %5749 = vmatprep.subr.bf16.mxu0 %v4024
    %5750 = vmatpush1.bf16.msra.mxu0 %v4023
    %5751 = vmatprep.subr.bf16.mxu0 %v4026
    %5752 = vmatpush1.bf16.msra.mxu0 %v4025
    %5753 = vmatprep.subr.bf16.mxu0 %v4028
    %5754 = vmatpush1.bf16.msra.mxu0 %v4027
    %5755 = vmatprep.subr.bf16.mxu0 %v4030
    %5756 = vmatpush1.bf16.msra.mxu0 %v4029
    %5757 = vmatprep.subr.bf16.mxu0 %v4032
    %5758 = vmatpush1.bf16.msra.mxu0 %v4031
    %5759 = vmatprep.subr.bf16.mxu0 %v4034
    %5760 = vmatpush1.bf16.msra.mxu0 %v4033
    %5761 = vmatprep.subr.bf16.mxu0 %v4036
    %5762 = vmatpush1.bf16.msra.mxu0 %v4035
    %5763 = vmatprep.subr.bf16.mxu0 %v4038
    %5764 = vmatpush1.bf16.msra.mxu0 %v4037
    %5765 = vmatprep.subr.bf16.mxu0 %v4040
    %5766 = vmatpush1.bf16.msra.mxu0 %v4039
    %5767 = vmatprep.subr.bf16.mxu0 %v4042
    %5768 = vmatpush1.bf16.msra.mxu0 %v4041
    %5769 = vmatprep.subr.bf16.mxu0 %v4044
    %5770 = vmatpush1.bf16.msra.mxu0 %v4043
    %5771 = vmatprep.subr.bf16.mxu0 %v4046
    %5772 = vmatpush1.bf16.msra.mxu0 %v4045
    %5773 = vmatprep.subr.bf16.mxu0 %v4048
    %5774 = vmatpush1.bf16.msra.mxu0 %v4047
    %5775 = vmatprep.subr.bf16.mxu0 %v4050
    %5776 = vmatpush1.bf16.msra.mxu0 %v4049
    %5777 = vmatprep.mubr.bf16.mxu0 %v338
    %5778 = vmatmul.mubr.bf16.gmra.mrb[0].mxu0 %v337
    %v5779 = vpop.f32.mrb[0].mxu0
    %v5780 = vadd.f32 %v5739, %v5779
    %v5781 = vpop.f32.mrb[0].mxu0
    %v5782 = vadd.f32 %v5741, %v5781
    %v5783 = vpop.f32.mrb[0].mxu0
    %v5784 = vpop.f32.mrb[0].mxu0
    %5785 = vdwg.mxu0
    %5786 = vmatprep.subr.bf16.mxu0 %v4052
    %5787 = vmatpush1.bf16.msra.mxu0 %v4051
    %5788 = vmatprep.subr.bf16.mxu0 %v4054
    %5789 = vmatpush1.bf16.msra.mxu0 %v4053
    %5790 = vmatprep.subr.bf16.mxu0 %v4056
    %5791 = vmatpush1.bf16.msra.mxu0 %v4055
    %5792 = vmatprep.subr.bf16.mxu0 %v4058
    %5793 = vmatpush1.bf16.msra.mxu0 %v4057
    %5794 = vmatprep.subr.bf16.mxu0 %v4060
    %5795 = vmatpush1.bf16.msra.mxu0 %v4059
    %5796 = vmatprep.subr.bf16.mxu0 %v4062
    %5797 = vmatpush1.bf16.msra.mxu0 %v4061
    %5798 = vmatprep.subr.bf16.mxu0 %v4064
    %5799 = vmatpush1.bf16.msra.mxu0 %v4063
    %5800 = vmatprep.subr.bf16.mxu0 %v4066
    %5801 = vmatpush1.bf16.msra.mxu0 %v4065
    %5802 = vmatprep.subr.bf16.mxu0 %v4068
    %5803 = vmatpush1.bf16.msra.mxu0 %v4067
    %5804 = vmatprep.subr.bf16.mxu0 %v4070
    %5805 = vmatpush1.bf16.msra.mxu0 %v4069
    %5806 = vmatprep.subr.bf16.mxu0 %v4072
    %5807 = vmatpush1.bf16.msra.mxu0 %v4071
    %5808 = vmatprep.subr.bf16.mxu0 %v4074
    %5809 = vmatpush1.bf16.msra.mxu0 %v4073
    %5810 = vmatprep.subr.bf16.mxu0 %v4076
    %5811 = vmatpush1.bf16.msra.mxu0 %v4075
    %5812 = vmatprep.subr.bf16.mxu0 %v4078
    %5813 = vmatpush1.bf16.msra.mxu0 %v4077
    %5814 = vmatprep.subr.bf16.mxu0 %v4080
    %5815 = vmatpush1.bf16.msra.mxu0 %v4079
    %5816 = vmatprep.subr.bf16.mxu0 %v4082
    %5817 = vmatpush1.bf16.msra.mxu0 %v4081
    %5818 = vmatprep.mubr.bf16.mxu0 %v340
    %5819 = vmatmul.mubr.bf16.gmra.mrb[0].mxu0 %v339
    %v5820 = vpop.f32.mrb[0].mxu0
    %v5821 = vadd.f32 %v5780, %v5820
    %v5822 = vpop.f32.mrb[0].mxu0
    %v5823 = vadd.f32 %v5782, %v5822
    %v5824 = vpop.f32.mrb[0].mxu0
    %v5825 = vpop.f32.mrb[0].mxu0
    %5826 = vdwg.mxu0
    %5827 = vmatprep.subr.bf16.mxu0 %v4084
    %5828 = vmatpush1.bf16.msra.mxu0 %v4083
    %5829 = vmatprep.subr.bf16.mxu0 %v4086
    %5830 = vmatpush1.bf16.msra.mxu0 %v4085
    %5831 = vmatprep.subr.bf16.mxu0 %v4088
    %5832 = vmatpush1.bf16.msra.mxu0 %v4087
    %5833 = vmatprep.subr.bf16.mxu0 %v4090
    %5834 = vmatpush1.bf16.msra.mxu0 %v4089
    %5835 = vmatprep.subr.bf16.mxu0 %v4092
    %5836 = vmatpush1.bf16.msra.mxu0 %v4091
    %5837 = vmatprep.subr.bf16.mxu0 %v4094
    %5838 = vmatpush1.bf16.msra.mxu0 %v4093
    %5839 = vmatprep.subr.bf16.mxu0 %v4096
    %5840 = vmatpush1.bf16.msra.mxu0 %v4095
    %5841 = vmatprep.subr.bf16.mxu0 %v4098
    %5842 = vmatpush1.bf16.msra.mxu0 %v4097
    %5843 = vmatprep.subr.bf16.mxu0 %v4100
    %5844 = vmatpush1.bf16.msra.mxu0 %v4099
    %5845 = vmatprep.subr.bf16.mxu0 %v4102
    %5846 = vmatpush1.bf16.msra.mxu0 %v4101
    %5847 = vmatprep.subr.bf16.mxu0 %v4104
    %5848 = vmatpush1.bf16.msra.mxu0 %v4103
    %5849 = vmatprep.subr.bf16.mxu0 %v4106
    %5850 = vmatpush1.bf16.msra.mxu0 %v4105
    %5851 = vmatprep.subr.bf16.mxu0 %v4108
    %5852 = vmatpush1.bf16.msra.mxu0 %v4107
    %5853 = vmatprep.subr.bf16.mxu0 %v4110
    %5854 = vmatpush1.bf16.msra.mxu0 %v4109
    %5855 = vmatprep.subr.bf16.mxu0 %v4112
    %5856 = vmatpush1.bf16.msra.mxu0 %v4111
    %5857 = vmatprep.subr.bf16.mxu0 %v4114
    %5858 = vmatpush1.bf16.msra.mxu0 %v4113
    %5859 = vmatprep.mubr.bf16.mxu0 %v342
    %5860 = vmatmul.mubr.bf16.gmra.mrb[0].mxu0 %v341
    %v5861 = vpop.f32.mrb[0].mxu0
    %v5862 = vadd.f32 %v5821, %v5861
    %v5863 = vpop.f32.mrb[0].mxu0
    %v5864 = vadd.f32 %v5823, %v5863
    %v5865 = vpop.f32.mrb[0].mxu0
    %v5866 = vpop.f32.mrb[0].mxu0
    %5867 = vdwg.mxu0
    %5868 = vmatprep.subr.bf16.mxu0 %v4116
    %5869 = vmatpush1.bf16.msra.mxu0 %v4115
    %5870 = vmatprep.subr.bf16.mxu0 %v4118
    %5871 = vmatpush1.bf16.msra.mxu0 %v4117
    %5872 = vmatprep.subr.bf16.mxu0 %v4120
    %5873 = vmatpush1.bf16.msra.mxu0 %v4119
    %5874 = vmatprep.subr.bf16.mxu0 %v4122
    %5875 = vmatpush1.bf16.msra.mxu0 %v4121
    %5876 = vmatprep.subr.bf16.mxu0 %v4124
    %5877 = vmatpush1.bf16.msra.mxu0 %v4123
    %5878 = vmatprep.subr.bf16.mxu0 %v4126
    %5879 = vmatpush1.bf16.msra.mxu0 %v4125
    %5880 = vmatprep.subr.bf16.mxu0 %v4128
    %5881 = vmatpush1.bf16.msra.mxu0 %v4127
    %5882 = vmatprep.subr.bf16.mxu0 %v4130
    %5883 = vmatpush1.bf16.msra.mxu0 %v4129
    %5884 = vmatprep.subr.bf16.mxu0 %v4132
    %5885 = vmatpush1.bf16.msra.mxu0 %v4131
    %5886 = vmatprep.subr.bf16.mxu0 %v4134
    %5887 = vmatpush1.bf16.msra.mxu0 %v4133
    %5888 = vmatprep.subr.bf16.mxu0 %v4136
    %5889 = vmatpush1.bf16.msra.mxu0 %v4135
    %5890 = vmatprep.subr.bf16.mxu0 %v4138
    %5891 = vmatpush1.bf16.msra.mxu0 %v4137
    %5892 = vmatprep.subr.bf16.mxu0 %v4140
    %5893 = vmatpush1.bf16.msra.mxu0 %v4139
    %5894 = vmatprep.subr.bf16.mxu0 %v4142
    %5895 = vmatpush1.bf16.msra.mxu0 %v4141
    %5896 = vmatprep.subr.bf16.mxu0 %v4144
    %5897 = vmatpush1.bf16.msra.mxu0 %v4143
    %5898 = vmatprep.subr.bf16.mxu0 %v4146
    %5899 = vmatpush1.bf16.msra.mxu0 %v4145
    %5900 = vmatprep.mubr.bf16.mxu0 %v344
    %5901 = vmatmul.mubr.bf16.gmra.mrb[0].mxu0 %v343
    %v5902 = vpop.f32.mrb[0].mxu0
    %v5903 = vadd.f32 %v5862, %v5902
    %v5904 = vpop.f32.mrb[0].mxu0
    %v5905 = vadd.f32 %v5864, %v5904
    %v5906 = vpop.f32.mrb[0].mxu0
    %v5907 = vpop.f32.mrb[0].mxu0
    %5908 = vdwg.mxu0
    %5909 = vmatprep.subr.bf16.mxu0 %v4148
    %5910 = vmatpush1.bf16.msra.mxu0 %v4147
    %5911 = vmatprep.subr.bf16.mxu0 %v4150
    %5912 = vmatpush1.bf16.msra.mxu0 %v4149
    %5913 = vmatprep.subr.bf16.mxu0 %v4152
    %5914 = vmatpush1.bf16.msra.mxu0 %v4151
    %5915 = vmatprep.subr.bf16.mxu0 %v4154
    %5916 = vmatpush1.bf16.msra.mxu0 %v4153
    %5917 = vmatprep.subr.bf16.mxu0 %v4156
    %5918 = vmatpush1.bf16.msra.mxu0 %v4155
    %5919 = vmatprep.subr.bf16.mxu0 %v4158
    %5920 = vmatpush1.bf16.msra.mxu0 %v4157
    %5921 = vmatprep.subr.bf16.mxu0 %v4160
    %5922 = vmatpush1.bf16.msra.mxu0 %v4159
    %5923 = vmatprep.subr.bf16.mxu0 %v4162
    %5924 = vmatpush1.bf16.msra.mxu0 %v4161
    %5925 = vmatprep.subr.bf16.mxu0 %v4164
    %5926 = vmatpush1.bf16.msra.mxu0 %v4163
    %5927 = vmatprep.subr.bf16.mxu0 %v4166
    %5928 = vmatpush1.bf16.msra.mxu0 %v4165
    %5929 = vmatprep.subr.bf16.mxu0 %v4168
    %5930 = vmatpush1.bf16.msra.mxu0 %v4167
    %5931 = vmatprep.subr.bf16.mxu0 %v4170
    %5932 = vmatpush1.bf16.msra.mxu0 %v4169
    %5933 = vmatprep.subr.bf16.mxu0 %v4172
    %5934 = vmatpush1.bf16.msra.mxu0 %v4171
    %5935 = vmatprep.subr.bf16.mxu0 %v4174
    %5936 = vmatpush1.bf16.msra.mxu0 %v4173
    %5937 = vmatprep.subr.bf16.mxu0 %v4176
    %5938 = vmatpush1.bf16.msra.mxu0 %v4175
    %5939 = vmatprep.subr.bf16.mxu0 %v4178
    %5940 = vmatpush1.bf16.msra.mxu0 %v4177
    %5941 = vmatprep.mubr.bf16.mxu0 %v346
    %5942 = vmatmul.mubr.bf16.gmra.mrb[0].mxu0 %v345
    %v5943 = vpop.f32.mrb[0].mxu0
    %v5944 = vadd.f32 %v5903, %v5943
    %v5945 = vpop.f32.mrb[0].mxu0
    %v5946 = vadd.f32 %v5905, %v5945
    %v5947 = vpop.f32.mrb[0].mxu0
    %v5948 = vpop.f32.mrb[0].mxu0
    %5949 = vdwg.mxu0
    %5950 = vmatprep.subr.bf16.mxu0 %v4180
    %5951 = vmatpush1.bf16.msra.mxu0 %v4179
    %5952 = vmatprep.subr.bf16.mxu0 %v4182
    %5953 = vmatpush1.bf16.msra.mxu0 %v4181
    %5954 = vmatprep.subr.bf16.mxu0 %v4184
    %5955 = vmatpush1.bf16.msra.mxu0 %v4183
    %5956 = vmatprep.subr.bf16.mxu0 %v4186
    %5957 = vmatpush1.bf16.msra.mxu0 %v4185
    %5958 = vmatprep.subr.bf16.mxu0 %v4188
    %5959 = vmatpush1.bf16.msra.mxu0 %v4187
    %5960 = vmatprep.subr.bf16.mxu0 %v4190
    %5961 = vmatpush1.bf16.msra.mxu0 %v4189
    %5962 = vmatprep.subr.bf16.mxu0 %v4192
    %5963 = vmatpush1.bf16.msra.mxu0 %v4191
    %5964 = vmatprep.subr.bf16.mxu0 %v4194
    %5965 = vmatpush1.bf16.msra.mxu0 %v4193
    %5966 = vmatprep.subr.bf16.mxu0 %v4196
    %5967 = vmatpush1.bf16.msra.mxu0 %v4195
    %5968 = vmatprep.subr.bf16.mxu0 %v4198
    %5969 = vmatpush1.bf16.msra.mxu0 %v4197
    %5970 = vmatprep.subr.bf16.mxu0 %v4200
    %5971 = vmatpush1.bf16.msra.mxu0 %v4199
    %5972 = vmatprep.subr.bf16.mxu0 %v4202
    %5973 = vmatpush1.bf16.msra.mxu0 %v4201
    %5974 = vmatprep.subr.bf16.mxu0 %v4204
    %5975 = vmatpush1.bf16.msra.mxu0 %v4203
    %5976 = vmatprep.subr.bf16.mxu0 %v4206
    %5977 = vmatpush1.bf16.msra.mxu0 %v4205
    %5978 = vmatprep.subr.bf16.mxu0 %v4208
    %5979 = vmatpush1.bf16.msra.mxu0 %v4207
    %5980 = vmatprep.subr.bf16.mxu0 %v4210
    %5981 = vmatpush1.bf16.msra.mxu0 %v4209
    %5982 = vmatprep.mubr.bf16.mxu0 %v348
    %5983 = vmatmul.mubr.bf16.gmra.mrb[0].mxu0 %v347
    %v5984 = vpop.f32.mrb[0].mxu0
    %v5985 = vadd.f32 %v5944, %v5984
    %v5986 = vpop.f32.mrb[0].mxu0
    %v5987 = vadd.f32 %v5946, %v5986
    %v5988 = vpop.f32.mrb[0].mxu0
    %v5989 = vpop.f32.mrb[0].mxu0
    %5990 = vdwg.mxu0
    %5991 = vmatprep.subr.bf16.mxu0 %v4212
    %5992 = vmatpush1.bf16.msra.mxu0 %v4211
    %5993 = vmatprep.subr.bf16.mxu0 %v4214
    %5994 = vmatpush1.bf16.msra.mxu0 %v4213
    %5995 = vmatprep.subr.bf16.mxu0 %v4216
    %5996 = vmatpush1.bf16.msra.mxu0 %v4215
    %5997 = vmatprep.subr.bf16.mxu0 %v4218
    %5998 = vmatpush1.bf16.msra.mxu0 %v4217
    %5999 = vmatprep.subr.bf16.mxu0 %v4220
    %6000 = vmatpush1.bf16.msra.mxu0 %v4219
    %6001 = vmatprep.subr.bf16.mxu0 %v4222
    %6002 = vmatpush1.bf16.msra.mxu0 %v4221
    %6003 = vmatprep.subr.bf16.mxu0 %v4224
    %6004 = vmatpush1.bf16.msra.mxu0 %v4223
    %6005 = vmatprep.subr.bf16.mxu0 %v4226
    %6006 = vmatpush1.bf16.msra.mxu0 %v4225
    %6007 = vmatprep.subr.bf16.mxu0 %v4228
    %6008 = vmatpush1.bf16.msra.mxu0 %v4227
    %6009 = vmatprep.subr.bf16.mxu0 %v4230
    %6010 = vmatpush1.bf16.msra.mxu0 %v4229
    %6011 = vmatprep.subr.bf16.mxu0 %v4232
    %6012 = vmatpush1.bf16.msra.mxu0 %v4231
    %6013 = vmatprep.subr.bf16.mxu0 %v4234
    %6014 = vmatpush1.bf16.msra.mxu0 %v4233
    %6015 = vmatprep.subr.bf16.mxu0 %v4236
    %6016 = vmatpush1.bf16.msra.mxu0 %v4235
    %6017 = vmatprep.subr.bf16.mxu0 %v4238
    %6018 = vmatpush1.bf16.msra.mxu0 %v4237
    %6019 = vmatprep.subr.bf16.mxu0 %v4240
    %6020 = vmatpush1.bf16.msra.mxu0 %v4239
    %6021 = vmatprep.subr.bf16.mxu0 %v4242
    %6022 = vmatpush1.bf16.msra.mxu0 %v4241
    %6023 = vmatprep.mubr.bf16.mxu0 %v350
    %6024 = vmatmul.mubr.bf16.gmra.mrb[0].mxu0 %v349
    %v6025 = vpop.f32.mrb[0].mxu0
    %v6026 = vadd.f32 %v5985, %v6025
    %v6027 = vpop.f32.mrb[0].mxu0
    %v6028 = vadd.f32 %v5987, %v6027
    %v6029 = vpop.f32.mrb[0].mxu0
    %v6030 = vpop.f32.mrb[0].mxu0
    %6031 = vdwg.mxu0
    %6032 = vmatprep.subr.bf16.mxu0 %v4244
    %6033 = vmatpush1.bf16.msra.mxu0 %v4243
    %6034 = vmatprep.subr.bf16.mxu0 %v4246
    %6035 = vmatpush1.bf16.msra.mxu0 %v4245
    %6036 = vmatprep.subr.bf16.mxu0 %v4248
    %6037 = vmatpush1.bf16.msra.mxu0 %v4247
    %6038 = vmatprep.subr.bf16.mxu0 %v4250
    %6039 = vmatpush1.bf16.msra.mxu0 %v4249
    %6040 = vmatprep.subr.bf16.mxu0 %v4252
    %6041 = vmatpush1.bf16.msra.mxu0 %v4251
    %6042 = vmatprep.subr.bf16.mxu0 %v4254
    %6043 = vmatpush1.bf16.msra.mxu0 %v4253
    %6044 = vmatprep.subr.bf16.mxu0 %v4256
    %6045 = vmatpush1.bf16.msra.mxu0 %v4255
    %6046 = vmatprep.subr.bf16.mxu0 %v4258
    %6047 = vmatpush1.bf16.msra.mxu0 %v4257
    %6048 = vmatprep.subr.bf16.mxu0 %v4260
    %6049 = vmatpush1.bf16.msra.mxu0 %v4259
    %6050 = vmatprep.subr.bf16.mxu0 %v4262
    %6051 = vmatpush1.bf16.msra.mxu0 %v4261
    %6052 = vmatprep.subr.bf16.mxu0 %v4264
    %6053 = vmatpush1.bf16.msra.mxu0 %v4263
    %6054 = vmatprep.subr.bf16.mxu0 %v4266
    %6055 = vmatpush1.bf16.msra.mxu0 %v4265
    %6056 = vmatprep.subr.bf16.mxu0 %v4268
    %6057 = vmatpush1.bf16.msra.mxu0 %v4267
    %6058 = vmatprep.subr.bf16.mxu0 %v4270
    %6059 = vmatpush1.bf16.msra.mxu0 %v4269
    %6060 = vmatprep.subr.bf16.mxu0 %v4272
    %6061 = vmatpush1.bf16.msra.mxu0 %v4271
    %6062 = vmatprep.subr.bf16.mxu0 %v4274
    %6063 = vmatpush1.bf16.msra.mxu0 %v4273
    %6064 = vmatprep.mubr.bf16.mxu0 %v352
    %6065 = vmatmul.mubr.bf16.gmra.mrb[0].mxu0 %v351
    %v6066 = vpop.f32.mrb[0].mxu0
    %v6067 = vadd.f32 %v6026, %v6066
    %v6068 = vpop.f32.mrb[0].mxu0
    %v6069 = vadd.f32 %v6028, %v6068
    %v6070 = vpop.f32.mrb[0].mxu0
    %v6071 = vpop.f32.mrb[0].mxu0
    %6072 = vdwg.mxu0
    %6073 = vmatprep.subr.bf16.mxu0 %v4276
    %6074 = vmatpush1.bf16.msra.mxu0 %v4275
    %6075 = vmatprep.subr.bf16.mxu0 %v4278
    %6076 = vmatpush1.bf16.msra.mxu0 %v4277
    %6077 = vmatprep.subr.bf16.mxu0 %v4280
    %6078 = vmatpush1.bf16.msra.mxu0 %v4279
    %6079 = vmatprep.subr.bf16.mxu0 %v4282
    %6080 = vmatpush1.bf16.msra.mxu0 %v4281
    %6081 = vmatprep.subr.bf16.mxu0 %v4284
    %6082 = vmatpush1.bf16.msra.mxu0 %v4283
    %6083 = vmatprep.subr.bf16.mxu0 %v4286
    %6084 = vmatpush1.bf16.msra.mxu0 %v4285
    %6085 = vmatprep.subr.bf16.mxu0 %v4288
    %6086 = vmatpush1.bf16.msra.mxu0 %v4287
    %6087 = vmatprep.subr.bf16.mxu0 %v4290
    %6088 = vmatpush1.bf16.msra.mxu0 %v4289
    %6089 = vmatprep.subr.bf16.mxu0 %v4292
    %6090 = vmatpush1.bf16.msra.mxu0 %v4291
    %6091 = vmatprep.subr.bf16.mxu0 %v4294
    %6092 = vmatpush1.bf16.msra.mxu0 %v4293
    %6093 = vmatprep.subr.bf16.mxu0 %v4296
    %6094 = vmatpush1.bf16.msra.mxu0 %v4295
    %6095 = vmatprep.subr.bf16.mxu0 %v4298
    %6096 = vmatpush1.bf16.msra.mxu0 %v4297
    %6097 = vmatprep.subr.bf16.mxu0 %v4300
    %6098 = vmatpush1.bf16.msra.mxu0 %v4299
    %6099 = vmatprep.subr.bf16.mxu0 %v4302
    %6100 = vmatpush1.bf16.msra.mxu0 %v4301
    %6101 = vmatprep.subr.bf16.mxu0 %v4304
    %6102 = vmatpush1.bf16.msra.mxu0 %v4303
    %6103 = vmatprep.subr.bf16.mxu0 %v4306
    %6104 = vmatpush1.bf16.msra.mxu0 %v4305
    %6105 = vmatprep.mubr.bf16.mxu0 %v354
    %6106 = vmatmul.mubr.bf16.gmra.mrb[0].mxu0 %v353
    %v6107 = vpop.f32.mrb[0].mxu0
    %v6108 = vadd.f32 %v6067, %v6107
    %v6109 = vpop.f32.mrb[0].mxu0
    %v6110 = vadd.f32 %v6069, %v6109
    %v6111 = vpop.f32.mrb[0].mxu0
    %v6112 = vpop.f32.mrb[0].mxu0
    %6113 = vdwg.mxu0
    %6114 = vmatprep.subr.bf16.mxu0 %v4308
    %6115 = vmatpush1.bf16.msra.mxu0 %v4307
    %6116 = vmatprep.subr.bf16.mxu0 %v4310
    %6117 = vmatpush1.bf16.msra.mxu0 %v4309
    %6118 = vmatprep.subr.bf16.mxu0 %v4312
    %6119 = vmatpush1.bf16.msra.mxu0 %v4311
    %6120 = vmatprep.subr.bf16.mxu0 %v4314
    %6121 = vmatpush1.bf16.msra.mxu0 %v4313
    %6122 = vmatprep.subr.bf16.mxu0 %v4316
    %6123 = vmatpush1.bf16.msra.mxu0 %v4315
    %6124 = vmatprep.subr.bf16.mxu0 %v4318
    %6125 = vmatpush1.bf16.msra.mxu0 %v4317
    %6126 = vmatprep.subr.bf16.mxu0 %v4320
    %6127 = vmatpush1.bf16.msra.mxu0 %v4319
    %6128 = vmatprep.subr.bf16.mxu0 %v4322
    %6129 = vmatpush1.bf16.msra.mxu0 %v4321
    %6130 = vmatprep.subr.bf16.mxu0 %v4324
    %6131 = vmatpush1.bf16.msra.mxu0 %v4323
    %6132 = vmatprep.subr.bf16.mxu0 %v4326
    %6133 = vmatpush1.bf16.msra.mxu0 %v4325
    %6134 = vmatprep.subr.bf16.mxu0 %v4328
    %6135 = vmatpush1.bf16.msra.mxu0 %v4327
    %6136 = vmatprep.subr.bf16.mxu0 %v4330
    %6137 = vmatpush1.bf16.msra.mxu0 %v4329
    %6138 = vmatprep.subr.bf16.mxu0 %v4332
    %6139 = vmatpush1.bf16.msra.mxu0 %v4331
    %6140 = vmatprep.subr.bf16.mxu0 %v4334
    %6141 = vmatpush1.bf16.msra.mxu0 %v4333
    %6142 = vmatprep.subr.bf16.mxu0 %v4336
    %6143 = vmatpush1.bf16.msra.mxu0 %v4335
    %6144 = vmatprep.subr.bf16.mxu0 %v4338
    %6145 = vmatpush1.bf16.msra.mxu0 %v4337
    %6146 = vmatprep.mubr.bf16.mxu0 %v356
    %6147 = vmatmul.mubr.bf16.gmra.mrb[0].mxu0 %v355
    %v6148 = vpop.f32.mrb[0].mxu0
    %v6149 = vadd.f32 %v6108, %v6148
    %v6150 = vpop.f32.mrb[0].mxu0
    %v6151 = vadd.f32 %v6110, %v6150
    %v6152 = vpop.f32.mrb[0].mxu0
    %v6153 = vpop.f32.mrb[0].mxu0
    %6154 = vdwg.mxu0
    %6155 = vmatprep.subr.bf16.mxu0 %v4340
    %6156 = vmatpush1.bf16.msra.mxu0 %v4339
    %6157 = vmatprep.subr.bf16.mxu0 %v4342
    %6158 = vmatpush1.bf16.msra.mxu0 %v4341
    %6159 = vmatprep.subr.bf16.mxu0 %v4344
    %6160 = vmatpush1.bf16.msra.mxu0 %v4343
    %6161 = vmatprep.subr.bf16.mxu0 %v4346
    %6162 = vmatpush1.bf16.msra.mxu0 %v4345
    %6163 = vmatprep.subr.bf16.mxu0 %v4348
    %6164 = vmatpush1.bf16.msra.mxu0 %v4347
    %6165 = vmatprep.subr.bf16.mxu0 %v4350
    %6166 = vmatpush1.bf16.msra.mxu0 %v4349
    %6167 = vmatprep.subr.bf16.mxu0 %v4352
    %6168 = vmatpush1.bf16.msra.mxu0 %v4351
    %6169 = vmatprep.subr.bf16.mxu0 %v4354
    %6170 = vmatpush1.bf16.msra.mxu0 %v4353
    %6171 = vmatprep.subr.bf16.mxu0 %v4356
    %6172 = vmatpush1.bf16.msra.mxu0 %v4355
    %6173 = vmatprep.subr.bf16.mxu0 %v4358
    %6174 = vmatpush1.bf16.msra.mxu0 %v4357
    %6175 = vmatprep.subr.bf16.mxu0 %v4360
    %6176 = vmatpush1.bf16.msra.mxu0 %v4359
    %6177 = vmatprep.subr.bf16.mxu0 %v4362
    %6178 = vmatpush1.bf16.msra.mxu0 %v4361
    %6179 = vmatprep.subr.bf16.mxu0 %v4364
    %6180 = vmatpush1.bf16.msra.mxu0 %v4363
    %6181 = vmatprep.subr.bf16.mxu0 %v4366
    %6182 = vmatpush1.bf16.msra.mxu0 %v4365
    %6183 = vmatprep.subr.bf16.mxu0 %v4368
    %6184 = vmatpush1.bf16.msra.mxu0 %v4367
    %6185 = vmatprep.subr.bf16.mxu0 %v4370
    %6186 = vmatpush1.bf16.msra.mxu0 %v4369
    %6187 = vmatprep.mubr.bf16.mxu0 %v358
    %6188 = vmatmul.mubr.bf16.gmra.mrb[0].mxu0 %v357
    %v6189 = vpop.f32.mrb[0].mxu0
    %v6190 = vadd.f32 %v6149, %v6189
    %v6191 = vpop.f32.mrb[0].mxu0
    %v6192 = vadd.f32 %v6151, %v6191
    %v6193 = vpop.f32.mrb[0].mxu0
    %v6194 = vpop.f32.mrb[0].mxu0
    %6195 = vdwg.mxu0
    %v6196 = vmax.f32 %v6190, 0.0
    %v6197 = vmax.f32 %v6192, 0.0
    %v6198 = vld [vmem:[%s3] sm:$0xf]
    %v6199 = vlaneseq
    %v6200 = vand.u32 %v6199, 127
    %v6202 = vlaneseq
    %v6203 = vshrl.u32 %v6202, 7
    %v6204 = vsub.s32 0, %v6203
    %v6205 = vrot.slane %v6198, %v6204
    %v6206 = vlaneseq
    %v6207 = vshrl.u32 %v6206, 7
    %v6208 = vsub.s32 2, %v6207
    %v6209 = vrot.slane %v6198, %v6208
    %v6212 = vlaneseq
    %v6213 = vshrl.u32 %v6212, 7
    %v6214 = vsub.s32 0, %v6213
    %v6215 = vrot.slane %v6205, %v6214
    %v6216 = vlaneseq
    %v6217 = vshrl.u32 %v6216, 7
    %v6218 = vsub.s32 0, %v6217
    %v6219 = vrot.slane %v6209, %v6218
    %v6220 = vmul.f32 %v6196, %v6215
    %v6221 = vmul.f32 %v6197, %v6219
    %vm6222 = vcmask 1041408
    %v6223 = vsel %vm6222, %v6220, 0.0
    %vm6224 = vcmask 582656
    %v6225 = vsel %vm6224, %v6221, 0.0
    %v6226 = vadd.f32 %v6223, %v6225
    %6227 = vadd.xlane.f32.xlu0 %v6226
    %v6228 = vpop.xlane.xlu0 %6227
    %vm6229 = vcmp.eq.s32.totalorder %v6200, 0
    %v6230 = vsel %vm6229, %v6228, 0.0
    %v6231 = vadd.f32 %v6230, 0.0
    %v6232 = vlaneseq
    %v6233 = vshrl.u32 %v6232, 7
    %v6234 = vsub.s32 1, %v6233
    %v6235 = vrot.slane %v6198, %v6234
    %v6236 = vlaneseq
    %v6237 = vshrl.u32 %v6236, 7
    %v6238 = vsub.s32 3, %v6237
    %v6239 = vrot.slane %v6198, %v6238
    %v6242 = vlaneseq
    %v6243 = vshrl.u32 %v6242, 7
    %v6244 = vsub.s32 1, %v6243
    %v6245 = vrot.slane %v6235, %v6244
    %v6246 = vlaneseq
    %v6247 = vshrl.u32 %v6246, 7
    %v6248 = vsub.s32 1, %v6247
    %v6249 = vrot.slane %v6239, %v6248
    %v6250 = vmul.f32 %v6196, %v6245
    %v6251 = vmul.f32 %v6197, %v6249
    %v6252 = vsel %vm6222, %v6250, 0.0
    %v6253 = vsel %vm6224, %v6251, 0.0
    %v6254 = vadd.f32 %v6252, %v6253
    %6255 = vadd.xlane.f32.xlu0 %v6254
    %v6256 = vpop.xlane.xlu0 %6255
    %vm6257 = vcmp.eq.s32.totalorder %v6200, 1
    %v6258 = vsel %vm6257, %v6256, 0.0
    %v6259 = vadd.f32 %v6231, %v6258
    %v6260 = vld [vmem:[%s4] sm:$0x1]
    %v6262 = vlaneseq
    %v6263 = vshrl.u32 %v6262, 7
    %v6264 = vsub.s32 0, %v6263
    %v6265 = vrot.slane %v6260, %v6264
    %v6267 = vadd.f32 %v6259, %v6265
    %vm6268 = vcmask 9216
    %v6269 = vsel %vm6268, %v6267, -inf
    %6270 = vmax.xlane.f32.xlu0 %v6269
    %v6271 = vpop.xlane.xlu0 %6270
    %v6272 = vsub.f32 %v6267, %v6271
    %v6273 = vmul.f32 %v6272, 1.442695
    %v6274 = vpow.pop %v6273
    %v6275 = vsel %vm6268, %v6274, 0.0
    %6276 = vadd.xlane.f32.xlu0 %v6275
    %v6277 = vpop.xlane.xlu0 %6276
    %v6278 = vrcp.pop %v6277
    %v6279 = vmul.f32 %v6274, %v6278
    %6280 = vst.msk [vmem:[#allocation2] sm:$0x3] %vm6268, %v6279
    // Predicated region
    $region22: #{tpu_custom_call.1} parent=1 // pred_check
      _
    $region23: #{tpu_custom_call.1} parent=1 // pred_check_branch
      %6282 = sbr.rel (0) target = $region25
    $region24: #{tpu_custom_call.1} parent=1 // pred_region
      %s6284 = ssub.s32 32, 32
      %6285 = vsyncadd [#allocation3], %s6284
      %s6287 = sshll.u32 [#allocation2], 4
      %s6288 = int_to_ptr.vmem [resolvable:$true] %s6287
      %6290 = dma.vmem_to_hbm [thread:$0]  %s6288, 32, %s5, [#allocation3]
    $region25: #{tpu_custom_call.1} parent=1 // pred_fallthru
      _
    // Predicated region
    $region26: #{tpu_custom_call.1} parent=1 // pred_check
      _
    $region27: #{tpu_custom_call.1} parent=1 // pred_check_branch
      %6292 = sbr.rel (0) target = $region29
    $region28: #{tpu_custom_call.1} parent=1 // pred_region
      %6293 = dma.done [#allocation3], 32
    $region29: #{tpu_custom_call.1} parent=1 // pred_fallthru
      _
    %6294 = vsyncpa [#allocation3], 1

</llo_original>
